<compile_context>
chip_gen: v5e
topology: v5e:2x2
jax: 0.10.0
libtpu: 0.0.40
codegen_flags: <defaults>
</compile_context>

<pallas_src>
import functools

import jax
import jax.numpy as jnp
from jax import lax
from jax.experimental import pallas as pl
from jax.experimental.pallas import tpu as pltpu


# ---------------------------------------------------------------------------
# Pallas kernel: per batch element
#   offsets = conv1(x)           (one im2col matmul, channel-grouped output)
#   out     = deform_conv2d(x, offsets) via separable bilinear selection:
#             one batched column-sampling matmul + one K=432 contraction.
# ---------------------------------------------------------------------------
def _fused_kernel(patches_ref, x2d_ref, w1_ref, b1_ref, w2_ref, b2_ref,
                  base_ref, out_ref, cx_ref, ry_ref, t_ref, prod_ref,
                  *, C_IN, H, W, K):
    P = out_ref.shape[2]          # padded output-pixel count (multiple of 128)
    CH = C_IN * H

    # ---- conv1: one MXU matmul -> grouped offsets (rows 0..K-1 = y, K..2K-1 = x)
    # (default MXU precision; offsets feed floor()/equality below — kept in f32)
    offsets = jnp.dot(w1_ref[...], patches_ref[0],
                      preferred_element_type=jnp.float32) + b1_ref[...]   # (2K, P)

    # ---- sampling coordinates, vectorized over all K taps: everything (K, P)
    py = base_ref[0:K, :] + offsets[0:K, :]
    px = base_ref[K:2 * K, :] + offsets[K:2 * K, :]

    # torchvision bilinear_interpolate: zero if fully outside (-1,H)x(-1,W)
    valid = ((py > -1.0) & (py < float(H)) &
             (px > -1.0) & (px < float(W))).astype(jnp.float32)
    y0 = jnp.floor(py)
    x0 = jnp.floor(px)
    ly = py - y0
    lx = px - x0
    hyv = (1.0 - ly) * valid          # fold validity into the y-weights
    lyv = ly * valid
    hx = 1.0 - lx

    r_iota = lax.broadcasted_iota(jnp.int32, (H, P), 0).astype(jnp.float32)
    c_iota = lax.broadcasted_iota(jnp.int32, (W, P), 0).astype(jnp.float32)

    # ---- per-tap separable selection matrices, written straight into VMEM
    #      slabs (lane-stacked Cx, sublane-stacked Ry).  Out-of-range corners
    #      never match the iota, which reproduces torchvision's zero-outside.
    for k in range(K):
        y0k = y0[k:k + 1, :]
        x0k = x0[k:k + 1, :]
        ry_ref[k * H:(k + 1) * H, :] = (
            jnp.where(r_iota == y0k, hyv[k:k + 1, :], 0.0) +
            jnp.where(r_iota == y0k + 1.0, lyv[k:k + 1, :], 0.0))         # (H, P)
        cx_ref[:, k * P:(k + 1) * P] = (
            jnp.where(c_iota == x0k, hx[k:k + 1, :], 0.0) +
            jnp.where(c_iota == x0k + 1.0, lx[k:k + 1, :], 0.0))          # (W, P)

    # ---- one sampling matmul over all taps: (C*H, W) @ (W, K*P) -------------
    t_ref[...] = jnp.dot(x2d_ref[0], cx_ref[...],
                         preferred_element_type=jnp.float32)              # (C*H, K*P)

    # ---- apply the row selectors per (tap, channel) block into the prod slab
    #      (static, aligned slices; no concatenates)
    for k in range(K):
        ry_k = ry_ref[k * H:(k + 1) * H, :]
        for c in range(C_IN):
            prod_ref[k * CH + c * H:k * CH + (c + 1) * H, :] = (
                t_ref[c * H:(c + 1) * H, k * P:(k + 1) * P] * ry_k)

    # ---- one contraction matmul (OC2_pad, K*C*H) @ (K*C*H, P) + bias --------
    out_ref[0] = (jnp.dot(w2_ref[...], prod_ref[...],
                          preferred_element_type=jnp.float32)
                  + b2_ref[...]).astype(out_ref.dtype)


# ---------------------------------------------------------------------------
# Wrapper: layout plumbing (free XLA) + pallas_call; slice/reshape at the end
# ---------------------------------------------------------------------------
def model_forward(x, w1, b1, w2, b2):
    """x: (N,3,H,W) f32; w1:(18,3,3,3); b1:(18,); w2:(3,3,3,3); b2:(3,)."""
    N, C, H, W = x.shape
    OC1, _, KH, KW = w1.shape          # 18
    OC2 = w2.shape[0]                  # 3
    K = KH * KW
    HO, WO = H - KH + 1, W - KW + 1
    P = HO * WO
    P_PAD = ((P + 127) // 128) * 128           # lane-dense output / MXU columns
    OC2_PAD = ((OC2 + 7) // 8) * 8             # full sublane group for the store

    x = x.astype(jnp.float32)
    w1 = w1.astype(jnp.float32)
    b1 = b1.astype(jnp.float32)
    w2 = w2.astype(jnp.float32)
    b2 = b2.astype(jnp.float32)

    # conv1 im2col patches, rows ordered (c, i, j); lanes zero-padded to P_PAD
    cols = []
    for i in range(KH):
        for j in range(KW):
            cols.append(x[:, :, i:i + HO, j:j + WO].reshape(N, C, 1, P))
    patches = jnp.concatenate(cols, axis=2).reshape(N, C * K, P)
    patches = jnp.pad(patches, ((0, 0), (0, 0), (0, P_PAD - P)))          # (N,27,256)

    # (C*H, W) slab for the separable sampling matmul
    x2d = x.reshape(N, C * H, W)                                          # (N,48,16)

    # conv1 weights regrouped: y-offset channels first (rows 0..K-1), then x
    # (torchvision interleaves them as 2k / 2k+1).
    order = jnp.array(list(range(0, 2 * K, 2)) + list(range(1, 2 * K, 2)),
                      dtype=jnp.int32)
    w1g = w1.reshape(OC1, C * K)[order]                                   # (18,27)
    b1g = b1[order].reshape(OC1, 1)                                       # (18,1)

    # Deform weights flattened to one (OC2_PAD, K*C*H) contraction matrix:
    #   column index = k*(C*H) + c*H + r, value = w2[o, c, i_k, j_k]
    w2_k_o_c = jnp.transpose(w2, (2, 3, 0, 1)).reshape(K, OC2, C)
    w2rep = jnp.repeat(w2_k_o_c[..., None], H, axis=-1)                   # (K,OC2,C,H)
    w2flat = jnp.transpose(w2rep, (1, 0, 2, 3)).reshape(OC2, K * C * H)
    w2pad = jnp.zeros((OC2_PAD, K * C * H), jnp.float32).at[:OC2].set(w2flat)
    b2pad = jnp.zeros((OC2_PAD, 1), jnp.float32).at[:OC2, 0].set(b2)

    # Base sampling coordinates per tap (stride=1, pad=0, dilation=1):
    # rows 0..K-1 = p//WO + i_k, rows K..2K-1 = p%WO + j_k; padded to P_PAD.
    p_idx = jnp.arange(P, dtype=jnp.int32)
    row = (p_idx // WO).astype(jnp.float32)
    col = (p_idx % WO).astype(jnp.float32)
    i_k = jnp.array([k // KW for k in range(K)], jnp.float32)[:, None]
    j_k = jnp.array([k % KW for k in range(K)], jnp.float32)[:, None]
    base = jnp.concatenate([row[None, :] + i_k, col[None, :] + j_k], axis=0)
    base = jnp.pad(base, ((0, 0), (0, P_PAD - P)))                        # (18,256)

    kernel = functools.partial(_fused_kernel, C_IN=C, H=H, W=W, K=K)

    out_flat = pl.pallas_call(
        kernel,
        out_shape=jax.ShapeDtypeStruct((N, OC2_PAD, P_PAD), jnp.float32),
        grid_spec=pltpu.PrefetchScalarGridSpec(
            num_scalar_prefetch=0,
            grid=(N,),
            in_specs=[
                pl.BlockSpec((1, C * K, P_PAD), lambda n: (n, 0, 0)),     # patches
                pl.BlockSpec((1, C * H, W), lambda n: (n, 0, 0)),         # x2d
                pl.BlockSpec((OC1, C * K), lambda n: (0, 0)),             # w1 grouped
                pl.BlockSpec((OC1, 1), lambda n: (0, 0)),                 # b1 grouped
                pl.BlockSpec((OC2_PAD, K * C * H), lambda n: (0, 0)),     # w2 flat
                pl.BlockSpec((OC2_PAD, 1), lambda n: (0, 0)),             # b2
                pl.BlockSpec((2 * K, P_PAD), lambda n: (0, 0)),           # base yx
            ],
            out_specs=pl.BlockSpec((1, OC2_PAD, P_PAD), lambda n: (n, 0, 0)),
            scratch_shapes=[
                pltpu.VMEM((W, K * P_PAD), jnp.float32),          # Cx slab (16,2304)
                pltpu.VMEM((K * H, P_PAD), jnp.float32),          # Ry slab (144,256)
                pltpu.VMEM((C * H, K * P_PAD), jnp.float32),      # T slab  (48,2304)
                pltpu.VMEM((K * C * H, P_PAD), jnp.float32),      # prod    (432,256)
            ],
        ),
        compiler_params=pltpu.CompilerParams(
            dimension_semantics=("parallel",),
        ),
    )(patches, x2d, w1g, b1g, w2pad, b2pad, base)

    return out_flat[:, :OC2, :P].reshape(N, OC2, HO, WO)


# ---------------------------------------------------------------------------
# Pure-JAX reference (same torchvision deform_conv2d semantics) for checking
# ---------------------------------------------------------------------------
def _reference(x, w1, b1, w2, b2):
    N, C, H, W = x.shape
    KH, KW = 3, 3
    HO, WO = H - KH + 1, W - KW + 1

    offs = lax.conv_general_dilated(
        x, w1, window_strides=(1, 1), padding="VALID",
        dimension_numbers=("NCHW", "OIHW", "NCHW")) + b1[None, :, None, None]

    by = jnp.arange(HO, dtype=jnp.float32)[:, None]
    bx = jnp.arange(WO, dtype=jnp.float32)[None, :]
    out = jnp.zeros((N, w2.shape[0], HO, WO), jnp.float32)
    for n in range(N):
        xn = x[n]
        acc = jnp.zeros((w2.shape[0], HO, WO), jnp.float32)
        for k in range(KH * KW):
            i, j = divmod(k, KW)
            py = by + float(i) + offs[n, 2 * k]
            px = bx + float(j) + offs[n, 2 * k + 1]
            valid = (py > -1) & (py < H) & (px > -1) & (px < W)
            y0 = jnp.floor(py); x0 = jnp.floor(px)
            ly = py - y0; lx = px - x0
            hy = 1 - ly; hx = 1 - lx
            y0i = y0.astype(jnp.int32); x0i = x0.astype(jnp.int32)

            def sample(yy, xx, ok):
                v = xn[:, jnp.clip(yy, 0, H - 1), jnp.clip(xx, 0, W - 1)]
                return jnp.where(ok[None], v, 0.0)

            v = ((hy * hx)[None] * sample(y0i, x0i, (y0i >= 0) & (x0i >= 0)) +
                 (hy * lx)[None] * sample(y0i, x0i + 1, (y0i >= 0) & (x0i + 1 <= W - 1)) +
                 (ly * hx)[None] * sample(y0i + 1, x0i, (y0i + 1 <= H - 1) & (x0i >= 0)) +
                 (ly * lx)[None] * sample(y0i + 1, x0i + 1,
                                          (y0i + 1 <= H - 1) & (x0i + 1 <= W - 1)))
            v = jnp.where(valid[None], v, 0.0)
            acc = acc + jnp.einsum("oc,chw->ohw", w2[:, :, i, j], v)
        out = out.at[n].set(acc + b2[:, None, None])
    return out


if __name__ == "__main__":
    key = jax.random.PRNGKey(0)
    k_x, k_w1, k_b1, k_w2, k_b2 = jax.random.split(key, 5)

    N, C, H, W = 2, 3, 16, 16
    x = jax.random.normal(k_x, (N, C, H, W), jnp.float32)

    # Deterministic "kaiming-uniform-like" init (shapes from the module).
    fan1 = C * 3 * 3
    w1 = jax.random.uniform(k_w1, (18, C, 3, 3), jnp.float32,
                            -1.0 / jnp.sqrt(fan1), 1.0 / jnp.sqrt(fan1))
    b1 = jax.random.uniform(k_b1, (18,), jnp.float32,
                            -1.0 / jnp.sqrt(fan1), 1.0 / jnp.sqrt(fan1))
    w2 = jax.random.uniform(k_w2, (3, C, 3, 3), jnp.float32,
                            -1.0 / jnp.sqrt(fan1), 1.0 / jnp.sqrt(fan1))
    b2 = jax.random.uniform(k_b2, (3,), jnp.float32,
                            -1.0 / jnp.sqrt(fan1), 1.0 / jnp.sqrt(fan1))

    out = model_forward(x, w1, b1, w2, b2)
    out = jax.block_until_ready(out)

    ref = jax.block_until_ready(_reference(x, w1, b1, w2, b2))
    assert out.shape == (N, 3, H - 2, W - 2), out.shape
    assert jnp.allclose(out, ref, atol=1e-3, rtol=1e-3), \
        f"max abs err {jnp.max(jnp.abs(out - ref))}"

    print("KERNEL_OK")
</pallas_src>

<mosaic_0001>
module attributes {stable_mosaic.version = 11 : i64} {
  func.func @_fused_kernel(%arg0: i32, %arg1: memref<1x27x256xf32, #tpu.memory_space<vmem>>, %arg2: memref<1x48x16xf32, #tpu.memory_space<vmem>>, %arg3: memref<18x27xf32, #tpu.memory_space<vmem>>, %arg4: memref<18x1xf32, #tpu.memory_space<vmem>>, %arg5: memref<8x432xf32, #tpu.memory_space<vmem>>, %arg6: memref<8x1xf32, #tpu.memory_space<vmem>>, %arg7: memref<18x256xf32, #tpu.memory_space<vmem>>, %arg8: memref<1x8x256xf32, #tpu.memory_space<vmem>>, %arg9: memref<16x2304xf32, #tpu.memory_space<vmem>>, %arg10: memref<144x256xf32, #tpu.memory_space<vmem>>, %arg11: memref<48x2304xf32, #tpu.memory_space<vmem>>, %arg12: memref<432x256xf32, #tpu.memory_space<vmem>>) attributes {dimension_semantics = [#tpu.dimension_semantics<parallel>], iteration_bounds = array<i64: 2>, scalar_prefetch = 0 : i64, scratch_operands = 4 : i64, tpu.core_type = #tpu.core_type<tc>, window_params = [{transform_indices = @transform_0, window_bounds = array<i64: 1, 27, 256>}, {transform_indices = @transform_1, window_bounds = array<i64: 1, 48, 16>}, {pipeline_mode = #tpu.pipeline_mode<synchronous>, transform_indices = @transform_2, window_bounds = array<i64: 18, 27>}, {pipeline_mode = #tpu.pipeline_mode<synchronous>, transform_indices = @transform_3, window_bounds = array<i64: 18, 1>}, {pipeline_mode = #tpu.pipeline_mode<synchronous>, transform_indices = @transform_4, window_bounds = array<i64: 8, 432>}, {pipeline_mode = #tpu.pipeline_mode<synchronous>, transform_indices = @transform_5, window_bounds = array<i64: 8, 1>}, {pipeline_mode = #tpu.pipeline_mode<synchronous>, transform_indices = @transform_6, window_bounds = array<i64: 18, 256>}, {transform_indices = @transform_7, window_bounds = array<i64: 1, 8, 256>}]} {
    %c0 = arith.constant 0 : index
    %c0_0 = arith.constant 0 : index
    %0 = vector.load %arg3[%c0, %c0_0] : memref<18x27xf32, #tpu.memory_space<vmem>>, vector<18x27xf32>
    %c0_1 = arith.constant 0 : index
    %c0_2 = arith.constant 0 : index
    %c0_3 = arith.constant 0 : index
    %1 = vector.load %arg1[%c0_1, %c0_2, %c0_3] : memref<1x27x256xf32, #tpu.memory_space<vmem>>, vector<1x27x256xf32>
    %2 = vector.shape_cast %1 : vector<1x27x256xf32> to vector<27x256xf32>
    %cst = arith.constant dense<0.000000e+00> : vector<18x256xf32>
    %3 = tpu.matmul %0, %2, %cst {dimension_numbers = #tpu.dot_dimension_numbers<[1], [0], [0], [1], [0, 0, 1, 1], [], []>} : vector<18x27xf32>, vector<27x256xf32>, vector<18x256xf32> -> vector<18x256xf32>
    %c0_4 = arith.constant 0 : index
    %c0_5 = arith.constant 0 : index
    %4 = vector.load %arg4[%c0_4, %c0_5] : memref<18x1xf32, #tpu.memory_space<vmem>>, vector<18x1xf32>
    %5 = vector.broadcast %4 : vector<18x1xf32> to vector<18x256xf32>
    %6 = arith.addf %3, %5 : vector<18x256xf32>
    %c0_6 = arith.constant 0 : index
    %c0_7 = arith.constant 0 : index
    %7 = vector.load %arg7[%c0_6, %c0_7] : memref<18x256xf32, #tpu.memory_space<vmem>>, vector<9x256xf32>
    %8 = vector.extract_strided_slice %6 {offsets = [0, 0], sizes = [9, 256], strides = [1, 1]} : vector<18x256xf32> to vector<9x256xf32>
    %9 = arith.addf %7, %8 : vector<9x256xf32>
    %c9 = arith.constant 9 : index
    %c0_8 = arith.constant 0 : index
    %10 = vector.load %arg7[%c9, %c0_8] : memref<18x256xf32, #tpu.memory_space<vmem>>, vector<9x256xf32>
    %11 = vector.extract_strided_slice %6 {offsets = [9, 0], sizes = [9, 256], strides = [1, 1]} : vector<18x256xf32> to vector<9x256xf32>
    %12 = arith.addf %10, %11 : vector<9x256xf32>
    %cst_9 = arith.constant -1.000000e+00 : f32
    %13 = vector.broadcast %cst_9 : f32 to vector<9x256xf32>
    %14 = arith.cmpf ogt, %9, %13 : vector<9x256xf32>
    %cst_10 = arith.constant 1.600000e+01 : f32
    %15 = vector.broadcast %cst_10 : f32 to vector<9x256xf32>
    %16 = arith.cmpf olt, %9, %15 : vector<9x256xf32>
    %17 = arith.andi %14, %16 : vector<9x256xi1>
    %cst_11 = arith.constant -1.000000e+00 : f32
    %18 = vector.broadcast %cst_11 : f32 to vector<9x256xf32>
    %19 = arith.cmpf ogt, %12, %18 : vector<9x256xf32>
    %20 = arith.andi %17, %19 : vector<9x256xi1>
    %cst_12 = arith.constant 1.600000e+01 : f32
    %21 = vector.broadcast %cst_12 : f32 to vector<9x256xf32>
    %22 = arith.cmpf olt, %12, %21 : vector<9x256xf32>
    %23 = arith.andi %20, %22 : vector<9x256xi1>
    %24 = arith.extui %23 : vector<9x256xi1> to vector<9x256xi32>
    %25 = arith.sitofp %24 : vector<9x256xi32> to vector<9x256xf32>
    %26 = math.floor %9 : vector<9x256xf32>
    %27 = math.floor %12 : vector<9x256xf32>
    %28 = arith.subf %9, %26 : vector<9x256xf32>
    %29 = arith.subf %12, %27 : vector<9x256xf32>
    %cst_13 = arith.constant 1.000000e+00 : f32
    %30 = vector.broadcast %cst_13 : f32 to vector<9x256xf32>
    %31 = arith.subf %30, %28 : vector<9x256xf32>
    %32 = arith.mulf %31, %25 : vector<9x256xf32>
    %33 = arith.mulf %28, %25 : vector<9x256xf32>
    %cst_14 = arith.constant 1.000000e+00 : f32
    %34 = vector.broadcast %cst_14 : f32 to vector<9x256xf32>
    %35 = arith.subf %34, %29 : vector<9x256xf32>
    %36 = tpu.iota {dimensions = array<i32: 0>} : vector<16x256xi32>
    %37 = arith.sitofp %36 : vector<16x256xi32> to vector<16x256xf32>
    %38 = tpu.iota {dimensions = array<i32: 0>} : vector<16x256xi32>
    %39 = arith.sitofp %38 : vector<16x256xi32> to vector<16x256xf32>
    %40 = vector.extract_strided_slice %26 {offsets = [0, 0], sizes = [1, 256], strides = [1, 1]} : vector<9x256xf32> to vector<1x256xf32>
    %41 = vector.extract_strided_slice %27 {offsets = [0, 0], sizes = [1, 256], strides = [1, 1]} : vector<9x256xf32> to vector<1x256xf32>
    %42 = vector.broadcast %40 : vector<1x256xf32> to vector<16x256xf32>
    %43 = arith.cmpf oeq, %37, %42 : vector<16x256xf32>
    %44 = vector.extract_strided_slice %32 {offsets = [0, 0], sizes = [1, 256], strides = [1, 1]} : vector<9x256xf32> to vector<1x256xf32>
    %cst_15 = arith.constant 0.000000e+00 : f32
    %45 = vector.shape_cast %44 : vector<1x256xf32> to vector<1x256xf32>
    %46 = vector.broadcast %45 : vector<1x256xf32> to vector<16x256xf32>
    %47 = vector.broadcast %cst_15 : f32 to vector<16x256xf32>
    %48 = arith.select %43, %46, %47 : vector<16x256xi1>, vector<16x256xf32>
    %cst_16 = arith.constant 1.000000e+00 : f32
    %49 = vector.broadcast %cst_16 : f32 to vector<1x256xf32>
    %50 = arith.addf %40, %49 : vector<1x256xf32>
    %51 = vector.broadcast %50 : vector<1x256xf32> to vector<16x256xf32>
    %52 = arith.cmpf oeq, %37, %51 : vector<16x256xf32>
    %53 = vector.extract_strided_slice %33 {offsets = [0, 0], sizes = [1, 256], strides = [1, 1]} : vector<9x256xf32> to vector<1x256xf32>
    %cst_17 = arith.constant 0.000000e+00 : f32
    %54 = vector.shape_cast %53 : vector<1x256xf32> to vector<1x256xf32>
    %55 = vector.broadcast %54 : vector<1x256xf32> to vector<16x256xf32>
    %56 = vector.broadcast %cst_17 : f32 to vector<16x256xf32>
    %57 = arith.select %52, %55, %56 : vector<16x256xi1>, vector<16x256xf32>
    %58 = arith.addf %48, %57 : vector<16x256xf32>
    %c0_18 = arith.constant 0 : index
    %c0_19 = arith.constant 0 : index
    %59 = vector.load %arg10[%c0_18, %c0_19] : memref<144x256xf32, #tpu.memory_space<vmem>>, vector<16x256xf32>
    tpu.vector_store %arg10[%c0_18, %c0_19], %58 {strides = array<i32>} : memref<144x256xf32, #tpu.memory_space<vmem>>, vector<16x256xf32>,
    %60 = vector.broadcast %41 : vector<1x256xf32> to vector<16x256xf32>
    %61 = arith.cmpf oeq, %39, %60 : vector<16x256xf32>
    %62 = vector.extract_strided_slice %35 {offsets = [0, 0], sizes = [1, 256], strides = [1, 1]} : vector<9x256xf32> to vector<1x256xf32>
    %cst_20 = arith.constant 0.000000e+00 : f32
    %63 = vector.shape_cast %62 : vector<1x256xf32> to vector<1x256xf32>
    %64 = vector.broadcast %63 : vector<1x256xf32> to vector<16x256xf32>
    %65 = vector.broadcast %cst_20 : f32 to vector<16x256xf32>
    %66 = arith.select %61, %64, %65 : vector<16x256xi1>, vector<16x256xf32>
    %cst_21 = arith.constant 1.000000e+00 : f32
    %67 = vector.broadcast %cst_21 : f32 to vector<1x256xf32>
    %68 = arith.addf %41, %67 : vector<1x256xf32>
    %69 = vector.broadcast %68 : vector<1x256xf32> to vector<16x256xf32>
    %70 = arith.cmpf oeq, %39, %69 : vector<16x256xf32>
    %71 = vector.extract_strided_slice %29 {offsets = [0, 0], sizes = [1, 256], strides = [1, 1]} : vector<9x256xf32> to vector<1x256xf32>
    %cst_22 = arith.constant 0.000000e+00 : f32
    %72 = vector.shape_cast %71 : vector<1x256xf32> to vector<1x256xf32>
    %73 = vector.broadcast %72 : vector<1x256xf32> to vector<16x256xf32>
    %74 = vector.broadcast %cst_22 : f32 to vector<16x256xf32>
    %75 = arith.select %70, %73, %74 : vector<16x256xi1>, vector<16x256xf32>
    %76 = arith.addf %66, %75 : vector<16x256xf32>
    %c0_23 = arith.constant 0 : index
    %c0_24 = arith.constant 0 : index
    %77 = vector.load %arg9[%c0_23, %c0_24] : memref<16x2304xf32, #tpu.memory_space<vmem>>, vector<16x256xf32>
    tpu.vector_store %arg9[%c0_23, %c0_24], %76 {strides = array<i32>} : memref<16x2304xf32, #tpu.memory_space<vmem>>, vector<16x256xf32>,
    %78 = vector.extract_strided_slice %26 {offsets = [1, 0], sizes = [1, 256], strides = [1, 1]} : vector<9x256xf32> to vector<1x256xf32>
    %79 = vector.extract_strided_slice %27 {offsets = [1, 0], sizes = [1, 256], strides = [1, 1]} : vector<9x256xf32> to vector<1x256xf32>
    %80 = vector.broadcast %78 : vector<1x256xf32> to vector<16x256xf32>
    %81 = arith.cmpf oeq, %37, %80 : vector<16x256xf32>
    %82 = vector.extract_strided_slice %32 {offsets = [1, 0], sizes = [1, 256], strides = [1, 1]} : vector<9x256xf32> to vector<1x256xf32>
    %cst_25 = arith.constant 0.000000e+00 : f32
    %83 = vector.shape_cast %82 : vector<1x256xf32> to vector<1x256xf32>
    %84 = vector.broadcast %83 : vector<1x256xf32> to vector<16x256xf32>
    %85 = vector.broadcast %cst_25 : f32 to vector<16x256xf32>
    %86 = arith.select %81, %84, %85 : vector<16x256xi1>, vector<16x256xf32>
    %cst_26 = arith.constant 1.000000e+00 : f32
    %87 = vector.broadcast %cst_26 : f32 to vector<1x256xf32>
    %88 = arith.addf %78, %87 : vector<1x256xf32>
    %89 = vector.broadcast %88 : vector<1x256xf32> to vector<16x256xf32>
    %90 = arith.cmpf oeq, %37, %89 : vector<16x256xf32>
    %91 = vector.extract_strided_slice %33 {offsets = [1, 0], sizes = [1, 256], strides = [1, 1]} : vector<9x256xf32> to vector<1x256xf32>
    %cst_27 = arith.constant 0.000000e+00 : f32
    %92 = vector.shape_cast %91 : vector<1x256xf32> to vector<1x256xf32>
    %93 = vector.broadcast %92 : vector<1x256xf32> to vector<16x256xf32>
    %94 = vector.broadcast %cst_27 : f32 to vector<16x256xf32>
    %95 = arith.select %90, %93, %94 : vector<16x256xi1>, vector<16x256xf32>
    %96 = arith.addf %86, %95 : vector<16x256xf32>
    %c16 = arith.constant 16 : index
    %c0_28 = arith.constant 0 : index
    %97 = vector.load %arg10[%c16, %c0_28] : memref<144x256xf32, #tpu.memory_space<vmem>>, vector<16x256xf32>
    tpu.vector_store %arg10[%c16, %c0_28], %96 {strides = array<i32>} : memref<144x256xf32, #tpu.memory_space<vmem>>, vector<16x256xf32>,
    %98 = vector.broadcast %79 : vector<1x256xf32> to vector<16x256xf32>
    %99 = arith.cmpf oeq, %39, %98 : vector<16x256xf32>
    %100 = vector.extract_strided_slice %35 {offsets = [1, 0], sizes = [1, 256], strides = [1, 1]} : vector<9x256xf32> to vector<1x256xf32>
    %cst_29 = arith.constant 0.000000e+00 : f32
    %101 = vector.shape_cast %100 : vector<1x256xf32> to vector<1x256xf32>
    %102 = vector.broadcast %101 : vector<1x256xf32> to vector<16x256xf32>
    %103 = vector.broadcast %cst_29 : f32 to vector<16x256xf32>
    %104 = arith.select %99, %102, %103 : vector<16x256xi1>, vector<16x256xf32>
    %cst_30 = arith.constant 1.000000e+00 : f32
    %105 = vector.broadcast %cst_30 : f32 to vector<1x256xf32>
    %106 = arith.addf %79, %105 : vector<1x256xf32>
    %107 = vector.broadcast %106 : vector<1x256xf32> to vector<16x256xf32>
    %108 = arith.cmpf oeq, %39, %107 : vector<16x256xf32>
    %109 = vector.extract_strided_slice %29 {offsets = [1, 0], sizes = [1, 256], strides = [1, 1]} : vector<9x256xf32> to vector<1x256xf32>
    %cst_31 = arith.constant 0.000000e+00 : f32
    %110 = vector.shape_cast %109 : vector<1x256xf32> to vector<1x256xf32>
    %111 = vector.broadcast %110 : vector<1x256xf32> to vector<16x256xf32>
    %112 = vector.broadcast %cst_31 : f32 to vector<16x256xf32>
    %113 = arith.select %108, %111, %112 : vector<16x256xi1>, vector<16x256xf32>
    %114 = arith.addf %104, %113 : vector<16x256xf32>
    %c0_32 = arith.constant 0 : index
    %c256 = arith.constant 256 : index
    %115 = vector.load %arg9[%c0_32, %c256] : memref<16x2304xf32, #tpu.memory_space<vmem>>, vector<16x256xf32>
    tpu.vector_store %arg9[%c0_32, %c256], %114 {strides = array<i32>} : memref<16x2304xf32, #tpu.memory_space<vmem>>, vector<16x256xf32>,
    %116 = vector.extract_strided_slice %26 {offsets = [2, 0], sizes = [1, 256], strides = [1, 1]} : vector<9x256xf32> to vector<1x256xf32>
    %117 = vector.extract_strided_slice %27 {offsets = [2, 0], sizes = [1, 256], strides = [1, 1]} : vector<9x256xf32> to vector<1x256xf32>
    %118 = vector.broadcast %116 : vector<1x256xf32> to vector<16x256xf32>
    %119 = arith.cmpf oeq, %37, %118 : vector<16x256xf32>
    %120 = vector.extract_strided_slice %32 {offsets = [2, 0], sizes = [1, 256], strides = [1, 1]} : vector<9x256xf32> to vector<1x256xf32>
    %cst_33 = arith.constant 0.000000e+00 : f32
    %121 = vector.shape_cast %120 : vector<1x256xf32> to vector<1x256xf32>
    %122 = vector.broadcast %121 : vector<1x256xf32> to vector<16x256xf32>
    %123 = vector.broadcast %cst_33 : f32 to vector<16x256xf32>
    %124 = arith.select %119, %122, %123 : vector<16x256xi1>, vector<16x256xf32>
    %cst_34 = arith.constant 1.000000e+00 : f32
    %125 = vector.broadcast %cst_34 : f32 to vector<1x256xf32>
    %126 = arith.addf %116, %125 : vector<1x256xf32>
    %127 = vector.broadcast %126 : vector<1x256xf32> to vector<16x256xf32>
    %128 = arith.cmpf oeq, %37, %127 : vector<16x256xf32>
    %129 = vector.extract_strided_slice %33 {offsets = [2, 0], sizes = [1, 256], strides = [1, 1]} : vector<9x256xf32> to vector<1x256xf32>
    %cst_35 = arith.constant 0.000000e+00 : f32
    %130 = vector.shape_cast %129 : vector<1x256xf32> to vector<1x256xf32>
    %131 = vector.broadcast %130 : vector<1x256xf32> to vector<16x256xf32>
    %132 = vector.broadcast %cst_35 : f32 to vector<16x256xf32>
    %133 = arith.select %128, %131, %132 : vector<16x256xi1>, vector<16x256xf32>
    %134 = arith.addf %124, %133 : vector<16x256xf32>
    %c32 = arith.constant 32 : index
    %c0_36 = arith.constant 0 : index
    %135 = vector.load %arg10[%c32, %c0_36] : memref<144x256xf32, #tpu.memory_space<vmem>>, vector<16x256xf32>
    tpu.vector_store %arg10[%c32, %c0_36], %134 {strides = array<i32>} : memref<144x256xf32, #tpu.memory_space<vmem>>, vector<16x256xf32>,
    %136 = vector.broadcast %117 : vector<1x256xf32> to vector<16x256xf32>
    %137 = arith.cmpf oeq, %39, %136 : vector<16x256xf32>
    %138 = vector.extract_strided_slice %35 {offsets = [2, 0], sizes = [1, 256], strides = [1, 1]} : vector<9x256xf32> to vector<1x256xf32>
    %cst_37 = arith.constant 0.000000e+00 : f32
    %139 = vector.shape_cast %138 : vector<1x256xf32> to vector<1x256xf32>
    %140 = vector.broadcast %139 : vector<1x256xf32> to vector<16x256xf32>
    %141 = vector.broadcast %cst_37 : f32 to vector<16x256xf32>
    %142 = arith.select %137, %140, %141 : vector<16x256xi1>, vector<16x256xf32>
    %cst_38 = arith.constant 1.000000e+00 : f32
    %143 = vector.broadcast %cst_38 : f32 to vector<1x256xf32>
    %144 = arith.addf %117, %143 : vector<1x256xf32>
    %145 = vector.broadcast %144 : vector<1x256xf32> to vector<16x256xf32>
    %146 = arith.cmpf oeq, %39, %145 : vector<16x256xf32>
    %147 = vector.extract_strided_slice %29 {offsets = [2, 0], sizes = [1, 256], strides = [1, 1]} : vector<9x256xf32> to vector<1x256xf32>
    %cst_39 = arith.constant 0.000000e+00 : f32
    %148 = vector.shape_cast %147 : vector<1x256xf32> to vector<1x256xf32>
    %149 = vector.broadcast %148 : vector<1x256xf32> to vector<16x256xf32>
    %150 = vector.broadcast %cst_39 : f32 to vector<16x256xf32>
    %151 = arith.select %146, %149, %150 : vector<16x256xi1>, vector<16x256xf32>
    %152 = arith.addf %142, %151 : vector<16x256xf32>
    %c0_40 = arith.constant 0 : index
    %c512 = arith.constant 512 : index
    %153 = vector.load %arg9[%c0_40, %c512] : memref<16x2304xf32, #tpu.memory_space<vmem>>, vector<16x256xf32>
    tpu.vector_store %arg9[%c0_40, %c512], %152 {strides = array<i32>} : memref<16x2304xf32, #tpu.memory_space<vmem>>, vector<16x256xf32>,
    %154 = vector.extract_strided_slice %26 {offsets = [3, 0], sizes = [1, 256], strides = [1, 1]} : vector<9x256xf32> to vector<1x256xf32>
    %155 = vector.extract_strided_slice %27 {offsets = [3, 0], sizes = [1, 256], strides = [1, 1]} : vector<9x256xf32> to vector<1x256xf32>
    %156 = vector.broadcast %154 : vector<1x256xf32> to vector<16x256xf32>
    %157 = arith.cmpf oeq, %37, %156 : vector<16x256xf32>
    %158 = vector.extract_strided_slice %32 {offsets = [3, 0], sizes = [1, 256], strides = [1, 1]} : vector<9x256xf32> to vector<1x256xf32>
    %cst_41 = arith.constant 0.000000e+00 : f32
    %159 = vector.shape_cast %158 : vector<1x256xf32> to vector<1x256xf32>
    %160 = vector.broadcast %159 : vector<1x256xf32> to vector<16x256xf32>
    %161 = vector.broadcast %cst_41 : f32 to vector<16x256xf32>
    %162 = arith.select %157, %160, %161 : vector<16x256xi1>, vector<16x256xf32>
    %cst_42 = arith.constant 1.000000e+00 : f32
    %163 = vector.broadcast %cst_42 : f32 to vector<1x256xf32>
    %164 = arith.addf %154, %163 : vector<1x256xf32>
    %165 = vector.broadcast %164 : vector<1x256xf32> to vector<16x256xf32>
    %166 = arith.cmpf oeq, %37, %165 : vector<16x256xf32>
    %167 = vector.extract_strided_slice %33 {offsets = [3, 0], sizes = [1, 256], strides = [1, 1]} : vector<9x256xf32> to vector<1x256xf32>
    %cst_43 = arith.constant 0.000000e+00 : f32
    %168 = vector.shape_cast %167 : vector<1x256xf32> to vector<1x256xf32>
    %169 = vector.broadcast %168 : vector<1x256xf32> to vector<16x256xf32>
    %170 = vector.broadcast %cst_43 : f32 to vector<16x256xf32>
    %171 = arith.select %166, %169, %170 : vector<16x256xi1>, vector<16x256xf32>
    %172 = arith.addf %162, %171 : vector<16x256xf32>
    %c48 = arith.constant 48 : index
    %c0_44 = arith.constant 0 : index
    %173 = vector.load %arg10[%c48, %c0_44] : memref<144x256xf32, #tpu.memory_space<vmem>>, vector<16x256xf32>
    tpu.vector_store %arg10[%c48, %c0_44], %172 {strides = array<i32>} : memref<144x256xf32, #tpu.memory_space<vmem>>, vector<16x256xf32>,
    %174 = vector.broadcast %155 : vector<1x256xf32> to vector<16x256xf32>
    %175 = arith.cmpf oeq, %39, %174 : vector<16x256xf32>
    %176 = vector.extract_strided_slice %35 {offsets = [3, 0], sizes = [1, 256], strides = [1, 1]} : vector<9x256xf32> to vector<1x256xf32>
    %cst_45 = arith.constant 0.000000e+00 : f32
    %177 = vector.shape_cast %176 : vector<1x256xf32> to vector<1x256xf32>
    %178 = vector.broadcast %177 : vector<1x256xf32> to vector<16x256xf32>
    %179 = vector.broadcast %cst_45 : f32 to vector<16x256xf32>
    %180 = arith.select %175, %178, %179 : vector<16x256xi1>, vector<16x256xf32>
    %cst_46 = arith.constant 1.000000e+00 : f32
    %181 = vector.broadcast %cst_46 : f32 to vector<1x256xf32>
    %182 = arith.addf %155, %181 : vector<1x256xf32>
    %183 = vector.broadcast %182 : vector<1x256xf32> to vector<16x256xf32>
    %184 = arith.cmpf oeq, %39, %183 : vector<16x256xf32>
    %185 = vector.extract_strided_slice %29 {offsets = [3, 0], sizes = [1, 256], strides = [1, 1]} : vector<9x256xf32> to vector<1x256xf32>
    %cst_47 = arith.constant 0.000000e+00 : f32
    %186 = vector.shape_cast %185 : vector<1x256xf32> to vector<1x256xf32>
    %187 = vector.broadcast %186 : vector<1x256xf32> to vector<16x256xf32>
    %188 = vector.broadcast %cst_47 : f32 to vector<16x256xf32>
    %189 = arith.select %184, %187, %188 : vector<16x256xi1>, vector<16x256xf32>
    %190 = arith.addf %180, %189 : vector<16x256xf32>
    %c0_48 = arith.constant 0 : index
    %c768 = arith.constant 768 : index
    %191 = vector.load %arg9[%c0_48, %c768] : memref<16x2304xf32, #tpu.memory_space<vmem>>, vector<16x256xf32>
    tpu.vector_store %arg9[%c0_48, %c768], %190 {strides = array<i32>} : memref<16x2304xf32, #tpu.memory_space<vmem>>, vector<16x256xf32>,
    %192 = vector.extract_strided_slice %26 {offsets = [4, 0], sizes = [1, 256], strides = [1, 1]} : vector<9x256xf32> to vector<1x256xf32>
    %193 = vector.extract_strided_slice %27 {offsets = [4, 0], sizes = [1, 256], strides = [1, 1]} : vector<9x256xf32> to vector<1x256xf32>
    %194 = vector.broadcast %192 : vector<1x256xf32> to vector<16x256xf32>
    %195 = arith.cmpf oeq, %37, %194 : vector<16x256xf32>
    %196 = vector.extract_strided_slice %32 {offsets = [4, 0], sizes = [1, 256], strides = [1, 1]} : vector<9x256xf32> to vector<1x256xf32>
    %cst_49 = arith.constant 0.000000e+00 : f32
    %197 = vector.shape_cast %196 : vector<1x256xf32> to vector<1x256xf32>
    %198 = vector.broadcast %197 : vector<1x256xf32> to vector<16x256xf32>
    %199 = vector.broadcast %cst_49 : f32 to vector<16x256xf32>
    %200 = arith.select %195, %198, %199 : vector<16x256xi1>, vector<16x256xf32>
    %cst_50 = arith.constant 1.000000e+00 : f32
    %201 = vector.broadcast %cst_50 : f32 to vector<1x256xf32>
    %202 = arith.addf %192, %201 : vector<1x256xf32>
    %203 = vector.broadcast %202 : vector<1x256xf32> to vector<16x256xf32>
    %204 = arith.cmpf oeq, %37, %203 : vector<16x256xf32>
    %205 = vector.extract_strided_slice %33 {offsets = [4, 0], sizes = [1, 256], strides = [1, 1]} : vector<9x256xf32> to vector<1x256xf32>
    %cst_51 = arith.constant 0.000000e+00 : f32
    %206 = vector.shape_cast %205 : vector<1x256xf32> to vector<1x256xf32>
    %207 = vector.broadcast %206 : vector<1x256xf32> to vector<16x256xf32>
    %208 = vector.broadcast %cst_51 : f32 to vector<16x256xf32>
    %209 = arith.select %204, %207, %208 : vector<16x256xi1>, vector<16x256xf32>
    %210 = arith.addf %200, %209 : vector<16x256xf32>
    %c64 = arith.constant 64 : index
    %c0_52 = arith.constant 0 : index
    %211 = vector.load %arg10[%c64, %c0_52] : memref<144x256xf32, #tpu.memory_space<vmem>>, vector<16x256xf32>
    tpu.vector_store %arg10[%c64, %c0_52], %210 {strides = array<i32>} : memref<144x256xf32, #tpu.memory_space<vmem>>, vector<16x256xf32>,
    %212 = vector.broadcast %193 : vector<1x256xf32> to vector<16x256xf32>
    %213 = arith.cmpf oeq, %39, %212 : vector<16x256xf32>
    %214 = vector.extract_strided_slice %35 {offsets = [4, 0], sizes = [1, 256], strides = [1, 1]} : vector<9x256xf32> to vector<1x256xf32>
    %cst_53 = arith.constant 0.000000e+00 : f32
    %215 = vector.shape_cast %214 : vector<1x256xf32> to vector<1x256xf32>
    %216 = vector.broadcast %215 : vector<1x256xf32> to vector<16x256xf32>
    %217 = vector.broadcast %cst_53 : f32 to vector<16x256xf32>
    %218 = arith.select %213, %216, %217 : vector<16x256xi1>, vector<16x256xf32>
    %cst_54 = arith.constant 1.000000e+00 : f32
    %219 = vector.broadcast %cst_54 : f32 to vector<1x256xf32>
    %220 = arith.addf %193, %219 : vector<1x256xf32>
    %221 = vector.broadcast %220 : vector<1x256xf32> to vector<16x256xf32>
    %222 = arith.cmpf oeq, %39, %221 : vector<16x256xf32>
    %223 = vector.extract_strided_slice %29 {offsets = [4, 0], sizes = [1, 256], strides = [1, 1]} : vector<9x256xf32> to vector<1x256xf32>
    %cst_55 = arith.constant 0.000000e+00 : f32
    %224 = vector.shape_cast %223 : vector<1x256xf32> to vector<1x256xf32>
    %225 = vector.broadcast %224 : vector<1x256xf32> to vector<16x256xf32>
    %226 = vector.broadcast %cst_55 : f32 to vector<16x256xf32>
    %227 = arith.select %222, %225, %226 : vector<16x256xi1>, vector<16x256xf32>
    %228 = arith.addf %218, %227 : vector<16x256xf32>
    %c0_56 = arith.constant 0 : index
    %c1024 = arith.constant 1024 : index
    %229 = vector.load %arg9[%c0_56, %c1024] : memref<16x2304xf32, #tpu.memory_space<vmem>>, vector<16x256xf32>
    tpu.vector_store %arg9[%c0_56, %c1024], %228 {strides = array<i32>} : memref<16x2304xf32, #tpu.memory_space<vmem>>, vector<16x256xf32>,
    %230 = vector.extract_strided_slice %26 {offsets = [5, 0], sizes = [1, 256], strides = [1, 1]} : vector<9x256xf32> to vector<1x256xf32>
    %231 = vector.extract_strided_slice %27 {offsets = [5, 0], sizes = [1, 256], strides = [1, 1]} : vector<9x256xf32> to vector<1x256xf32>
    %232 = vector.broadcast %230 : vector<1x256xf32> to vector<16x256xf32>
    %233 = arith.cmpf oeq, %37, %232 : vector<16x256xf32>
    %234 = vector.extract_strided_slice %32 {offsets = [5, 0], sizes = [1, 256], strides = [1, 1]} : vector<9x256xf32> to vector<1x256xf32>
    %cst_57 = arith.constant 0.000000e+00 : f32
    %235 = vector.shape_cast %234 : vector<1x256xf32> to vector<1x256xf32>
    %236 = vector.broadcast %235 : vector<1x256xf32> to vector<16x256xf32>
    %237 = vector.broadcast %cst_57 : f32 to vector<16x256xf32>
    %238 = arith.select %233, %236, %237 : vector<16x256xi1>, vector<16x256xf32>
    %cst_58 = arith.constant 1.000000e+00 : f32
    %239 = vector.broadcast %cst_58 : f32 to vector<1x256xf32>
    %240 = arith.addf %230, %239 : vector<1x256xf32>
    %241 = vector.broadcast %240 : vector<1x256xf32> to vector<16x256xf32>
    %242 = arith.cmpf oeq, %37, %241 : vector<16x256xf32>
    %243 = vector.extract_strided_slice %33 {offsets = [5, 0], sizes = [1, 256], strides = [1, 1]} : vector<9x256xf32> to vector<1x256xf32>
    %cst_59 = arith.constant 0.000000e+00 : f32
    %244 = vector.shape_cast %243 : vector<1x256xf32> to vector<1x256xf32>
    %245 = vector.broadcast %244 : vector<1x256xf32> to vector<16x256xf32>
    %246 = vector.broadcast %cst_59 : f32 to vector<16x256xf32>
    %247 = arith.select %242, %245, %246 : vector<16x256xi1>, vector<16x256xf32>
    %248 = arith.addf %238, %247 : vector<16x256xf32>
    %c80 = arith.constant 80 : index
    %c0_60 = arith.constant 0 : index
    %249 = vector.load %arg10[%c80, %c0_60] : memref<144x256xf32, #tpu.memory_space<vmem>>, vector<16x256xf32>
    tpu.vector_store %arg10[%c80, %c0_60], %248 {strides = array<i32>} : memref<144x256xf32, #tpu.memory_space<vmem>>, vector<16x256xf32>,
    %250 = vector.broadcast %231 : vector<1x256xf32> to vector<16x256xf32>
    %251 = arith.cmpf oeq, %39, %250 : vector<16x256xf32>
    %252 = vector.extract_strided_slice %35 {offsets = [5, 0], sizes = [1, 256], strides = [1, 1]} : vector<9x256xf32> to vector<1x256xf32>
    %cst_61 = arith.constant 0.000000e+00 : f32
    %253 = vector.shape_cast %252 : vector<1x256xf32> to vector<1x256xf32>
    %254 = vector.broadcast %253 : vector<1x256xf32> to vector<16x256xf32>
    %255 = vector.broadcast %cst_61 : f32 to vector<16x256xf32>
    %256 = arith.select %251, %254, %255 : vector<16x256xi1>, vector<16x256xf32>
    %cst_62 = arith.constant 1.000000e+00 : f32
    %257 = vector.broadcast %cst_62 : f32 to vector<1x256xf32>
    %258 = arith.addf %231, %257 : vector<1x256xf32>
    %259 = vector.broadcast %258 : vector<1x256xf32> to vector<16x256xf32>
    %260 = arith.cmpf oeq, %39, %259 : vector<16x256xf32>
    %261 = vector.extract_strided_slice %29 {offsets = [5, 0], sizes = [1, 256], strides = [1, 1]} : vector<9x256xf32> to vector<1x256xf32>
    %cst_63 = arith.constant 0.000000e+00 : f32
    %262 = vector.shape_cast %261 : vector<1x256xf32> to vector<1x256xf32>
    %263 = vector.broadcast %262 : vector<1x256xf32> to vector<16x256xf32>
    %264 = vector.broadcast %cst_63 : f32 to vector<16x256xf32>
    %265 = arith.select %260, %263, %264 : vector<16x256xi1>, vector<16x256xf32>
    %266 = arith.addf %256, %265 : vector<16x256xf32>
    %c0_64 = arith.constant 0 : index
    %c1280 = arith.constant 1280 : index
    %267 = vector.load %arg9[%c0_64, %c1280] : memref<16x2304xf32, #tpu.memory_space<vmem>>, vector<16x256xf32>
    tpu.vector_store %arg9[%c0_64, %c1280], %266 {strides = array<i32>} : memref<16x2304xf32, #tpu.memory_space<vmem>>, vector<16x256xf32>,
    %268 = vector.extract_strided_slice %26 {offsets = [6, 0], sizes = [1, 256], strides = [1, 1]} : vector<9x256xf32> to vector<1x256xf32>
    %269 = vector.extract_strided_slice %27 {offsets = [6, 0], sizes = [1, 256], strides = [1, 1]} : vector<9x256xf32> to vector<1x256xf32>
    %270 = vector.broadcast %268 : vector<1x256xf32> to vector<16x256xf32>
    %271 = arith.cmpf oeq, %37, %270 : vector<16x256xf32>
    %272 = vector.extract_strided_slice %32 {offsets = [6, 0], sizes = [1, 256], strides = [1, 1]} : vector<9x256xf32> to vector<1x256xf32>
    %cst_65 = arith.constant 0.000000e+00 : f32
    %273 = vector.shape_cast %272 : vector<1x256xf32> to vector<1x256xf32>
    %274 = vector.broadcast %273 : vector<1x256xf32> to vector<16x256xf32>
    %275 = vector.broadcast %cst_65 : f32 to vector<16x256xf32>
    %276 = arith.select %271, %274, %275 : vector<16x256xi1>, vector<16x256xf32>
    %cst_66 = arith.constant 1.000000e+00 : f32
    %277 = vector.broadcast %cst_66 : f32 to vector<1x256xf32>
    %278 = arith.addf %268, %277 : vector<1x256xf32>
    %279 = vector.broadcast %278 : vector<1x256xf32> to vector<16x256xf32>
    %280 = arith.cmpf oeq, %37, %279 : vector<16x256xf32>
    %281 = vector.extract_strided_slice %33 {offsets = [6, 0], sizes = [1, 256], strides = [1, 1]} : vector<9x256xf32> to vector<1x256xf32>
    %cst_67 = arith.constant 0.000000e+00 : f32
    %282 = vector.shape_cast %281 : vector<1x256xf32> to vector<1x256xf32>
    %283 = vector.broadcast %282 : vector<1x256xf32> to vector<16x256xf32>
    %284 = vector.broadcast %cst_67 : f32 to vector<16x256xf32>
    %285 = arith.select %280, %283, %284 : vector<16x256xi1>, vector<16x256xf32>
    %286 = arith.addf %276, %285 : vector<16x256xf32>
    %c96 = arith.constant 96 : index
    %c0_68 = arith.constant 0 : index
    %287 = vector.load %arg10[%c96, %c0_68] : memref<144x256xf32, #tpu.memory_space<vmem>>, vector<16x256xf32>
    tpu.vector_store %arg10[%c96, %c0_68], %286 {strides = array<i32>} : memref<144x256xf32, #tpu.memory_space<vmem>>, vector<16x256xf32>,
    %288 = vector.broadcast %269 : vector<1x256xf32> to vector<16x256xf32>
    %289 = arith.cmpf oeq, %39, %288 : vector<16x256xf32>
    %290 = vector.extract_strided_slice %35 {offsets = [6, 0], sizes = [1, 256], strides = [1, 1]} : vector<9x256xf32> to vector<1x256xf32>
    %cst_69 = arith.constant 0.000000e+00 : f32
    %291 = vector.shape_cast %290 : vector<1x256xf32> to vector<1x256xf32>
    %292 = vector.broadcast %291 : vector<1x256xf32> to vector<16x256xf32>
    %293 = vector.broadcast %cst_69 : f32 to vector<16x256xf32>
    %294 = arith.select %289, %292, %293 : vector<16x256xi1>, vector<16x256xf32>
    %cst_70 = arith.constant 1.000000e+00 : f32
    %295 = vector.broadcast %cst_70 : f32 to vector<1x256xf32>
    %296 = arith.addf %269, %295 : vector<1x256xf32>
    %297 = vector.broadcast %296 : vector<1x256xf32> to vector<16x256xf32>
    %298 = arith.cmpf oeq, %39, %297 : vector<16x256xf32>
    %299 = vector.extract_strided_slice %29 {offsets = [6, 0], sizes = [1, 256], strides = [1, 1]} : vector<9x256xf32> to vector<1x256xf32>
    %cst_71 = arith.constant 0.000000e+00 : f32
    %300 = vector.shape_cast %299 : vector<1x256xf32> to vector<1x256xf32>
    %301 = vector.broadcast %300 : vector<1x256xf32> to vector<16x256xf32>
    %302 = vector.broadcast %cst_71 : f32 to vector<16x256xf32>
    %303 = arith.select %298, %301, %302 : vector<16x256xi1>, vector<16x256xf32>
    %304 = arith.addf %294, %303 : vector<16x256xf32>
    %c0_72 = arith.constant 0 : index
    %c1536 = arith.constant 1536 : index
    %305 = vector.load %arg9[%c0_72, %c1536] : memref<16x2304xf32, #tpu.memory_space<vmem>>, vector<16x256xf32>
    tpu.vector_store %arg9[%c0_72, %c1536], %304 {strides = array<i32>} : memref<16x2304xf32, #tpu.memory_space<vmem>>, vector<16x256xf32>,
    %306 = vector.extract_strided_slice %26 {offsets = [7, 0], sizes = [1, 256], strides = [1, 1]} : vector<9x256xf32> to vector<1x256xf32>
    %307 = vector.extract_strided_slice %27 {offsets = [7, 0], sizes = [1, 256], strides = [1, 1]} : vector<9x256xf32> to vector<1x256xf32>
    %308 = vector.broadcast %306 : vector<1x256xf32> to vector<16x256xf32>
    %309 = arith.cmpf oeq, %37, %308 : vector<16x256xf32>
    %310 = vector.extract_strided_slice %32 {offsets = [7, 0], sizes = [1, 256], strides = [1, 1]} : vector<9x256xf32> to vector<1x256xf32>
    %cst_73 = arith.constant 0.000000e+00 : f32
    %311 = vector.shape_cast %310 : vector<1x256xf32> to vector<1x256xf32>
    %312 = vector.broadcast %311 : vector<1x256xf32> to vector<16x256xf32>
    %313 = vector.broadcast %cst_73 : f32 to vector<16x256xf32>
    %314 = arith.select %309, %312, %313 : vector<16x256xi1>, vector<16x256xf32>
    %cst_74 = arith.constant 1.000000e+00 : f32
    %315 = vector.broadcast %cst_74 : f32 to vector<1x256xf32>
    %316 = arith.addf %306, %315 : vector<1x256xf32>
    %317 = vector.broadcast %316 : vector<1x256xf32> to vector<16x256xf32>
    %318 = arith.cmpf oeq, %37, %317 : vector<16x256xf32>
    %319 = vector.extract_strided_slice %33 {offsets = [7, 0], sizes = [1, 256], strides = [1, 1]} : vector<9x256xf32> to vector<1x256xf32>
    %cst_75 = arith.constant 0.000000e+00 : f32
    %320 = vector.shape_cast %319 : vector<1x256xf32> to vector<1x256xf32>
    %321 = vector.broadcast %320 : vector<1x256xf32> to vector<16x256xf32>
    %322 = vector.broadcast %cst_75 : f32 to vector<16x256xf32>
    %323 = arith.select %318, %321, %322 : vector<16x256xi1>, vector<16x256xf32>
    %324 = arith.addf %314, %323 : vector<16x256xf32>
    %c112 = arith.constant 112 : index
    %c0_76 = arith.constant 0 : index
    %325 = vector.load %arg10[%c112, %c0_76] : memref<144x256xf32, #tpu.memory_space<vmem>>, vector<16x256xf32>
    tpu.vector_store %arg10[%c112, %c0_76], %324 {strides = array<i32>} : memref<144x256xf32, #tpu.memory_space<vmem>>, vector<16x256xf32>,
    %326 = vector.broadcast %307 : vector<1x256xf32> to vector<16x256xf32>
    %327 = arith.cmpf oeq, %39, %326 : vector<16x256xf32>
    %328 = vector.extract_strided_slice %35 {offsets = [7, 0], sizes = [1, 256], strides = [1, 1]} : vector<9x256xf32> to vector<1x256xf32>
    %cst_77 = arith.constant 0.000000e+00 : f32
    %329 = vector.shape_cast %328 : vector<1x256xf32> to vector<1x256xf32>
    %330 = vector.broadcast %329 : vector<1x256xf32> to vector<16x256xf32>
    %331 = vector.broadcast %cst_77 : f32 to vector<16x256xf32>
    %332 = arith.select %327, %330, %331 : vector<16x256xi1>, vector<16x256xf32>
    %cst_78 = arith.constant 1.000000e+00 : f32
    %333 = vector.broadcast %cst_78 : f32 to vector<1x256xf32>
    %334 = arith.addf %307, %333 : vector<1x256xf32>
    %335 = vector.broadcast %334 : vector<1x256xf32> to vector<16x256xf32>
    %336 = arith.cmpf oeq, %39, %335 : vector<16x256xf32>
    %337 = vector.extract_strided_slice %29 {offsets = [7, 0], sizes = [1, 256], strides = [1, 1]} : vector<9x256xf32> to vector<1x256xf32>
    %cst_79 = arith.constant 0.000000e+00 : f32
    %338 = vector.shape_cast %337 : vector<1x256xf32> to vector<1x256xf32>
    %339 = vector.broadcast %338 : vector<1x256xf32> to vector<16x256xf32>
    %340 = vector.broadcast %cst_79 : f32 to vector<16x256xf32>
    %341 = arith.select %336, %339, %340 : vector<16x256xi1>, vector<16x256xf32>
    %342 = arith.addf %332, %341 : vector<16x256xf32>
    %c0_80 = arith.constant 0 : index
    %c1792 = arith.constant 1792 : index
    %343 = vector.load %arg9[%c0_80, %c1792] : memref<16x2304xf32, #tpu.memory_space<vmem>>, vector<16x256xf32>
    tpu.vector_store %arg9[%c0_80, %c1792], %342 {strides = array<i32>} : memref<16x2304xf32, #tpu.memory_space<vmem>>, vector<16x256xf32>,
    %344 = vector.extract_strided_slice %26 {offsets = [8, 0], sizes = [1, 256], strides = [1, 1]} : vector<9x256xf32> to vector<1x256xf32>
    %345 = vector.extract_strided_slice %27 {offsets = [8, 0], sizes = [1, 256], strides = [1, 1]} : vector<9x256xf32> to vector<1x256xf32>
    %346 = vector.broadcast %344 : vector<1x256xf32> to vector<16x256xf32>
    %347 = arith.cmpf oeq, %37, %346 : vector<16x256xf32>
    %348 = vector.extract_strided_slice %32 {offsets = [8, 0], sizes = [1, 256], strides = [1, 1]} : vector<9x256xf32> to vector<1x256xf32>
    %cst_81 = arith.constant 0.000000e+00 : f32
    %349 = vector.shape_cast %348 : vector<1x256xf32> to vector<1x256xf32>
    %350 = vector.broadcast %349 : vector<1x256xf32> to vector<16x256xf32>
    %351 = vector.broadcast %cst_81 : f32 to vector<16x256xf32>
    %352 = arith.select %347, %350, %351 : vector<16x256xi1>, vector<16x256xf32>
    %cst_82 = arith.constant 1.000000e+00 : f32
    %353 = vector.broadcast %cst_82 : f32 to vector<1x256xf32>
    %354 = arith.addf %344, %353 : vector<1x256xf32>
    %355 = vector.broadcast %354 : vector<1x256xf32> to vector<16x256xf32>
    %356 = arith.cmpf oeq, %37, %355 : vector<16x256xf32>
    %357 = vector.extract_strided_slice %33 {offsets = [8, 0], sizes = [1, 256], strides = [1, 1]} : vector<9x256xf32> to vector<1x256xf32>
    %cst_83 = arith.constant 0.000000e+00 : f32
    %358 = vector.shape_cast %357 : vector<1x256xf32> to vector<1x256xf32>
    %359 = vector.broadcast %358 : vector<1x256xf32> to vector<16x256xf32>
    %360 = vector.broadcast %cst_83 : f32 to vector<16x256xf32>
    %361 = arith.select %356, %359, %360 : vector<16x256xi1>, vector<16x256xf32>
    %362 = arith.addf %352, %361 : vector<16x256xf32>
    %c128 = arith.constant 128 : index
    %c0_84 = arith.constant 0 : index
    %363 = vector.load %arg10[%c128, %c0_84] : memref<144x256xf32, #tpu.memory_space<vmem>>, vector<16x256xf32>
    tpu.vector_store %arg10[%c128, %c0_84], %362 {strides = array<i32>} : memref<144x256xf32, #tpu.memory_space<vmem>>, vector<16x256xf32>,
    %364 = vector.broadcast %345 : vector<1x256xf32> to vector<16x256xf32>
    %365 = arith.cmpf oeq, %39, %364 : vector<16x256xf32>
    %366 = vector.extract_strided_slice %35 {offsets = [8, 0], sizes = [1, 256], strides = [1, 1]} : vector<9x256xf32> to vector<1x256xf32>
    %cst_85 = arith.constant 0.000000e+00 : f32
    %367 = vector.shape_cast %366 : vector<1x256xf32> to vector<1x256xf32>
    %368 = vector.broadcast %367 : vector<1x256xf32> to vector<16x256xf32>
    %369 = vector.broadcast %cst_85 : f32 to vector<16x256xf32>
    %370 = arith.select %365, %368, %369 : vector<16x256xi1>, vector<16x256xf32>
    %cst_86 = arith.constant 1.000000e+00 : f32
    %371 = vector.broadcast %cst_86 : f32 to vector<1x256xf32>
    %372 = arith.addf %345, %371 : vector<1x256xf32>
    %373 = vector.broadcast %372 : vector<1x256xf32> to vector<16x256xf32>
    %374 = arith.cmpf oeq, %39, %373 : vector<16x256xf32>
    %375 = vector.extract_strided_slice %29 {offsets = [8, 0], sizes = [1, 256], strides = [1, 1]} : vector<9x256xf32> to vector<1x256xf32>
    %cst_87 = arith.constant 0.000000e+00 : f32
    %376 = vector.shape_cast %375 : vector<1x256xf32> to vector<1x256xf32>
    %377 = vector.broadcast %376 : vector<1x256xf32> to vector<16x256xf32>
    %378 = vector.broadcast %cst_87 : f32 to vector<16x256xf32>
    %379 = arith.select %374, %377, %378 : vector<16x256xi1>, vector<16x256xf32>
    %380 = arith.addf %370, %379 : vector<16x256xf32>
    %c0_88 = arith.constant 0 : index
    %c2048 = arith.constant 2048 : index
    %381 = vector.load %arg9[%c0_88, %c2048] : memref<16x2304xf32, #tpu.memory_space<vmem>>, vector<16x256xf32>
    tpu.vector_store %arg9[%c0_88, %c2048], %380 {strides = array<i32>} : memref<16x2304xf32, #tpu.memory_space<vmem>>, vector<16x256xf32>,
    %c0_89 = arith.constant 0 : index
    %c0_90 = arith.constant 0 : index
    %c0_91 = arith.constant 0 : index
    %382 = vector.load %arg2[%c0_89, %c0_90, %c0_91] : memref<1x48x16xf32, #tpu.memory_space<vmem>>, vector<1x48x16xf32>
    %383 = vector.shape_cast %382 : vector<1x48x16xf32> to vector<48x16xf32>
    %c0_92 = arith.constant 0 : index
    %c0_93 = arith.constant 0 : index
    %384 = vector.load %arg9[%c0_92, %c0_93] : memref<16x2304xf32, #tpu.memory_space<vmem>>, vector<16x2304xf32>
    %cst_94 = arith.constant dense<0.000000e+00> : vector<48x2304xf32>
    %385 = tpu.matmul %383, %384, %cst_94 {dimension_numbers = #tpu.dot_dimension_numbers<[1], [0], [0], [1], [0, 0, 1, 1], [], []>} : vector<48x16xf32>, vector<16x2304xf32>, vector<48x2304xf32> -> vector<48x2304xf32>
    %c0_95 = arith.constant 0 : index
    %c0_96 = arith.constant 0 : index
    %386 = vector.load %arg11[%c0_95, %c0_96] : memref<48x2304xf32, #tpu.memory_space<vmem>>, vector<48x2304xf32>
    tpu.vector_store %arg11[%c0_95, %c0_96], %385 {strides = array<i32>} : memref<48x2304xf32, #tpu.memory_space<vmem>>, vector<48x2304xf32>,
    %c0_97 = arith.constant 0 : index
    %c0_98 = arith.constant 0 : index
    %387 = vector.load %arg10[%c0_97, %c0_98] : memref<144x256xf32, #tpu.memory_space<vmem>>, vector<16x256xf32>
    %c0_99 = arith.constant 0 : index
    %c0_100 = arith.constant 0 : index
    %388 = vector.load %arg11[%c0_99, %c0_100] : memref<48x2304xf32, #tpu.memory_space<vmem>>, vector<16x256xf32>
    %389 = arith.mulf %388, %387 : vector<16x256xf32>
    %c0_101 = arith.constant 0 : index
    %c0_102 = arith.constant 0 : index
    %390 = vector.load %arg12[%c0_101, %c0_102] : memref<432x256xf32, #tpu.memory_space<vmem>>, vector<16x256xf32>
    tpu.vector_store %arg12[%c0_101, %c0_102], %389 {strides = array<i32>} : memref<432x256xf32, #tpu.memory_space<vmem>>, vector<16x256xf32>,
    %c16_103 = arith.constant 16 : index
    %c0_104 = arith.constant 0 : index
    %391 = vector.load %arg11[%c16_103, %c0_104] : memref<48x2304xf32, #tpu.memory_space<vmem>>, vector<16x256xf32>
    %392 = arith.mulf %391, %387 : vector<16x256xf32>
    %c16_105 = arith.constant 16 : index
    %c0_106 = arith.constant 0 : index
    %393 = vector.load %arg12[%c16_105, %c0_106] : memref<432x256xf32, #tpu.memory_space<vmem>>, vector<16x256xf32>
    tpu.vector_store %arg12[%c16_105, %c0_106], %392 {strides = array<i32>} : memref<432x256xf32, #tpu.memory_space<vmem>>, vector<16x256xf32>,
    %c32_107 = arith.constant 32 : index
    %c0_108 = arith.constant 0 : index
    %394 = vector.load %arg11[%c32_107, %c0_108] : memref<48x2304xf32, #tpu.memory_space<vmem>>, vector<16x256xf32>
    %395 = arith.mulf %394, %387 : vector<16x256xf32>
    %c32_109 = arith.constant 32 : index
    %c0_110 = arith.constant 0 : index
    %396 = vector.load %arg12[%c32_109, %c0_110] : memref<432x256xf32, #tpu.memory_space<vmem>>, vector<16x256xf32>
    tpu.vector_store %arg12[%c32_109, %c0_110], %395 {strides = array<i32>} : memref<432x256xf32, #tpu.memory_space<vmem>>, vector<16x256xf32>,
    %c16_111 = arith.constant 16 : index
    %c0_112 = arith.constant 0 : index
    %397 = vector.load %arg10[%c16_111, %c0_112] : memref<144x256xf32, #tpu.memory_space<vmem>>, vector<16x256xf32>
    %c0_113 = arith.constant 0 : index
    %c256_114 = arith.constant 256 : index
    %398 = vector.load %arg11[%c0_113, %c256_114] : memref<48x2304xf32, #tpu.memory_space<vmem>>, vector<16x256xf32>
    %399 = arith.mulf %398, %397 : vector<16x256xf32>
    %c48_115 = arith.constant 48 : index
    %c0_116 = arith.constant 0 : index
    %400 = vector.load %arg12[%c48_115, %c0_116] : memref<432x256xf32, #tpu.memory_space<vmem>>, vector<16x256xf32>
    tpu.vector_store %arg12[%c48_115, %c0_116], %399 {strides = array<i32>} : memref<432x256xf32, #tpu.memory_space<vmem>>, vector<16x256xf32>,
    %c16_117 = arith.constant 16 : index
    %c256_118 = arith.constant 256 : index
    %401 = vector.load %arg11[%c16_117, %c256_118] : memref<48x2304xf32, #tpu.memory_space<vmem>>, vector<16x256xf32>
    %402 = arith.mulf %401, %397 : vector<16x256xf32>
    %c64_119 = arith.constant 64 : index
    %c0_120 = arith.constant 0 : index
    %403 = vector.load %arg12[%c64_119, %c0_120] : memref<432x256xf32, #tpu.memory_space<vmem>>, vector<16x256xf32>
    tpu.vector_store %arg12[%c64_119, %c0_120], %402 {strides = array<i32>} : memref<432x256xf32, #tpu.memory_space<vmem>>, vector<16x256xf32>,
    %c32_121 = arith.constant 32 : index
    %c256_122 = arith.constant 256 : index
    %404 = vector.load %arg11[%c32_121, %c256_122] : memref<48x2304xf32, #tpu.memory_space<vmem>>, vector<16x256xf32>
    %405 = arith.mulf %404, %397 : vector<16x256xf32>
    %c80_123 = arith.constant 80 : index
    %c0_124 = arith.constant 0 : index
    %406 = vector.load %arg12[%c80_123, %c0_124] : memref<432x256xf32, #tpu.memory_space<vmem>>, vector<16x256xf32>
    tpu.vector_store %arg12[%c80_123, %c0_124], %405 {strides = array<i32>} : memref<432x256xf32, #tpu.memory_space<vmem>>, vector<16x256xf32>,
    %c32_125 = arith.constant 32 : index
    %c0_126 = arith.constant 0 : index
    %407 = vector.load %arg10[%c32_125, %c0_126] : memref<144x256xf32, #tpu.memory_space<vmem>>, vector<16x256xf32>
    %c0_127 = arith.constant 0 : index
    %c512_128 = arith.constant 512 : index
    %408 = vector.load %arg11[%c0_127, %c512_128] : memref<48x2304xf32, #tpu.memory_space<vmem>>, vector<16x256xf32>
    %409 = arith.mulf %408, %407 : vector<16x256xf32>
    %c96_129 = arith.constant 96 : index
    %c0_130 = arith.constant 0 : index
    %410 = vector.load %arg12[%c96_129, %c0_130] : memref<432x256xf32, #tpu.memory_space<vmem>>, vector<16x256xf32>
    tpu.vector_store %arg12[%c96_129, %c0_130], %409 {strides = array<i32>} : memref<432x256xf32, #tpu.memory_space<vmem>>, vector<16x256xf32>,
    %c16_131 = arith.constant 16 : index
    %c512_132 = arith.constant 512 : index
    %411 = vector.load %arg11[%c16_131, %c512_132] : memref<48x2304xf32, #tpu.memory_space<vmem>>, vector<16x256xf32>
    %412 = arith.mulf %411, %407 : vector<16x256xf32>
    %c112_133 = arith.constant 112 : index
    %c0_134 = arith.constant 0 : index
    %413 = vector.load %arg12[%c112_133, %c0_134] : memref<432x256xf32, #tpu.memory_space<vmem>>, vector<16x256xf32>
    tpu.vector_store %arg12[%c112_133, %c0_134], %412 {strides = array<i32>} : memref<432x256xf32, #tpu.memory_space<vmem>>, vector<16x256xf32>,
    %c32_135 = arith.constant 32 : index
    %c512_136 = arith.constant 512 : index
    %414 = vector.load %arg11[%c32_135, %c512_136] : memref<48x2304xf32, #tpu.memory_space<vmem>>, vector<16x256xf32>
    %415 = arith.mulf %414, %407 : vector<16x256xf32>
    %c128_137 = arith.constant 128 : index
    %c0_138 = arith.constant 0 : index
    %416 = vector.load %arg12[%c128_137, %c0_138] : memref<432x256xf32, #tpu.memory_space<vmem>>, vector<16x256xf32>
    tpu.vector_store %arg12[%c128_137, %c0_138], %415 {strides = array<i32>} : memref<432x256xf32, #tpu.memory_space<vmem>>, vector<16x256xf32>,
    %c48_139 = arith.constant 48 : index
    %c0_140 = arith.constant 0 : index
    %417 = vector.load %arg10[%c48_139, %c0_140] : memref<144x256xf32, #tpu.memory_space<vmem>>, vector<16x256xf32>
    %c0_141 = arith.constant 0 : index
    %c768_142 = arith.constant 768 : index
    %418 = vector.load %arg11[%c0_141, %c768_142] : memref<48x2304xf32, #tpu.memory_space<vmem>>, vector<16x256xf32>
    %419 = arith.mulf %418, %417 : vector<16x256xf32>
    %c144 = arith.constant 144 : index
    %c0_143 = arith.constant 0 : index
    %420 = vector.load %arg12[%c144, %c0_143] : memref<432x256xf32, #tpu.memory_space<vmem>>, vector<16x256xf32>
    tpu.vector_store %arg12[%c144, %c0_143], %419 {strides = array<i32>} : memref<432x256xf32, #tpu.memory_space<vmem>>, vector<16x256xf32>,
    %c16_144 = arith.constant 16 : index
    %c768_145 = arith.constant 768 : index
    %421 = vector.load %arg11[%c16_144, %c768_145] : memref<48x2304xf32, #tpu.memory_space<vmem>>, vector<16x256xf32>
    %422 = arith.mulf %421, %417 : vector<16x256xf32>
    %c160 = arith.constant 160 : index
    %c0_146 = arith.constant 0 : index
    %423 = vector.load %arg12[%c160, %c0_146] : memref<432x256xf32, #tpu.memory_space<vmem>>, vector<16x256xf32>
    tpu.vector_store %arg12[%c160, %c0_146], %422 {strides = array<i32>} : memref<432x256xf32, #tpu.memory_space<vmem>>, vector<16x256xf32>,
    %c32_147 = arith.constant 32 : index
    %c768_148 = arith.constant 768 : index
    %424 = vector.load %arg11[%c32_147, %c768_148] : memref<48x2304xf32, #tpu.memory_space<vmem>>, vector<16x256xf32>
    %425 = arith.mulf %424, %417 : vector<16x256xf32>
    %c176 = arith.constant 176 : index
    %c0_149 = arith.constant 0 : index
    %426 = vector.load %arg12[%c176, %c0_149] : memref<432x256xf32, #tpu.memory_space<vmem>>, vector<16x256xf32>
    tpu.vector_store %arg12[%c176, %c0_149], %425 {strides = array<i32>} : memref<432x256xf32, #tpu.memory_space<vmem>>, vector<16x256xf32>,
    %c64_150 = arith.constant 64 : index
    %c0_151 = arith.constant 0 : index
    %427 = vector.load %arg10[%c64_150, %c0_151] : memref<144x256xf32, #tpu.memory_space<vmem>>, vector<16x256xf32>
    %c0_152 = arith.constant 0 : index
    %c1024_153 = arith.constant 1024 : index
    %428 = vector.load %arg11[%c0_152, %c1024_153] : memref<48x2304xf32, #tpu.memory_space<vmem>>, vector<16x256xf32>
    %429 = arith.mulf %428, %427 : vector<16x256xf32>
    %c192 = arith.constant 192 : index
    %c0_154 = arith.constant 0 : index
    %430 = vector.load %arg12[%c192, %c0_154] : memref<432x256xf32, #tpu.memory_space<vmem>>, vector<16x256xf32>
    tpu.vector_store %arg12[%c192, %c0_154], %429 {strides = array<i32>} : memref<432x256xf32, #tpu.memory_space<vmem>>, vector<16x256xf32>,
    %c16_155 = arith.constant 16 : index
    %c1024_156 = arith.constant 1024 : index
    %431 = vector.load %arg11[%c16_155, %c1024_156] : memref<48x2304xf32, #tpu.memory_space<vmem>>, vector<16x256xf32>
    %432 = arith.mulf %431, %427 : vector<16x256xf32>
    %c208 = arith.constant 208 : index
    %c0_157 = arith.constant 0 : index
    %433 = vector.load %arg12[%c208, %c0_157] : memref<432x256xf32, #tpu.memory_space<vmem>>, vector<16x256xf32>
    tpu.vector_store %arg12[%c208, %c0_157], %432 {strides = array<i32>} : memref<432x256xf32, #tpu.memory_space<vmem>>, vector<16x256xf32>,
    %c32_158 = arith.constant 32 : index
    %c1024_159 = arith.constant 1024 : index
    %434 = vector.load %arg11[%c32_158, %c1024_159] : memref<48x2304xf32, #tpu.memory_space<vmem>>, vector<16x256xf32>
    %435 = arith.mulf %434, %427 : vector<16x256xf32>
    %c224 = arith.constant 224 : index
    %c0_160 = arith.constant 0 : index
    %436 = vector.load %arg12[%c224, %c0_160] : memref<432x256xf32, #tpu.memory_space<vmem>>, vector<16x256xf32>
    tpu.vector_store %arg12[%c224, %c0_160], %435 {strides = array<i32>} : memref<432x256xf32, #tpu.memory_space<vmem>>, vector<16x256xf32>,
    %c80_161 = arith.constant 80 : index
    %c0_162 = arith.constant 0 : index
    %437 = vector.load %arg10[%c80_161, %c0_162] : memref<144x256xf32, #tpu.memory_space<vmem>>, vector<16x256xf32>
    %c0_163 = arith.constant 0 : index
    %c1280_164 = arith.constant 1280 : index
    %438 = vector.load %arg11[%c0_163, %c1280_164] : memref<48x2304xf32, #tpu.memory_space<vmem>>, vector<16x256xf32>
    %439 = arith.mulf %438, %437 : vector<16x256xf32>
    %c240 = arith.constant 240 : index
    %c0_165 = arith.constant 0 : index
    %440 = vector.load %arg12[%c240, %c0_165] : memref<432x256xf32, #tpu.memory_space<vmem>>, vector<16x256xf32>
    tpu.vector_store %arg12[%c240, %c0_165], %439 {strides = array<i32>} : memref<432x256xf32, #tpu.memory_space<vmem>>, vector<16x256xf32>,
    %c16_166 = arith.constant 16 : index
    %c1280_167 = arith.constant 1280 : index
    %441 = vector.load %arg11[%c16_166, %c1280_167] : memref<48x2304xf32, #tpu.memory_space<vmem>>, vector<16x256xf32>
    %442 = arith.mulf %441, %437 : vector<16x256xf32>
    %c256_168 = arith.constant 256 : index
    %c0_169 = arith.constant 0 : index
    %443 = vector.load %arg12[%c256_168, %c0_169] : memref<432x256xf32, #tpu.memory_space<vmem>>, vector<16x256xf32>
    tpu.vector_store %arg12[%c256_168, %c0_169], %442 {strides = array<i32>} : memref<432x256xf32, #tpu.memory_space<vmem>>, vector<16x256xf32>,
    %c32_170 = arith.constant 32 : index
    %c1280_171 = arith.constant 1280 : index
    %444 = vector.load %arg11[%c32_170, %c1280_171] : memref<48x2304xf32, #tpu.memory_space<vmem>>, vector<16x256xf32>
    %445 = arith.mulf %444, %437 : vector<16x256xf32>
    %c272 = arith.constant 272 : index
    %c0_172 = arith.constant 0 : index
    %446 = vector.load %arg12[%c272, %c0_172] : memref<432x256xf32, #tpu.memory_space<vmem>>, vector<16x256xf32>
    tpu.vector_store %arg12[%c272, %c0_172], %445 {strides = array<i32>} : memref<432x256xf32, #tpu.memory_space<vmem>>, vector<16x256xf32>,
    %c96_173 = arith.constant 96 : index
    %c0_174 = arith.constant 0 : index
    %447 = vector.load %arg10[%c96_173, %c0_174] : memref<144x256xf32, #tpu.memory_space<vmem>>, vector<16x256xf32>
    %c0_175 = arith.constant 0 : index
    %c1536_176 = arith.constant 1536 : index
    %448 = vector.load %arg11[%c0_175, %c1536_176] : memref<48x2304xf32, #tpu.memory_space<vmem>>, vector<16x256xf32>
    %449 = arith.mulf %448, %447 : vector<16x256xf32>
    %c288 = arith.constant 288 : index
    %c0_177 = arith.constant 0 : index
    %450 = vector.load %arg12[%c288, %c0_177] : memref<432x256xf32, #tpu.memory_space<vmem>>, vector<16x256xf32>
    tpu.vector_store %arg12[%c288, %c0_177], %449 {strides = array<i32>} : memref<432x256xf32, #tpu.memory_space<vmem>>, vector<16x256xf32>,
    %c16_178 = arith.constant 16 : index
    %c1536_179 = arith.constant 1536 : index
    %451 = vector.load %arg11[%c16_178, %c1536_179] : memref<48x2304xf32, #tpu.memory_space<vmem>>, vector<16x256xf32>
    %452 = arith.mulf %451, %447 : vector<16x256xf32>
    %c304 = arith.constant 304 : index
    %c0_180 = arith.constant 0 : index
    %453 = vector.load %arg12[%c304, %c0_180] : memref<432x256xf32, #tpu.memory_space<vmem>>, vector<16x256xf32>
    tpu.vector_store %arg12[%c304, %c0_180], %452 {strides = array<i32>} : memref<432x256xf32, #tpu.memory_space<vmem>>, vector<16x256xf32>,
    %c32_181 = arith.constant 32 : index
    %c1536_182 = arith.constant 1536 : index
    %454 = vector.load %arg11[%c32_181, %c1536_182] : memref<48x2304xf32, #tpu.memory_space<vmem>>, vector<16x256xf32>
    %455 = arith.mulf %454, %447 : vector<16x256xf32>
    %c320 = arith.constant 320 : index
    %c0_183 = arith.constant 0 : index
    %456 = vector.load %arg12[%c320, %c0_183] : memref<432x256xf32, #tpu.memory_space<vmem>>, vector<16x256xf32>
    tpu.vector_store %arg12[%c320, %c0_183], %455 {strides = array<i32>} : memref<432x256xf32, #tpu.memory_space<vmem>>, vector<16x256xf32>,
    %c112_184 = arith.constant 112 : index
    %c0_185 = arith.constant 0 : index
    %457 = vector.load %arg10[%c112_184, %c0_185] : memref<144x256xf32, #tpu.memory_space<vmem>>, vector<16x256xf32>
    %c0_186 = arith.constant 0 : index
    %c1792_187 = arith.constant 1792 : index
    %458 = vector.load %arg11[%c0_186, %c1792_187] : memref<48x2304xf32, #tpu.memory_space<vmem>>, vector<16x256xf32>
    %459 = arith.mulf %458, %457 : vector<16x256xf32>
    %c336 = arith.constant 336 : index
    %c0_188 = arith.constant 0 : index
    %460 = vector.load %arg12[%c336, %c0_188] : memref<432x256xf32, #tpu.memory_space<vmem>>, vector<16x256xf32>
    tpu.vector_store %arg12[%c336, %c0_188], %459 {strides = array<i32>} : memref<432x256xf32, #tpu.memory_space<vmem>>, vector<16x256xf32>,
    %c16_189 = arith.constant 16 : index
    %c1792_190 = arith.constant 1792 : index
    %461 = vector.load %arg11[%c16_189, %c1792_190] : memref<48x2304xf32, #tpu.memory_space<vmem>>, vector<16x256xf32>
    %462 = arith.mulf %461, %457 : vector<16x256xf32>
    %c352 = arith.constant 352 : index
    %c0_191 = arith.constant 0 : index
    %463 = vector.load %arg12[%c352, %c0_191] : memref<432x256xf32, #tpu.memory_space<vmem>>, vector<16x256xf32>
    tpu.vector_store %arg12[%c352, %c0_191], %462 {strides = array<i32>} : memref<432x256xf32, #tpu.memory_space<vmem>>, vector<16x256xf32>,
    %c32_192 = arith.constant 32 : index
    %c1792_193 = arith.constant 1792 : index
    %464 = vector.load %arg11[%c32_192, %c1792_193] : memref<48x2304xf32, #tpu.memory_space<vmem>>, vector<16x256xf32>
    %465 = arith.mulf %464, %457 : vector<16x256xf32>
    %c368 = arith.constant 368 : index
    %c0_194 = arith.constant 0 : index
    %466 = vector.load %arg12[%c368, %c0_194] : memref<432x256xf32, #tpu.memory_space<vmem>>, vector<16x256xf32>
    tpu.vector_store %arg12[%c368, %c0_194], %465 {strides = array<i32>} : memref<432x256xf32, #tpu.memory_space<vmem>>, vector<16x256xf32>,
    %c128_195 = arith.constant 128 : index
    %c0_196 = arith.constant 0 : index
    %467 = vector.load %arg10[%c128_195, %c0_196] : memref<144x256xf32, #tpu.memory_space<vmem>>, vector<16x256xf32>
    %c0_197 = arith.constant 0 : index
    %c2048_198 = arith.constant 2048 : index
    %468 = vector.load %arg11[%c0_197, %c2048_198] : memref<48x2304xf32, #tpu.memory_space<vmem>>, vector<16x256xf32>
    %469 = arith.mulf %468, %467 : vector<16x256xf32>
    %c384 = arith.constant 384 : index
    %c0_199 = arith.constant 0 : index
    %470 = vector.load %arg12[%c384, %c0_199] : memref<432x256xf32, #tpu.memory_space<vmem>>, vector<16x256xf32>
    tpu.vector_store %arg12[%c384, %c0_199], %469 {strides = array<i32>} : memref<432x256xf32, #tpu.memory_space<vmem>>, vector<16x256xf32>,
    %c16_200 = arith.constant 16 : index
    %c2048_201 = arith.constant 2048 : index
    %471 = vector.load %arg11[%c16_200, %c2048_201] : memref<48x2304xf32, #tpu.memory_space<vmem>>, vector<16x256xf32>
    %472 = arith.mulf %471, %467 : vector<16x256xf32>
    %c400 = arith.constant 400 : index
    %c0_202 = arith.constant 0 : index
    %473 = vector.load %arg12[%c400, %c0_202] : memref<432x256xf32, #tpu.memory_space<vmem>>, vector<16x256xf32>
    tpu.vector_store %arg12[%c400, %c0_202], %472 {strides = array<i32>} : memref<432x256xf32, #tpu.memory_space<vmem>>, vector<16x256xf32>,
    %c32_203 = arith.constant 32 : index
    %c2048_204 = arith.constant 2048 : index
    %474 = vector.load %arg11[%c32_203, %c2048_204] : memref<48x2304xf32, #tpu.memory_space<vmem>>, vector<16x256xf32>
    %475 = arith.mulf %474, %467 : vector<16x256xf32>
    %c416 = arith.constant 416 : index
    %c0_205 = arith.constant 0 : index
    %476 = vector.load %arg12[%c416, %c0_205] : memref<432x256xf32, #tpu.memory_space<vmem>>, vector<16x256xf32>
    tpu.vector_store %arg12[%c416, %c0_205], %475 {strides = array<i32>} : memref<432x256xf32, #tpu.memory_space<vmem>>, vector<16x256xf32>,
    %c0_206 = arith.constant 0 : index
    %c0_207 = arith.constant 0 : index
    %477 = vector.load %arg5[%c0_206, %c0_207] : memref<8x432xf32, #tpu.memory_space<vmem>>, vector<8x432xf32>
    %c0_208 = arith.constant 0 : index
    %c0_209 = arith.constant 0 : index
    %478 = vector.load %arg12[%c0_208, %c0_209] : memref<432x256xf32, #tpu.memory_space<vmem>>, vector<432x256xf32>
    %cst_210 = arith.constant dense<0.000000e+00> : vector<8x256xf32>
    %479 = tpu.matmul %477, %478, %cst_210 {dimension_numbers = #tpu.dot_dimension_numbers<[1], [0], [0], [1], [0, 0, 1, 1], [], []>} : vector<8x432xf32>, vector<432x256xf32>, vector<8x256xf32> -> vector<8x256xf32>
    %c0_211 = arith.constant 0 : index
    %c0_212 = arith.constant 0 : index
    %480 = vector.load %arg6[%c0_211, %c0_212] : memref<8x1xf32, #tpu.memory_space<vmem>>, vector<8x1xf32>
    %481 = vector.broadcast %480 : vector<8x1xf32> to vector<8x256xf32>
    %482 = arith.addf %479, %481 : vector<8x256xf32>
    %c0_213 = arith.constant 0 : index
    %c0_214 = arith.constant 0 : index
    %c0_215 = arith.constant 0 : index
    %483 = vector.load %arg8[%c0_213, %c0_214, %c0_215] : memref<1x8x256xf32, #tpu.memory_space<vmem>>, vector<1x8x256xf32>
    %484 = vector.shape_cast %483 : vector<1x8x256xf32> to vector<8x256xf32>
    %485 = vector.shape_cast %482 : vector<8x256xf32> to vector<1x8x256xf32>
    tpu.vector_store %arg8[%c0_213, %c0_214, %c0_215], %485 {strides = array<i32>} : memref<1x8x256xf32, #tpu.memory_space<vmem>>, vector<1x8x256xf32>,
    return
  }
  func.func @transform_0(%arg0: i32) -> (i32, i32, i32) {
    %c0_i32 = arith.constant 0 : i32
    %c0_i32_0 = arith.constant 0 : i32
    %c0_i32_1 = arith.constant 0 : i32
    return %arg0, %c0_i32, %c0_i32_0 : i32, i32, i32
  }
  func.func @transform_1(%arg0: i32) -> (i32, i32, i32) {
    %c0_i32 = arith.constant 0 : i32
    %c0_i32_0 = arith.constant 0 : i32
    %c0_i32_1 = arith.constant 0 : i32
    return %arg0, %c0_i32, %c0_i32_0 : i32, i32, i32
  }
  func.func @transform_2(%arg0: i32) -> (i32, i32) {
    %c0_i32 = arith.constant 0 : i32
    %c0_i32_0 = arith.constant 0 : i32
    %c0_i32_1 = arith.constant 0 : i32
    return %c0_i32, %c0_i32_0 : i32, i32
  }
  func.func @transform_3(%arg0: i32) -> (i32, i32) {
    %c0_i32 = arith.constant 0 : i32
    %c0_i32_0 = arith.constant 0 : i32
    %c0_i32_1 = arith.constant 0 : i32
    return %c0_i32, %c0_i32_0 : i32, i32
  }
  func.func @transform_4(%arg0: i32) -> (i32, i32) {
    %c0_i32 = arith.constant 0 : i32
    %c0_i32_0 = arith.constant 0 : i32
    %c0_i32_1 = arith.constant 0 : i32
    return %c0_i32, %c0_i32_0 : i32, i32
  }
  func.func @transform_5(%arg0: i32) -> (i32, i32) {
    %c0_i32 = arith.constant 0 : i32
    %c0_i32_0 = arith.constant 0 : i32
    %c0_i32_1 = arith.constant 0 : i32
    return %c0_i32, %c0_i32_0 : i32, i32
  }
  func.func @transform_6(%arg0: i32) -> (i32, i32) {
    %c0_i32 = arith.constant 0 : i32
    %c0_i32_0 = arith.constant 0 : i32
    %c0_i32_1 = arith.constant 0 : i32
    return %c0_i32, %c0_i32_0 : i32, i32
  }
  func.func @transform_7(%arg0: i32) -> (i32, i32, i32) {
    %c0_i32 = arith.constant 0 : i32
    %c0_i32_0 = arith.constant 0 : i32
    %c0_i32_1 = arith.constant 0 : i32
    return %arg0, %c0_i32, %c0_i32_0 : i32, i32, i32
  }
}

</mosaic_0001>

<llo_original>
// kernel: tpu_custom_call.1
$region0: #{tpu_custom_call.1}
  #allocation0 [shape = 'u32[]', space=smem, size = 0x4, offset = 0x4, fixed_abs, tag = 'smem constant byte address 0x4 - core index']
  #allocation1 [shape = 'u32[72,128]{1,0:T(1,128)}', space=vmem, size = 0x9000, scoped, tag = 'internal scratch']
  #allocation2 [shape = 'f32[16,2304]{1,0:T(8,128)}', space=vmem, size = 0x24000, scoped, tag = 'scratch operand']
  #allocation3 [shape = 'f32[144,256]{1,0:T(8,128)}', space=vmem, size = 0x24000, scoped, tag = 'scratch operand']
  #allocation4 [shape = 'f32[48,2304]{1,0:T(8,128)}', space=vmem, size = 0x6c000, scoped, tag = 'scratch operand']
  #allocation5 [shape = 'f32[432,256]{1,0:T(8,128)}', space=vmem, size = 0x6c000, scoped, tag = 'scratch operand']
  %s0 = inlined_call_operand.vmem [shape: f32[2,27,256], index: 0, kind: input, shape index: {}]
  %s1 = inlined_call_operand.vmem [shape: f32[2,48,16], index: 1, kind: input, shape index: {}]
  %s2 = inlined_call_operand.vmem [shape: f32[18,27], index: 2, kind: input, shape index: {}]
  %s3 = inlined_call_operand.vmem [shape: f32[18,1], index: 3, kind: input, shape index: {}]
  %s4 = inlined_call_operand.vmem [shape: f32[8,432], index: 4, kind: input, shape index: {}]
  %s5 = inlined_call_operand.vmem [shape: f32[8,1], index: 5, kind: input, shape index: {}]
  %s6 = inlined_call_operand.vmem [shape: f32[18,256], index: 6, kind: input, shape index: {}]
  %s7 = inlined_call_operand.hbm [shape: f32[2,8,256], index: 7, kind: output, shape index: {}]
  %s8 = sld [smem:[#allocation0]]
  $region61: #{tpu_custom_call.1} parent=0
    _
  %s10 = ssub.s32 1, %s8
  %s11 = scalar_select 0, %s10, %s8
  $region1: #{tpu_custom_call.1} parent=0
    #allocation6 [shape = 'u8[16384]{0}', space=vmem, size = 0x4000, scoped, tag = 'output window, operand 0']
    #allocation7 [shape = 's32[2]{0}', space=sflag, size = 0x8, scoped, tag = 'scoped memory for tpu_custom_call.1']
    %12 = vsyncpa [#allocation7], 0
    %s13 = scalar_lea.sflag [#allocation7], 1
    %14 = vsyncpa %s13, 0
    loop: start=0, step=1, limit=4
    $region2: #{tpu_custom_call.1} parent=1 // loop_pre_header
      _
    $region3: #{tpu_custom_call.1} parent=1 // loop_header
      %s16 = sphi 0, %s20
      %p17 = scmp.ge.s32.totalorder %s16, 4
      %s26 = sphi 0, %s28
      %s29 = sphi 0, %s26
      %s30 = sphi 0, %s29
      %s46 = sphi 0, %s30
      %s52 = sphi 0, %s54
      %s55 = sphi 0, %s52
      %s56 = sphi 0, %s55
      %s72 = sphi 0, %s56
      %s76 = sphi 0, %s76
      %s78 = sphi 0, %s76
      %s79 = sphi 0, %s78
      %s93 = sphi 0, %s79
      %s97 = sphi 0, %s97
      %s99 = sphi 0, %s97
      %s100 = sphi 0, %s99
      %s114 = sphi 0, %s100
      %s118 = sphi 0, %s118
      %s120 = sphi 0, %s118
      %s121 = sphi 0, %s120
      %s135 = sphi 0, %s121
      %s139 = sphi 0, %s139
      %s141 = sphi 0, %s139
      %s142 = sphi 0, %s141
      %s156 = sphi 0, %s142
      %s160 = sphi 0, %s160
      %s162 = sphi 0, %s160
      %s163 = sphi 0, %s162
      %s177 = sphi 0, %s163
      %s183 = sphi 0, %s185
      %s186 = sphi 0, %s183
      %s187 = sphi 0, %s186
      %s203 = sphi 0, %s187
    $region4: #{tpu_custom_call.1} parent=1 // loop_header_branch
      %19 = sbr.rel (%p17) target = $region8
    $region5: #{tpu_custom_call.1} parent=1 // loop_body
      %s21 = ssub.s32 %s16, 1
      %s22 = ssub.s32 %s16, 2
      %s23 = sadd.s32 %s16, 1
      %s24 = ssub.s32 %s16, %s23
      %p25 = scmp.eq.s32.totalorder %s24, 0
      %s27 = sadd.s32 %s26, 1
      %s28 = scalar_select %p25, %s26, %s27
      %p31 = pneg %p25
      %p32 = scmp.eq.s32.totalorder %s16, 1
      %p33 = por %p31, %p32
      %p34 = scmp.ne.s32.totalorder %s26, %s29
      %p35 = scmp.eq.s32.totalorder %s16, 0
      %p36 = por %p34, %p35
      %p37 = scmp.ne.s32.totalorder %s26, %s29
      %p38 = scmp.eq.s32.totalorder %s21, 1
      %p39 = por %p37, %p38
      %p40 = scmp.ne.s32.totalorder %s29, %s30
      %p41 = scmp.eq.s32.totalorder %s21, 0
      %p42 = por %p40, %p41
      %p43 = scmp.ne.s32.totalorder %s29, %s30
      %p44 = scmp.eq.s32.totalorder %s22, 1
      %p45 = por %p43, %p44
      %p47 = scmp.ne.s32.totalorder %s30, %s46
      %p48 = scmp.eq.s32.totalorder %s22, 0
      %p49 = por %p47, %p48
      %s50 = ssub.s32 %s16, %s23
      %p51 = scmp.eq.s32.totalorder %s50, 0
      %s53 = sadd.s32 %s52, 1
      %s54 = scalar_select %p51, %s52, %s53
      %p57 = pneg %p51
      %p58 = scmp.eq.s32.totalorder %s16, 1
      %p59 = por %p57, %p58
      %p60 = scmp.ne.s32.totalorder %s52, %s55
      %p61 = scmp.eq.s32.totalorder %s16, 0
      %p62 = por %p60, %p61
      %p63 = scmp.ne.s32.totalorder %s52, %s55
      %p64 = scmp.eq.s32.totalorder %s21, 1
      %p65 = por %p63, %p64
      %p66 = scmp.ne.s32.totalorder %s55, %s56
      %p67 = scmp.eq.s32.totalorder %s21, 0
      %p68 = por %p66, %p67
      %p69 = scmp.ne.s32.totalorder %s55, %s56
      %p70 = scmp.eq.s32.totalorder %s22, 1
      %p71 = por %p69, %p70
      %p73 = scmp.ne.s32.totalorder %s56, %s72
      %p74 = scmp.eq.s32.totalorder %s22, 0
      %p75 = por %p73, %p74
      %s77 = sadd.s32 %s76, 1
      %p80 = scmp.eq.s32.totalorder %s16, 1
      %p81 = scmp.ne.s32.totalorder %s76, %s78
      %p82 = scmp.eq.s32.totalorder %s16, 0
      %p83 = por %p81, %p82
      %p84 = scmp.ne.s32.totalorder %s76, %s78
      %p85 = scmp.eq.s32.totalorder %s21, 1
      %p86 = por %p84, %p85
      %p87 = scmp.ne.s32.totalorder %s78, %s79
      %p88 = scmp.eq.s32.totalorder %s21, 0
      %p89 = por %p87, %p88
      %p90 = scmp.ne.s32.totalorder %s78, %s79
      %p91 = scmp.eq.s32.totalorder %s22, 1
      %p92 = por %p90, %p91
      %p94 = scmp.ne.s32.totalorder %s79, %s93
      %p95 = scmp.eq.s32.totalorder %s22, 0
      %p96 = por %p94, %p95
      %s98 = sadd.s32 %s97, 1
      %p101 = scmp.eq.s32.totalorder %s16, 1
      %p102 = scmp.ne.s32.totalorder %s97, %s99
      %p103 = scmp.eq.s32.totalorder %s16, 0
      %p104 = por %p102, %p103
      %p105 = scmp.ne.s32.totalorder %s97, %s99
      %p106 = scmp.eq.s32.totalorder %s21, 1
      %p107 = por %p105, %p106
      %p108 = scmp.ne.s32.totalorder %s99, %s100
      %p109 = scmp.eq.s32.totalorder %s21, 0
      %p110 = por %p108, %p109
      %p111 = scmp.ne.s32.totalorder %s99, %s100
      %p112 = scmp.eq.s32.totalorder %s22, 1
      %p113 = por %p111, %p112
      %p115 = scmp.ne.s32.totalorder %s100, %s114
      %p116 = scmp.eq.s32.totalorder %s22, 0
      %p117 = por %p115, %p116
      %s119 = sadd.s32 %s118, 1
      %p122 = scmp.eq.s32.totalorder %s16, 1
      %p123 = scmp.ne.s32.totalorder %s118, %s120
      %p124 = scmp.eq.s32.totalorder %s16, 0
      %p125 = por %p123, %p124
      %p126 = scmp.ne.s32.totalorder %s118, %s120
      %p127 = scmp.eq.s32.totalorder %s21, 1
      %p128 = por %p126, %p127
      %p129 = scmp.ne.s32.totalorder %s120, %s121
      %p130 = scmp.eq.s32.totalorder %s21, 0
      %p131 = por %p129, %p130
      %p132 = scmp.ne.s32.totalorder %s120, %s121
      %p133 = scmp.eq.s32.totalorder %s22, 1
      %p134 = por %p132, %p133
      %p136 = scmp.ne.s32.totalorder %s121, %s135
      %p137 = scmp.eq.s32.totalorder %s22, 0
      %p138 = por %p136, %p137
      %s140 = sadd.s32 %s139, 1
      %p143 = scmp.eq.s32.totalorder %s16, 1
      %p144 = scmp.ne.s32.totalorder %s139, %s141
      %p145 = scmp.eq.s32.totalorder %s16, 0
      %p146 = por %p144, %p145
      %p147 = scmp.ne.s32.totalorder %s139, %s141
      %p148 = scmp.eq.s32.totalorder %s21, 1
      %p149 = por %p147, %p148
      %p150 = scmp.ne.s32.totalorder %s141, %s142
      %p151 = scmp.eq.s32.totalorder %s21, 0
      %p152 = por %p150, %p151
      %p153 = scmp.ne.s32.totalorder %s141, %s142
      %p154 = scmp.eq.s32.totalorder %s22, 1
      %p155 = por %p153, %p154
      %p157 = scmp.ne.s32.totalorder %s142, %s156
      %p158 = scmp.eq.s32.totalorder %s22, 0
      %p159 = por %p157, %p158
      %s161 = sadd.s32 %s160, 1
      %p164 = scmp.eq.s32.totalorder %s16, 1
      %p165 = scmp.ne.s32.totalorder %s160, %s162
      %p166 = scmp.eq.s32.totalorder %s16, 0
      %p167 = por %p165, %p166
      %p168 = scmp.ne.s32.totalorder %s160, %s162
      %p169 = scmp.eq.s32.totalorder %s21, 1
      %p170 = por %p168, %p169
      %p171 = scmp.ne.s32.totalorder %s162, %s163
      %p172 = scmp.eq.s32.totalorder %s21, 0
      %p173 = por %p171, %p172
      %p174 = scmp.ne.s32.totalorder %s162, %s163
      %p175 = scmp.eq.s32.totalorder %s22, 1
      %p176 = por %p174, %p175
      %p178 = scmp.ne.s32.totalorder %s163, %s177
      %p179 = scmp.eq.s32.totalorder %s22, 0
      %p180 = por %p178, %p179
      %s181 = ssub.s32 %s16, %s23
      %p182 = scmp.eq.s32.totalorder %s181, 0
      %s184 = sadd.s32 %s183, 1
      %s185 = scalar_select %p182, %s183, %s184
      %p188 = pneg %p182
      %p189 = scmp.eq.s32.totalorder %s16, 1
      %p190 = por %p188, %p189
      %p191 = scmp.ne.s32.totalorder %s183, %s186
      %p192 = scmp.eq.s32.totalorder %s16, 0
      %p193 = por %p191, %p192
      %p194 = scmp.ne.s32.totalorder %s183, %s186
      %p195 = scmp.eq.s32.totalorder %s21, 1
      %p196 = por %p194, %p195
      %p197 = scmp.ne.s32.totalorder %s186, %s187
      %p198 = scmp.eq.s32.totalorder %s21, 0
      %p199 = por %p197, %p198
      %p200 = scmp.ne.s32.totalorder %s186, %s187
      %p201 = scmp.eq.s32.totalorder %s22, 1
      %p202 = por %p200, %p201
      %p204 = scmp.ne.s32.totalorder %s187, %s203
      %p205 = scmp.eq.s32.totalorder %s22, 0
      %p206 = por %p204, %p205
      %p207 = scmp.le.s32.totalorder 1, %s16
      %p208 = scmp.lt.s32.totalorder %s16, 3
      %p209 = pnand %p207, %p208
      %p210 = pneg %p209
      // Predicated region
      $region9: #{tpu_custom_call.1} parent=5 // pred_check
        _
      $region10: #{tpu_custom_call.1} parent=5 // pred_check_branch
        %212 = sbr.rel (%p209) target = $region12
      $region11: #{tpu_custom_call.1} parent=5 // pred_region
        %s213 = ssub.s32 %s16, 1
        // Predicated region
        $region13: #{tpu_custom_call.1} parent=11 // pred_check
          %p214 = pneg %p89
        $region14: #{tpu_custom_call.1} parent=11 // pred_check_branch
          %216 = sbr.rel (%p214) target = $region16
        $region15: #{tpu_custom_call.1} parent=11 // pred_region
          _
        $region16: #{tpu_custom_call.1} parent=11 // pred_fallthru
          _
        // Predicated region
        $region17: #{tpu_custom_call.1} parent=11 // pred_check
          %p217 = pneg %p110
        $region18: #{tpu_custom_call.1} parent=11 // pred_check_branch
          %219 = sbr.rel (%p217) target = $region20
        $region19: #{tpu_custom_call.1} parent=11 // pred_region
          _
        $region20: #{tpu_custom_call.1} parent=11 // pred_fallthru
          _
        // Predicated region
        $region21: #{tpu_custom_call.1} parent=11 // pred_check
          %p220 = pneg %p131
        $region22: #{tpu_custom_call.1} parent=11 // pred_check_branch
          %222 = sbr.rel (%p220) target = $region24
        $region23: #{tpu_custom_call.1} parent=11 // pred_region
          _
        $region24: #{tpu_custom_call.1} parent=11 // pred_fallthru
          _
        // Predicated region
        $region25: #{tpu_custom_call.1} parent=11 // pred_check
          %p223 = pneg %p152
        $region26: #{tpu_custom_call.1} parent=11 // pred_check_branch
          %225 = sbr.rel (%p223) target = $region28
        $region27: #{tpu_custom_call.1} parent=11 // pred_region
          _
        $region28: #{tpu_custom_call.1} parent=11 // pred_fallthru
          _
        // Predicated region
        $region29: #{tpu_custom_call.1} parent=11 // pred_check
          %p226 = pneg %p173
        $region30: #{tpu_custom_call.1} parent=11 // pred_check_branch
          %228 = sbr.rel (%p226) target = $region32
        $region31: #{tpu_custom_call.1} parent=11 // pred_region
          _
        $region32: #{tpu_custom_call.1} parent=11 // pred_fallthru
          _
      $region12: #{tpu_custom_call.1} parent=5 // pred_fallthru
        _
      %p229 = scmp.lt.s32.totalorder %s16, 2
      // Predicated region
      $region33: #{tpu_custom_call.1} parent=5 // pred_check
        %p230 = pneg %p229
      $region34: #{tpu_custom_call.1} parent=5 // pred_check_branch
        %232 = sbr.rel (%p230) target = $region36
      $region35: #{tpu_custom_call.1} parent=5 // pred_region
        // Predicated region
        $region37: #{tpu_custom_call.1} parent=35 // pred_check
          %p233 = pneg %p36
        $region38: #{tpu_custom_call.1} parent=35 // pred_check_branch
          %235 = sbr.rel (%p233) target = $region40
        $region39: #{tpu_custom_call.1} parent=35 // pred_region
          %p236 = scmp.lt.s32.totalorder %s16, 1
          %s237 = scalar_select %p236, %s16, 1
          %s238 = smul.addr %s237, 8
          %s239 = smul.addr %s238, 8
          %s240 = scalar_lea.vmem %s0, %s239
        $region40: #{tpu_custom_call.1} parent=35 // pred_fallthru
          _
        // Predicated region
        $region41: #{tpu_custom_call.1} parent=35 // pred_check
          %p241 = pneg %p62
        $region42: #{tpu_custom_call.1} parent=35 // pred_check_branch
          %243 = sbr.rel (%p241) target = $region44
        $region43: #{tpu_custom_call.1} parent=35 // pred_region
          %p244 = scmp.lt.s32.totalorder %s16, 1
          %s245 = scalar_select %p244, %s16, 1
          %s246 = smul.addr %s245, 6
          %s247 = smul.addr %s246, 8
          %s248 = scalar_lea.vmem %s1, %s247
        $region44: #{tpu_custom_call.1} parent=35 // pred_fallthru
          _
      $region36: #{tpu_custom_call.1} parent=5 // pred_fallthru
        _
      %p249 = scmp.le.s32.totalorder 1, %s16
      %p250 = scmp.lt.s32.totalorder %s16, 3
      %p251 = pnand %p249, %p250
      %p252 = pneg %p251
      // Predicated region
      $region45: #{tpu_custom_call.1} parent=5 // pred_check
        _
      $region46: #{tpu_custom_call.1} parent=5 // pred_check_branch
        %254 = sbr.rel (%p251) target = $region48
      $region47: #{tpu_custom_call.1} parent=5 // pred_region
        %s255 = ssub.s32 %s16, 1
        %p256 = scmp.lt.s32.totalorder %s21, 1
        %s257 = scalar_select %p256, %s21, 1
        %s258 = smul.addr %s257, 8
        %s259 = smul.addr %s258, 8
        %s260 = scalar_lea.vmem %s0, %s259
        %p261 = pneg %p42
        %p262 = pneg %p39
        %p263 = scmp.lt.s32.totalorder %s21, 1
        %s264 = scalar_select %p263, %s21, 1
        %s265 = smul.addr %s264, 6
        %s266 = smul.addr %s265, 8
        %s267 = scalar_lea.vmem %s1, %s266
        %p268 = pneg %p68
        %p269 = pneg %p65
        %p270 = pneg %p89
        %p271 = pneg %p86
        %p272 = pneg %p110
        %p273 = pneg %p107
        %p274 = pneg %p131
        %p275 = pneg %p128
        %p276 = pneg %p152
        %p277 = pneg %p149
        %p278 = pneg %p173
        %p279 = pneg %p170
        %p280 = pneg %p199
        %p281 = pneg %p196
        %s282 = sand.u32 %s186, 1
        %s283 = scalar_lea.sflag [#allocation7], %s282
        %s284 = sand.u32 %s186, 1
        %s285 = smul.addr %s284, 16
        %s286 = scalar_lea.vmem [#allocation6], %s285
        %p287 = scmp.lt.s32.totalorder %s21, 1
        %s288 = scalar_select %p287, %s21, 1
        %s289 = smul.addr %s288, 8
        %s290 = smul.addr %s289, 8
        %s291 = scalar_lea.vmem %s0, %s290
        %p292 = scmp.lt.s32.totalorder %s21, 1
        %s293 = scalar_select %p292, %s21, 1
        %s294 = smul.addr %s293, 6
        %s295 = smul.addr %s294, 8
        %s296 = scalar_lea.vmem %s1, %s295
        %v297 = vld [vmem:[%s2] sm:$0xff]
        %v298 = vld [vmem:[%s2 + $0x8] sm:$0xff]
        %v299 = vld [vmem:[%s2 + $0x10] sm:$0x3]
        %v300 = vld [vmem:[%s291] sm:$0xff]
        %v301 = vld [vmem:[%s291 + $0x8] sm:$0xff]
        %v302 = vld [vmem:[%s291 + $0x10] sm:$0xff]
        %v303 = vld [vmem:[%s291 + $0x18] sm:$0xff]
        %v304 = vld [vmem:[%s291 + $0x20] sm:$0xff]
        %v305 = vld [vmem:[%s291 + $0x28] sm:$0xff]
        %v306 = vld [vmem:[%s291 + $0x30] sm:$0x7]
        %v307 = vld [vmem:[%s291 + $0x38] sm:$0x7]
        %v308 = vld [vmem:[%s3] sm:$0xff]
        %v309 = vld [vmem:[%s3 + $0x8] sm:$0xff]
        %v310 = vld [vmem:[%s3 + $0x10] sm:$0x3]
        %312 = vset.pattern.permute.xlu0 0
        %313 = vperm.xlu0 %312, %v308
        %v314 = vpop.permute.xlu0 %313
        %317 = vset.pattern.permute.xlu0 0
        %318 = vperm.xlu0 %317, %v309
        %v319 = vpop.permute.xlu0 %318
        %322 = vset.pattern.permute.xlu0 0
        %323 = vperm.xlu0 %322, %v310
        %v324 = vpop.permute.xlu0 %323
        %vm326 = vcmask 220160
        %v328 = vsel %vm326, %v297, 0
        %v331 = vsel %vm326, %v298, 0
        %v334 = vsel %vm326, %v299, 0
        %vm336 = vcmask 1042432
        %v338 = vsel %vm336, %v306, 0
        %v341 = vsel %vm336, %v307, 0
        %343 = vmatpush.msra.mxu0 0.0
        %344 = vmatpush.msra.mxu0 0.0
        %345 = vmatpush.msra.mxu0 0.0
        %346 = vmatpush.msra.mxu0 0.0
        %347 = vmatpush.msra.mxu0 0.0
        %348 = vmatpush.msra.mxu0 0.0
        %349 = vmatpush.msra.mxu0 0.0
        %350 = vmatpush.msra.mxu0 0.0
        %351 = vmatpush.msra.mxu0 0.0
        %352 = vmatpush.msra.mxu0 0.0
        %353 = vmatpush.msra.mxu0 0.0
        %354 = vmatpush.msra.mxu0 0.0
        %355 = vmatpush.msra.mxu0 %v338
        %356 = vmatpush.msra.mxu0 %v304
        %357 = vmatpush.msra.mxu0 %v302
        %358 = vmatpush.msra.mxu0 %v300
        %359 = vmatmul.f32.gmra.mxu0 %v328
        %v360 = vpop.f32.mrf.mxu0
        %v361 = vadd.f32 %v314, %v360
        %362 = vmatmul.f32.gmra.mxu0 %v331
        %v363 = vpop.f32.mrf.mxu0
        %v364 = vadd.f32 %v319, %v363
        %365 = vmatmul.f32.gmra.mxu0 %v334
        %v366 = vpop.f32.mrf.mxu0
        %v367 = vadd.f32 %v324, %v366
        %368 = vdwg.mxu0
        %369 = vmatpush.msra.mxu0 0.0
        %370 = vmatpush.msra.mxu0 0.0
        %371 = vmatpush.msra.mxu0 0.0
        %372 = vmatpush.msra.mxu0 0.0
        %373 = vmatpush.msra.mxu0 0.0
        %374 = vmatpush.msra.mxu0 0.0
        %375 = vmatpush.msra.mxu0 0.0
        %376 = vmatpush.msra.mxu0 0.0
        %377 = vmatpush.msra.mxu0 0.0
        %378 = vmatpush.msra.mxu0 0.0
        %379 = vmatpush.msra.mxu0 0.0
        %380 = vmatpush.msra.mxu0 0.0
        %381 = vmatpush.msra.mxu0 %v341
        %382 = vmatpush.msra.mxu0 %v305
        %383 = vmatpush.msra.mxu0 %v303
        %384 = vmatpush.msra.mxu0 %v301
        %385 = vmatmul.f32.gmra.mxu0 %v328
        %v386 = vpop.f32.mrf.mxu0
        %v387 = vadd.f32 %v314, %v386
        %388 = vmatmul.f32.gmra.mxu0 %v331
        %v389 = vpop.f32.mrf.mxu0
        %v390 = vadd.f32 %v319, %v389
        %391 = vmatmul.f32.gmra.mxu0 %v334
        %v392 = vpop.f32.mrf.mxu0
        %v393 = vadd.f32 %v324, %v392
        %394 = vdwg.mxu0
        %v395 = vld [vmem:[%s6] sm:$0xff]
        %v396 = vld [vmem:[%s6 + $0x8] sm:$0xff]
        %v397 = vld [vmem:[%s6 + $0x10] sm:$0x1]
        %v398 = vld [vmem:[%s6 + $0x18] sm:$0x1]
        %v399 = vadd.f32 %v395, %v361
        %v400 = vadd.f32 %v396, %v387
        %v401 = vadd.f32 %v397, %v364
        %v402 = vadd.f32 %v398, %v390
        %v403 = vld [vmem:[%s6 + $0x10] sm:$0xfe]
        %v404 = vld [vmem:[%s6 + $0x18] sm:$0xfe]
        %v405 = vld [vmem:[%s6 + $0x20] sm:$0x3]
        %v406 = vld [vmem:[%s6 + $0x28] sm:$0x3]
        %v407 = vadd.f32 %v403, %v364
        %v408 = vadd.f32 %v404, %v390
        %v409 = vadd.f32 %v405, %v367
        %v410 = vadd.f32 %v406, %v393
        %vm411 = vcmp.gt.f32.partialorder %v399, -1.0
        %vm412 = vcmp.gt.f32.partialorder %v400, -1.0
        %vm413 = vcmp.gt.f32.partialorder %v401, -1.0
        %vm414 = vcmp.gt.f32.partialorder %v402, -1.0
        %vm415 = vcmp.lt.f32.partialorder %v399, 16.0
        %vm416 = vcmp.lt.f32.partialorder %v400, 16.0
        %vm417 = vcmp.lt.f32.partialorder %v401, 16.0
        %vm418 = vcmp.lt.f32.partialorder %v402, 16.0
        %vm419 = vmand %vm411, %vm415
        %vm420 = vmand %vm412, %vm416
        %vm421 = vmand %vm413, %vm417
        %vm422 = vmand %vm414, %vm418
        %vm423 = vcmp.gt.f32.partialorder %v407, -1.0
        %vm424 = vcmp.gt.f32.partialorder %v408, -1.0
        %vm425 = vcmp.gt.f32.partialorder %v409, -1.0
        %vm426 = vcmp.gt.f32.partialorder %v410, -1.0
        %v427 = vsel %vm423, 1, 0
        %v428 = vsel %vm424, 1, 0
        %v429 = vsel %vm425, 1, 0
        %v430 = vsel %vm426, 1, 0
        %vm431 = vcmask 1046528
        %v432 = vrot.slane %v427, 1
        %v433 = vrot.slane %v429, 1
        %v434 = vsel %vm431, %v432, %v433
        %v435 = vrot.slane %v428, 1
        %v436 = vrot.slane %v430, 1
        %v437 = vsel %vm431, %v435, %v436
        %vm438 = vcmp.ne.s32.totalorder %v434, 0
        %vm439 = vcmp.ne.s32.totalorder %v437, 0
        %vm440 = vcmp.ne.s32.totalorder %v433, 0
        %vm441 = vcmp.ne.s32.totalorder %v436, 0
        %vm442 = vmand %vm419, %vm438
        %vm443 = vmand %vm420, %vm439
        %vm444 = vmand %vm421, %vm440
        %vm445 = vmand %vm422, %vm441
        %vm446 = vcmp.lt.f32.partialorder %v407, 16.0
        %vm447 = vcmp.lt.f32.partialorder %v408, 16.0
        %vm448 = vcmp.lt.f32.partialorder %v409, 16.0
        %vm449 = vcmp.lt.f32.partialorder %v410, 16.0
        %v450 = vsel %vm446, 1, 0
        %v451 = vsel %vm447, 1, 0
        %v452 = vsel %vm448, 1, 0
        %v453 = vsel %vm449, 1, 0
        %v454 = vrot.slane %v450, 1
        %v455 = vrot.slane %v452, 1
        %v456 = vsel %vm431, %v454, %v455
        %v457 = vrot.slane %v451, 1
        %v458 = vrot.slane %v453, 1
        %v459 = vsel %vm431, %v457, %v458
        %vm460 = vcmp.ne.s32.totalorder %v456, 0
        %vm461 = vcmp.ne.s32.totalorder %v459, 0
        %vm462 = vcmp.ne.s32.totalorder %v455, 0
        %vm463 = vcmp.ne.s32.totalorder %v458, 0
        %vm464 = vmand %vm442, %vm460
        %vm465 = vmand %vm443, %vm461
        %vm466 = vmand %vm444, %vm462
        %vm467 = vmand %vm445, %vm463
        %v468 = vsel %vm464, 1, 0
        %v469 = vsel %vm465, 1, 0
        %v470 = vsel %vm466, 1, 0
        %v471 = vsel %vm467, 1, 0
        %v472 = vcvt.s32.f32 %v468
        %v473 = vcvt.s32.f32 %v469
        %v474 = vcvt.s32.f32 %v470
        %v475 = vcvt.s32.f32 %v471
        %v476 = vfloor.f32 %v399
        %v477 = vfloor.f32 %v400
        %v478 = vfloor.f32 %v401
        %v479 = vfloor.f32 %v402
        %v480 = vfloor.f32 %v407
        %v481 = vfloor.f32 %v408
        %v482 = vfloor.f32 %v409
        %v483 = vfloor.f32 %v410
        %v484 = vsub.f32 %v399, %v476
        %v485 = vsub.f32 %v400, %v477
        %v486 = vsub.f32 %v401, %v478
        %v487 = vsub.f32 %v402, %v479
        %v488 = vsub.f32 %v407, %v480
        %v489 = vsub.f32 %v408, %v481
        %v490 = vsub.f32 %v409, %v482
        %v491 = vsub.f32 %v410, %v483
        %v492 = vsub.f32 1.0, %v484
        %v493 = vsub.f32 1.0, %v485
        %v494 = vsub.f32 1.0, %v486
        %v495 = vsub.f32 1.0, %v487
        %v496 = vmul.f32 %v492, %v472
        %v497 = vmul.f32 %v493, %v473
        %v498 = vmul.f32 %v494, %v474
        %v499 = vmul.f32 %v495, %v475
        %v500 = vmul.f32 %v484, %v472
        %v501 = vmul.f32 %v485, %v473
        %v502 = vmul.f32 %v486, %v474
        %v503 = vmul.f32 %v487, %v475
        %v504 = vsub.f32 1.0, %v488
        %v505 = vsub.f32 1.0, %v489
        %v506 = vsub.f32 1.0, %v490
        %v507 = vsub.f32 1.0, %v491
        %v508 = vlaneseq
        %v509 = vshrl.u32 %v508, 7
        %v510 = vadd.s32 %v509, 8
        %v511 = vcvt.s32.f32 %v509
        %v512 = vcvt.s32.f32 %v510
        %v513 = vperm.slane %v476, 0
        %v514 = vperm.slane %v477, 0
        %vm515 = vcmp.eq.f32.partialorder %v511, %v513
        %vm516 = vcmp.eq.f32.partialorder %v511, %v514
        %vm517 = vcmp.eq.f32.partialorder %v512, %v513
        %vm518 = vcmp.eq.f32.partialorder %v512, %v514
        %v519 = vperm.slane %v496, 0
        %v520 = vperm.slane %v497, 0
        %v521 = vsel %vm515, %v519, 0.0
        %v522 = vsel %vm516, %v520, 0.0
        %v523 = vsel %vm517, %v519, 0.0
        %v524 = vsel %vm518, %v520, 0.0
        %v525 = vadd.f32 %v476, 1.0
        %v526 = vadd.f32 %v477, 1.0
        %v527 = vperm.slane %v525, 0
        %v528 = vperm.slane %v526, 0
        %vm529 = vcmp.eq.f32.partialorder %v511, %v527
        %vm530 = vcmp.eq.f32.partialorder %v511, %v528
        %vm531 = vcmp.eq.f32.partialorder %v512, %v527
        %vm532 = vcmp.eq.f32.partialorder %v512, %v528
        %v533 = vperm.slane %v500, 0
        %v534 = vperm.slane %v501, 0
        %v535 = vsel %vm529, %v533, 0.0
        %v536 = vsel %vm530, %v534, 0.0
        %v537 = vsel %vm531, %v533, 0.0
        %v538 = vsel %vm532, %v534, 0.0
        %v539 = vadd.f32 %v521, %v535
        %v540 = vadd.f32 %v522, %v536
        %v541 = vadd.f32 %v523, %v537
        %v542 = vadd.f32 %v524, %v538
        %543 = vst [vmem:[#allocation3] sm:$0xff] %v539
        %544 = vst [vmem:[#allocation3 + $0x8] sm:$0xff] %v540
        %545 = vst [vmem:[#allocation3 + $0x10] sm:$0xff] %v541
        %546 = vst [vmem:[#allocation3 + $0x18] sm:$0xff] %v542
        %v547 = vperm.slane %v480, 1
        %v548 = vperm.slane %v481, 1
        %vm549 = vcmp.eq.f32.partialorder %v511, %v547
        %vm550 = vcmp.eq.f32.partialorder %v511, %v548
        %vm551 = vcmp.eq.f32.partialorder %v512, %v547
        %vm552 = vcmp.eq.f32.partialorder %v512, %v548
        %v553 = vperm.slane %v504, 1
        %v554 = vperm.slane %v505, 1
        %v555 = vsel %vm549, %v553, 0.0
        %v556 = vsel %vm550, %v554, 0.0
        %v557 = vsel %vm551, %v553, 0.0
        %v558 = vsel %vm552, %v554, 0.0
        %v559 = vadd.f32 %v480, 1.0
        %v560 = vadd.f32 %v481, 1.0
        %v561 = vperm.slane %v559, 1
        %v562 = vperm.slane %v560, 1
        %vm563 = vcmp.eq.f32.partialorder %v511, %v561
        %vm564 = vcmp.eq.f32.partialorder %v511, %v562
        %vm565 = vcmp.eq.f32.partialorder %v512, %v561
        %vm566 = vcmp.eq.f32.partialorder %v512, %v562
        %v567 = vperm.slane %v488, 1
        %v568 = vperm.slane %v489, 1
        %v569 = vsel %vm563, %v567, 0.0
        %v570 = vsel %vm564, %v568, 0.0
        %v571 = vsel %vm565, %v567, 0.0
        %v572 = vsel %vm566, %v568, 0.0
        %v573 = vadd.f32 %v555, %v569
        %v574 = vadd.f32 %v556, %v570
        %v575 = vadd.f32 %v557, %v571
        %v576 = vadd.f32 %v558, %v572
        %577 = vst [vmem:[#allocation2] sm:$0xff] %v573
        %578 = vst [vmem:[#allocation2 + $0x8] sm:$0xff] %v574
        %579 = vst [vmem:[#allocation2 + $0x90] sm:$0xff] %v575
        %580 = vst [vmem:[#allocation2 + $0x98] sm:$0xff] %v576
        %v581 = vperm.slane %v476, 1
        %v582 = vperm.slane %v477, 1
        %vm583 = vcmp.eq.f32.partialorder %v511, %v581
        %vm584 = vcmp.eq.f32.partialorder %v511, %v582
        %vm585 = vcmp.eq.f32.partialorder %v512, %v581
        %vm586 = vcmp.eq.f32.partialorder %v512, %v582
        %v587 = vperm.slane %v496, 1
        %v588 = vperm.slane %v497, 1
        %v589 = vsel %vm583, %v587, 0.0
        %v590 = vsel %vm584, %v588, 0.0
        %v591 = vsel %vm585, %v587, 0.0
        %v592 = vsel %vm586, %v588, 0.0
        %v593 = vperm.slane %v525, 1
        %v594 = vperm.slane %v526, 1
        %vm595 = vcmp.eq.f32.partialorder %v511, %v593
        %vm596 = vcmp.eq.f32.partialorder %v511, %v594
        %vm597 = vcmp.eq.f32.partialorder %v512, %v593
        %vm598 = vcmp.eq.f32.partialorder %v512, %v594
        %v599 = vperm.slane %v500, 1
        %v600 = vperm.slane %v501, 1
        %v601 = vsel %vm595, %v599, 0.0
        %v602 = vsel %vm596, %v600, 0.0
        %v603 = vsel %vm597, %v599, 0.0
        %v604 = vsel %vm598, %v600, 0.0
        %v605 = vadd.f32 %v589, %v601
        %v606 = vadd.f32 %v590, %v602
        %v607 = vadd.f32 %v591, %v603
        %v608 = vadd.f32 %v592, %v604
        %609 = vst [vmem:[#allocation3 + $0x20] sm:$0xff] %v605
        %610 = vst [vmem:[#allocation3 + $0x28] sm:$0xff] %v606
        %611 = vst [vmem:[#allocation3 + $0x30] sm:$0xff] %v607
        %612 = vst [vmem:[#allocation3 + $0x38] sm:$0xff] %v608
        %v613 = vperm.slane %v480, 2
        %v614 = vperm.slane %v481, 2
        %vm615 = vcmp.eq.f32.partialorder %v511, %v613
        %vm616 = vcmp.eq.f32.partialorder %v511, %v614
        %vm617 = vcmp.eq.f32.partialorder %v512, %v613
        %vm618 = vcmp.eq.f32.partialorder %v512, %v614
        %v619 = vperm.slane %v504, 2
        %v620 = vperm.slane %v505, 2
        %v621 = vsel %vm615, %v619, 0.0
        %v622 = vsel %vm616, %v620, 0.0
        %v623 = vsel %vm617, %v619, 0.0
        %v624 = vsel %vm618, %v620, 0.0
        %v625 = vperm.slane %v559, 2
        %v626 = vperm.slane %v560, 2
        %vm627 = vcmp.eq.f32.partialorder %v511, %v625
        %vm628 = vcmp.eq.f32.partialorder %v511, %v626
        %vm629 = vcmp.eq.f32.partialorder %v512, %v625
        %vm630 = vcmp.eq.f32.partialorder %v512, %v626
        %v631 = vperm.slane %v488, 2
        %v632 = vperm.slane %v489, 2
        %v633 = vsel %vm627, %v631, 0.0
        %v634 = vsel %vm628, %v632, 0.0
        %v635 = vsel %vm629, %v631, 0.0
        %v636 = vsel %vm630, %v632, 0.0
        %v637 = vadd.f32 %v621, %v633
        %v638 = vadd.f32 %v622, %v634
        %v639 = vadd.f32 %v623, %v635
        %v640 = vadd.f32 %v624, %v636
        %641 = vst [vmem:[#allocation2 + $0x10] sm:$0xff] %v637
        %642 = vst [vmem:[#allocation2 + $0x18] sm:$0xff] %v638
        %643 = vst [vmem:[#allocation2 + $0xa0] sm:$0xff] %v639
        %644 = vst [vmem:[#allocation2 + $0xa8] sm:$0xff] %v640
        %v645 = vperm.slane %v476, 2
        %v646 = vperm.slane %v477, 2
        %vm647 = vcmp.eq.f32.partialorder %v511, %v645
        %vm648 = vcmp.eq.f32.partialorder %v511, %v646
        %vm649 = vcmp.eq.f32.partialorder %v512, %v645
        %vm650 = vcmp.eq.f32.partialorder %v512, %v646
        %v651 = vperm.slane %v496, 2
        %v652 = vperm.slane %v497, 2
        %v653 = vsel %vm647, %v651, 0.0
        %v654 = vsel %vm648, %v652, 0.0
        %v655 = vsel %vm649, %v651, 0.0
        %v656 = vsel %vm650, %v652, 0.0
        %v657 = vperm.slane %v525, 2
        %v658 = vperm.slane %v526, 2
        %vm659 = vcmp.eq.f32.partialorder %v511, %v657
        %vm660 = vcmp.eq.f32.partialorder %v511, %v658
        %vm661 = vcmp.eq.f32.partialorder %v512, %v657
        %vm662 = vcmp.eq.f32.partialorder %v512, %v658
        %v663 = vperm.slane %v500, 2
        %v664 = vperm.slane %v501, 2
        %v665 = vsel %vm659, %v663, 0.0
        %v666 = vsel %vm660, %v664, 0.0
        %v667 = vsel %vm661, %v663, 0.0
        %v668 = vsel %vm662, %v664, 0.0
        %v669 = vadd.f32 %v653, %v665
        %v670 = vadd.f32 %v654, %v666
        %v671 = vadd.f32 %v655, %v667
        %v672 = vadd.f32 %v656, %v668
        %673 = vst [vmem:[#allocation3 + $0x40] sm:$0xff] %v669
        %674 = vst [vmem:[#allocation3 + $0x48] sm:$0xff] %v670
        %675 = vst [vmem:[#allocation3 + $0x50] sm:$0xff] %v671
        %676 = vst [vmem:[#allocation3 + $0x58] sm:$0xff] %v672
        %v677 = vperm.slane %v480, 3
        %v678 = vperm.slane %v481, 3
        %vm679 = vcmp.eq.f32.partialorder %v511, %v677
        %vm680 = vcmp.eq.f32.partialorder %v511, %v678
        %vm681 = vcmp.eq.f32.partialorder %v512, %v677
        %vm682 = vcmp.eq.f32.partialorder %v512, %v678
        %v683 = vperm.slane %v504, 3
        %v684 = vperm.slane %v505, 3
        %v685 = vsel %vm679, %v683, 0.0
        %v686 = vsel %vm680, %v684, 0.0
        %v687 = vsel %vm681, %v683, 0.0
        %v688 = vsel %vm682, %v684, 0.0
        %v689 = vperm.slane %v559, 3
        %v690 = vperm.slane %v560, 3
        %vm691 = vcmp.eq.f32.partialorder %v511, %v689
        %vm692 = vcmp.eq.f32.partialorder %v511, %v690
        %vm693 = vcmp.eq.f32.partialorder %v512, %v689
        %vm694 = vcmp.eq.f32.partialorder %v512, %v690
        %v695 = vperm.slane %v488, 3
        %v696 = vperm.slane %v489, 3
        %v697 = vsel %vm691, %v695, 0.0
        %v698 = vsel %vm692, %v696, 0.0
        %v699 = vsel %vm693, %v695, 0.0
        %v700 = vsel %vm694, %v696, 0.0
        %v701 = vadd.f32 %v685, %v697
        %v702 = vadd.f32 %v686, %v698
        %v703 = vadd.f32 %v687, %v699
        %v704 = vadd.f32 %v688, %v700
        %705 = vst [vmem:[#allocation2 + $0x20] sm:$0xff] %v701
        %706 = vst [vmem:[#allocation2 + $0x28] sm:$0xff] %v702
        %707 = vst [vmem:[#allocation2 + $0xb0] sm:$0xff] %v703
        %708 = vst [vmem:[#allocation2 + $0xb8] sm:$0xff] %v704
        %v709 = vperm.slane %v476, 3
        %v710 = vperm.slane %v477, 3
        %vm711 = vcmp.eq.f32.partialorder %v511, %v709
        %vm712 = vcmp.eq.f32.partialorder %v511, %v710
        %vm713 = vcmp.eq.f32.partialorder %v512, %v709
        %vm714 = vcmp.eq.f32.partialorder %v512, %v710
        %v715 = vperm.slane %v496, 3
        %v716 = vperm.slane %v497, 3
        %v717 = vsel %vm711, %v715, 0.0
        %v718 = vsel %vm712, %v716, 0.0
        %v719 = vsel %vm713, %v715, 0.0
        %v720 = vsel %vm714, %v716, 0.0
        %v721 = vperm.slane %v525, 3
        %v722 = vperm.slane %v526, 3
        %vm723 = vcmp.eq.f32.partialorder %v511, %v721
        %vm724 = vcmp.eq.f32.partialorder %v511, %v722
        %vm725 = vcmp.eq.f32.partialorder %v512, %v721
        %vm726 = vcmp.eq.f32.partialorder %v512, %v722
        %v727 = vperm.slane %v500, 3
        %v728 = vperm.slane %v501, 3
        %v729 = vsel %vm723, %v727, 0.0
        %v730 = vsel %vm724, %v728, 0.0
        %v731 = vsel %vm725, %v727, 0.0
        %v732 = vsel %vm726, %v728, 0.0
        %v733 = vadd.f32 %v717, %v729
        %v734 = vadd.f32 %v718, %v730
        %v735 = vadd.f32 %v719, %v731
        %v736 = vadd.f32 %v720, %v732
        %737 = vst [vmem:[#allocation3 + $0x60] sm:$0xff] %v733
        %738 = vst [vmem:[#allocation3 + $0x68] sm:$0xff] %v734
        %739 = vst [vmem:[#allocation3 + $0x70] sm:$0xff] %v735
        %740 = vst [vmem:[#allocation3 + $0x78] sm:$0xff] %v736
        %v741 = vperm.slane %v480, 4
        %v742 = vperm.slane %v481, 4
        %vm743 = vcmp.eq.f32.partialorder %v511, %v741
        %vm744 = vcmp.eq.f32.partialorder %v511, %v742
        %vm745 = vcmp.eq.f32.partialorder %v512, %v741
        %vm746 = vcmp.eq.f32.partialorder %v512, %v742
        %v747 = vperm.slane %v504, 4
        %v748 = vperm.slane %v505, 4
        %v749 = vsel %vm743, %v747, 0.0
        %v750 = vsel %vm744, %v748, 0.0
        %v751 = vsel %vm745, %v747, 0.0
        %v752 = vsel %vm746, %v748, 0.0
        %v753 = vperm.slane %v559, 4
        %v754 = vperm.slane %v560, 4
        %vm755 = vcmp.eq.f32.partialorder %v511, %v753
        %vm756 = vcmp.eq.f32.partialorder %v511, %v754
        %vm757 = vcmp.eq.f32.partialorder %v512, %v753
        %vm758 = vcmp.eq.f32.partialorder %v512, %v754
        %v759 = vperm.slane %v488, 4
        %v760 = vperm.slane %v489, 4
        %v761 = vsel %vm755, %v759, 0.0
        %v762 = vsel %vm756, %v760, 0.0
        %v763 = vsel %vm757, %v759, 0.0
        %v764 = vsel %vm758, %v760, 0.0
        %v765 = vadd.f32 %v749, %v761
        %v766 = vadd.f32 %v750, %v762
        %v767 = vadd.f32 %v751, %v763
        %v768 = vadd.f32 %v752, %v764
        %769 = vst [vmem:[#allocation2 + $0x30] sm:$0xff] %v765
        %770 = vst [vmem:[#allocation2 + $0x38] sm:$0xff] %v766
        %771 = vst [vmem:[#allocation2 + $0xc0] sm:$0xff] %v767
        %772 = vst [vmem:[#allocation2 + $0xc8] sm:$0xff] %v768
        %v773 = vperm.slane %v476, 4
        %v774 = vperm.slane %v477, 4
        %vm775 = vcmp.eq.f32.partialorder %v511, %v773
        %vm776 = vcmp.eq.f32.partialorder %v511, %v774
        %vm777 = vcmp.eq.f32.partialorder %v512, %v773
        %vm778 = vcmp.eq.f32.partialorder %v512, %v774
        %v779 = vperm.slane %v496, 4
        %v780 = vperm.slane %v497, 4
        %v781 = vsel %vm775, %v779, 0.0
        %v782 = vsel %vm776, %v780, 0.0
        %v783 = vsel %vm777, %v779, 0.0
        %v784 = vsel %vm778, %v780, 0.0
        %v785 = vperm.slane %v525, 4
        %v786 = vperm.slane %v526, 4
        %vm787 = vcmp.eq.f32.partialorder %v511, %v785
        %vm788 = vcmp.eq.f32.partialorder %v511, %v786
        %vm789 = vcmp.eq.f32.partialorder %v512, %v785
        %vm790 = vcmp.eq.f32.partialorder %v512, %v786
        %v791 = vperm.slane %v500, 4
        %v792 = vperm.slane %v501, 4
        %v793 = vsel %vm787, %v791, 0.0
        %v794 = vsel %vm788, %v792, 0.0
        %v795 = vsel %vm789, %v791, 0.0
        %v796 = vsel %vm790, %v792, 0.0
        %v797 = vadd.f32 %v781, %v793
        %v798 = vadd.f32 %v782, %v794
        %v799 = vadd.f32 %v783, %v795
        %v800 = vadd.f32 %v784, %v796
        %801 = vst [vmem:[#allocation3 + $0x80] sm:$0xff] %v797
        %802 = vst [vmem:[#allocation3 + $0x88] sm:$0xff] %v798
        %803 = vst [vmem:[#allocation3 + $0x90] sm:$0xff] %v799
        %804 = vst [vmem:[#allocation3 + $0x98] sm:$0xff] %v800
        %v805 = vperm.slane %v480, 5
        %v806 = vperm.slane %v481, 5
        %vm807 = vcmp.eq.f32.partialorder %v511, %v805
        %vm808 = vcmp.eq.f32.partialorder %v511, %v806
        %vm809 = vcmp.eq.f32.partialorder %v512, %v805
        %vm810 = vcmp.eq.f32.partialorder %v512, %v806
        %v811 = vperm.slane %v504, 5
        %v812 = vperm.slane %v505, 5
        %v813 = vsel %vm807, %v811, 0.0
        %v814 = vsel %vm808, %v812, 0.0
        %v815 = vsel %vm809, %v811, 0.0
        %v816 = vsel %vm810, %v812, 0.0
        %v817 = vperm.slane %v559, 5
        %v818 = vperm.slane %v560, 5
        %vm819 = vcmp.eq.f32.partialorder %v511, %v817
        %vm820 = vcmp.eq.f32.partialorder %v511, %v818
        %vm821 = vcmp.eq.f32.partialorder %v512, %v817
        %vm822 = vcmp.eq.f32.partialorder %v512, %v818
        %v823 = vperm.slane %v488, 5
        %v824 = vperm.slane %v489, 5
        %v825 = vsel %vm819, %v823, 0.0
        %v826 = vsel %vm820, %v824, 0.0
        %v827 = vsel %vm821, %v823, 0.0
        %v828 = vsel %vm822, %v824, 0.0
        %v829 = vadd.f32 %v813, %v825
        %v830 = vadd.f32 %v814, %v826
        %v831 = vadd.f32 %v815, %v827
        %v832 = vadd.f32 %v816, %v828
        %833 = vst [vmem:[#allocation2 + $0x40] sm:$0xff] %v829
        %834 = vst [vmem:[#allocation2 + $0x48] sm:$0xff] %v830
        %835 = vst [vmem:[#allocation2 + $0xd0] sm:$0xff] %v831
        %836 = vst [vmem:[#allocation2 + $0xd8] sm:$0xff] %v832
        %v837 = vperm.slane %v476, 5
        %v838 = vperm.slane %v477, 5
        %vm839 = vcmp.eq.f32.partialorder %v511, %v837
        %vm840 = vcmp.eq.f32.partialorder %v511, %v838
        %vm841 = vcmp.eq.f32.partialorder %v512, %v837
        %vm842 = vcmp.eq.f32.partialorder %v512, %v838
        %v843 = vperm.slane %v496, 5
        %v844 = vperm.slane %v497, 5
        %v845 = vsel %vm839, %v843, 0.0
        %v846 = vsel %vm840, %v844, 0.0
        %v847 = vsel %vm841, %v843, 0.0
        %v848 = vsel %vm842, %v844, 0.0
        %v849 = vperm.slane %v525, 5
        %v850 = vperm.slane %v526, 5
        %vm851 = vcmp.eq.f32.partialorder %v511, %v849
        %vm852 = vcmp.eq.f32.partialorder %v511, %v850
        %vm853 = vcmp.eq.f32.partialorder %v512, %v849
        %vm854 = vcmp.eq.f32.partialorder %v512, %v850
        %v855 = vperm.slane %v500, 5
        %v856 = vperm.slane %v501, 5
        %v857 = vsel %vm851, %v855, 0.0
        %v858 = vsel %vm852, %v856, 0.0
        %v859 = vsel %vm853, %v855, 0.0
        %v860 = vsel %vm854, %v856, 0.0
        %v861 = vadd.f32 %v845, %v857
        %v862 = vadd.f32 %v846, %v858
        %v863 = vadd.f32 %v847, %v859
        %v864 = vadd.f32 %v848, %v860
        %865 = vst [vmem:[#allocation3 + $0xa0] sm:$0xff] %v861
        %866 = vst [vmem:[#allocation3 + $0xa8] sm:$0xff] %v862
        %867 = vst [vmem:[#allocation3 + $0xb0] sm:$0xff] %v863
        %868 = vst [vmem:[#allocation3 + $0xb8] sm:$0xff] %v864
        %v869 = vperm.slane %v480, 6
        %v870 = vperm.slane %v481, 6
        %vm871 = vcmp.eq.f32.partialorder %v511, %v869
        %vm872 = vcmp.eq.f32.partialorder %v511, %v870
        %vm873 = vcmp.eq.f32.partialorder %v512, %v869
        %vm874 = vcmp.eq.f32.partialorder %v512, %v870
        %v875 = vperm.slane %v504, 6
        %v876 = vperm.slane %v505, 6
        %v877 = vsel %vm871, %v875, 0.0
        %v878 = vsel %vm872, %v876, 0.0
        %v879 = vsel %vm873, %v875, 0.0
        %v880 = vsel %vm874, %v876, 0.0
        %v881 = vperm.slane %v559, 6
        %v882 = vperm.slane %v560, 6
        %vm883 = vcmp.eq.f32.partialorder %v511, %v881
        %vm884 = vcmp.eq.f32.partialorder %v511, %v882
        %vm885 = vcmp.eq.f32.partialorder %v512, %v881
        %vm886 = vcmp.eq.f32.partialorder %v512, %v882
        %v887 = vperm.slane %v488, 6
        %v888 = vperm.slane %v489, 6
        %v889 = vsel %vm883, %v887, 0.0
        %v890 = vsel %vm884, %v888, 0.0
        %v891 = vsel %vm885, %v887, 0.0
        %v892 = vsel %vm886, %v888, 0.0
        %v893 = vadd.f32 %v877, %v889
        %v894 = vadd.f32 %v878, %v890
        %v895 = vadd.f32 %v879, %v891
        %v896 = vadd.f32 %v880, %v892
        %897 = vst [vmem:[#allocation2 + $0x50] sm:$0xff] %v893
        %898 = vst [vmem:[#allocation2 + $0x58] sm:$0xff] %v894
        %899 = vst [vmem:[#allocation2 + $0xe0] sm:$0xff] %v895
        %900 = vst [vmem:[#allocation2 + $0xe8] sm:$0xff] %v896
        %v901 = vperm.slane %v476, 6
        %v902 = vperm.slane %v477, 6
        %vm903 = vcmp.eq.f32.partialorder %v511, %v901
        %vm904 = vcmp.eq.f32.partialorder %v511, %v902
        %vm905 = vcmp.eq.f32.partialorder %v512, %v901
        %vm906 = vcmp.eq.f32.partialorder %v512, %v902
        %v907 = vperm.slane %v496, 6
        %v908 = vperm.slane %v497, 6
        %v909 = vsel %vm903, %v907, 0.0
        %v910 = vsel %vm904, %v908, 0.0
        %v911 = vsel %vm905, %v907, 0.0
        %v912 = vsel %vm906, %v908, 0.0
        %v913 = vperm.slane %v525, 6
        %v914 = vperm.slane %v526, 6
        %vm915 = vcmp.eq.f32.partialorder %v511, %v913
        %vm916 = vcmp.eq.f32.partialorder %v511, %v914
        %vm917 = vcmp.eq.f32.partialorder %v512, %v913
        %vm918 = vcmp.eq.f32.partialorder %v512, %v914
        %v919 = vperm.slane %v500, 6
        %v920 = vperm.slane %v501, 6
        %v921 = vsel %vm915, %v919, 0.0
        %v922 = vsel %vm916, %v920, 0.0
        %v923 = vsel %vm917, %v919, 0.0
        %v924 = vsel %vm918, %v920, 0.0
        %v925 = vadd.f32 %v909, %v921
        %v926 = vadd.f32 %v910, %v922
        %v927 = vadd.f32 %v911, %v923
        %v928 = vadd.f32 %v912, %v924
        %929 = vst [vmem:[#allocation3 + $0xc0] sm:$0xff] %v925
        %930 = vst [vmem:[#allocation3 + $0xc8] sm:$0xff] %v926
        %931 = vst [vmem:[#allocation3 + $0xd0] sm:$0xff] %v927
        %932 = vst [vmem:[#allocation3 + $0xd8] sm:$0xff] %v928
        %v933 = vperm.slane %v480, 7
        %v934 = vperm.slane %v481, 7
        %vm935 = vcmp.eq.f32.partialorder %v511, %v933
        %vm936 = vcmp.eq.f32.partialorder %v511, %v934
        %vm937 = vcmp.eq.f32.partialorder %v512, %v933
        %vm938 = vcmp.eq.f32.partialorder %v512, %v934
        %v939 = vperm.slane %v504, 7
        %v940 = vperm.slane %v505, 7
        %v941 = vsel %vm935, %v939, 0.0
        %v942 = vsel %vm936, %v940, 0.0
        %v943 = vsel %vm937, %v939, 0.0
        %v944 = vsel %vm938, %v940, 0.0
        %v945 = vperm.slane %v559, 7
        %v946 = vperm.slane %v560, 7
        %vm947 = vcmp.eq.f32.partialorder %v511, %v945
        %vm948 = vcmp.eq.f32.partialorder %v511, %v946
        %vm949 = vcmp.eq.f32.partialorder %v512, %v945
        %vm950 = vcmp.eq.f32.partialorder %v512, %v946
        %v951 = vperm.slane %v488, 7
        %v952 = vperm.slane %v489, 7
        %v953 = vsel %vm947, %v951, 0.0
        %v954 = vsel %vm948, %v952, 0.0
        %v955 = vsel %vm949, %v951, 0.0
        %v956 = vsel %vm950, %v952, 0.0
        %v957 = vadd.f32 %v941, %v953
        %v958 = vadd.f32 %v942, %v954
        %v959 = vadd.f32 %v943, %v955
        %v960 = vadd.f32 %v944, %v956
        %961 = vst [vmem:[#allocation2 + $0x60] sm:$0xff] %v957
        %962 = vst [vmem:[#allocation2 + $0x68] sm:$0xff] %v958
        %963 = vst [vmem:[#allocation2 + $0xf0] sm:$0xff] %v959
        %964 = vst [vmem:[#allocation2 + $0xf8] sm:$0xff] %v960
        %v965 = vperm.slane %v476, 7
        %v966 = vperm.slane %v477, 7
        %vm967 = vcmp.eq.f32.partialorder %v511, %v965
        %vm968 = vcmp.eq.f32.partialorder %v511, %v966
        %vm969 = vcmp.eq.f32.partialorder %v512, %v965
        %vm970 = vcmp.eq.f32.partialorder %v512, %v966
        %v971 = vperm.slane %v496, 7
        %v972 = vperm.slane %v497, 7
        %v973 = vsel %vm967, %v971, 0.0
        %v974 = vsel %vm968, %v972, 0.0
        %v975 = vsel %vm969, %v971, 0.0
        %v976 = vsel %vm970, %v972, 0.0
        %v977 = vperm.slane %v525, 7
        %v978 = vperm.slane %v526, 7
        %vm979 = vcmp.eq.f32.partialorder %v511, %v977
        %vm980 = vcmp.eq.f32.partialorder %v511, %v978
        %vm981 = vcmp.eq.f32.partialorder %v512, %v977
        %vm982 = vcmp.eq.f32.partialorder %v512, %v978
        %v983 = vperm.slane %v500, 7
        %v984 = vperm.slane %v501, 7
        %v985 = vsel %vm979, %v983, 0.0
        %v986 = vsel %vm980, %v984, 0.0
        %v987 = vsel %vm981, %v983, 0.0
        %v988 = vsel %vm982, %v984, 0.0
        %v989 = vadd.f32 %v973, %v985
        %v990 = vadd.f32 %v974, %v986
        %v991 = vadd.f32 %v975, %v987
        %v992 = vadd.f32 %v976, %v988
        %993 = vst [vmem:[#allocation3 + $0xe0] sm:$0xff] %v989
        %994 = vst [vmem:[#allocation3 + $0xe8] sm:$0xff] %v990
        %995 = vst [vmem:[#allocation3 + $0xf0] sm:$0xff] %v991
        %996 = vst [vmem:[#allocation3 + $0xf8] sm:$0xff] %v992
        %v997 = vperm.slane %v482, 0
        %v998 = vperm.slane %v483, 0
        %vm999 = vcmp.eq.f32.partialorder %v511, %v997
        %vm1000 = vcmp.eq.f32.partialorder %v511, %v998
        %vm1001 = vcmp.eq.f32.partialorder %v512, %v997
        %vm1002 = vcmp.eq.f32.partialorder %v512, %v998
        %v1003 = vperm.slane %v506, 0
        %v1004 = vperm.slane %v507, 0
        %v1005 = vsel %vm999, %v1003, 0.0
        %v1006 = vsel %vm1000, %v1004, 0.0
        %v1007 = vsel %vm1001, %v1003, 0.0
        %v1008 = vsel %vm1002, %v1004, 0.0
        %v1009 = vadd.f32 %v482, 1.0
        %v1010 = vadd.f32 %v483, 1.0
        %v1011 = vperm.slane %v1009, 0
        %v1012 = vperm.slane %v1010, 0
        %vm1013 = vcmp.eq.f32.partialorder %v511, %v1011
        %vm1014 = vcmp.eq.f32.partialorder %v511, %v1012
        %vm1015 = vcmp.eq.f32.partialorder %v512, %v1011
        %vm1016 = vcmp.eq.f32.partialorder %v512, %v1012
        %v1017 = vperm.slane %v490, 0
        %v1018 = vperm.slane %v491, 0
        %v1019 = vsel %vm1013, %v1017, 0.0
        %v1020 = vsel %vm1014, %v1018, 0.0
        %v1021 = vsel %vm1015, %v1017, 0.0
        %v1022 = vsel %vm1016, %v1018, 0.0
        %v1023 = vadd.f32 %v1005, %v1019
        %v1024 = vadd.f32 %v1006, %v1020
        %v1025 = vadd.f32 %v1007, %v1021
        %v1026 = vadd.f32 %v1008, %v1022
        %1027 = vst [vmem:[#allocation2 + $0x70] sm:$0xff] %v1023
        %1028 = vst [vmem:[#allocation2 + $0x78] sm:$0xff] %v1024
        %1029 = vst [vmem:[#allocation2 + $0x100] sm:$0xff] %v1025
        %1030 = vst [vmem:[#allocation2 + $0x108] sm:$0xff] %v1026
        %v1031 = vperm.slane %v478, 0
        %v1032 = vperm.slane %v479, 0
        %vm1033 = vcmp.eq.f32.partialorder %v511, %v1031
        %vm1034 = vcmp.eq.f32.partialorder %v511, %v1032
        %vm1035 = vcmp.eq.f32.partialorder %v512, %v1031
        %vm1036 = vcmp.eq.f32.partialorder %v512, %v1032
        %v1037 = vperm.slane %v498, 0
        %v1038 = vperm.slane %v499, 0
        %v1039 = vsel %vm1033, %v1037, 0.0
        %v1040 = vsel %vm1034, %v1038, 0.0
        %v1041 = vsel %vm1035, %v1037, 0.0
        %v1042 = vsel %vm1036, %v1038, 0.0
        %v1043 = vadd.f32 %v478, 1.0
        %v1044 = vadd.f32 %v479, 1.0
        %v1045 = vperm.slane %v1043, 0
        %v1046 = vperm.slane %v1044, 0
        %vm1047 = vcmp.eq.f32.partialorder %v511, %v1045
        %vm1048 = vcmp.eq.f32.partialorder %v511, %v1046
        %vm1049 = vcmp.eq.f32.partialorder %v512, %v1045
        %vm1050 = vcmp.eq.f32.partialorder %v512, %v1046
        %v1051 = vperm.slane %v502, 0
        %v1052 = vperm.slane %v503, 0
        %v1053 = vsel %vm1047, %v1051, 0.0
        %v1054 = vsel %vm1048, %v1052, 0.0
        %v1055 = vsel %vm1049, %v1051, 0.0
        %v1056 = vsel %vm1050, %v1052, 0.0
        %v1057 = vadd.f32 %v1039, %v1053
        %v1058 = vadd.f32 %v1040, %v1054
        %v1059 = vadd.f32 %v1041, %v1055
        %v1060 = vadd.f32 %v1042, %v1056
        %1061 = vst [vmem:[#allocation3 + $0x100] sm:$0xff] %v1057
        %1062 = vst [vmem:[#allocation3 + $0x108] sm:$0xff] %v1058
        %1063 = vst [vmem:[#allocation3 + $0x110] sm:$0xff] %v1059
        %1064 = vst [vmem:[#allocation3 + $0x118] sm:$0xff] %v1060
        %v1065 = vperm.slane %v482, 1
        %v1066 = vperm.slane %v483, 1
        %vm1067 = vcmp.eq.f32.partialorder %v511, %v1065
        %vm1068 = vcmp.eq.f32.partialorder %v511, %v1066
        %vm1069 = vcmp.eq.f32.partialorder %v512, %v1065
        %vm1070 = vcmp.eq.f32.partialorder %v512, %v1066
        %v1071 = vperm.slane %v506, 1
        %v1072 = vperm.slane %v507, 1
        %v1073 = vsel %vm1067, %v1071, 0.0
        %v1074 = vsel %vm1068, %v1072, 0.0
        %v1075 = vsel %vm1069, %v1071, 0.0
        %v1076 = vsel %vm1070, %v1072, 0.0
        %v1077 = vperm.slane %v1009, 1
        %v1078 = vperm.slane %v1010, 1
        %vm1079 = vcmp.eq.f32.partialorder %v511, %v1077
        %vm1080 = vcmp.eq.f32.partialorder %v511, %v1078
        %vm1081 = vcmp.eq.f32.partialorder %v512, %v1077
        %vm1082 = vcmp.eq.f32.partialorder %v512, %v1078
        %v1083 = vperm.slane %v490, 1
        %v1084 = vperm.slane %v491, 1
        %v1085 = vsel %vm1079, %v1083, 0.0
        %v1086 = vsel %vm1080, %v1084, 0.0
        %v1087 = vsel %vm1081, %v1083, 0.0
        %v1088 = vsel %vm1082, %v1084, 0.0
        %v1089 = vadd.f32 %v1073, %v1085
        %v1090 = vadd.f32 %v1074, %v1086
        %v1091 = vadd.f32 %v1075, %v1087
        %v1092 = vadd.f32 %v1076, %v1088
        %1093 = vst [vmem:[#allocation2 + $0x80] sm:$0xff] %v1089
        %1094 = vst [vmem:[#allocation2 + $0x88] sm:$0xff] %v1090
        %1095 = vst [vmem:[#allocation2 + $0x110] sm:$0xff] %v1091
        %1096 = vst [vmem:[#allocation2 + $0x118] sm:$0xff] %v1092
        %v1097 = vld [vmem:[%s296] sm:$0xff]
        %v1098 = vld [vmem:[%s296 + $0x8] sm:$0xff]
        %v1099 = vld [vmem:[%s296 + $0x10] sm:$0xff]
        %v1100 = vld [vmem:[%s296 + $0x18] sm:$0xff]
        %v1101 = vld [vmem:[%s296 + $0x20] sm:$0xff]
        %v1102 = vld [vmem:[%s296 + $0x28] sm:$0xff]
        %v1103 = vld [vmem:[#allocation2] sm:$0xff]
        %v1104 = vld [vmem:[#allocation2 + $0x8] sm:$0xff]
        %v1105 = vld [vmem:[#allocation2 + $0x10] sm:$0xff]
        %v1106 = vld [vmem:[#allocation2 + $0x18] sm:$0xff]
        %v1107 = vld [vmem:[#allocation2 + $0x20] sm:$0xff]
        %v1108 = vld [vmem:[#allocation2 + $0x28] sm:$0xff]
        %v1109 = vld [vmem:[#allocation2 + $0x30] sm:$0xff]
        %v1110 = vld [vmem:[#allocation2 + $0x38] sm:$0xff]
        %v1111 = vld [vmem:[#allocation2 + $0x40] sm:$0xff]
        %v1112 = vld [vmem:[#allocation2 + $0x48] sm:$0xff]
        %v1113 = vld [vmem:[#allocation2 + $0x50] sm:$0xff]
        %v1114 = vld [vmem:[#allocation2 + $0x58] sm:$0xff]
        %v1115 = vld [vmem:[#allocation2 + $0x60] sm:$0xff]
        %v1116 = vld [vmem:[#allocation2 + $0x68] sm:$0xff]
        %v1117 = vld [vmem:[#allocation2 + $0x70] sm:$0xff]
        %v1118 = vld [vmem:[#allocation2 + $0x78] sm:$0xff]
        %v1119 = vld [vmem:[#allocation2 + $0x80] sm:$0xff]
        %v1120 = vld [vmem:[#allocation2 + $0x88] sm:$0xff]
        %v1121 = vld [vmem:[#allocation2 + $0x90] sm:$0xff]
        %v1122 = vld [vmem:[#allocation2 + $0x98] sm:$0xff]
        %v1123 = vld [vmem:[#allocation2 + $0xa0] sm:$0xff]
        %v1124 = vld [vmem:[#allocation2 + $0xa8] sm:$0xff]
        %v1125 = vld [vmem:[#allocation2 + $0xb0] sm:$0xff]
        %v1126 = vld [vmem:[#allocation2 + $0xb8] sm:$0xff]
        %v1127 = vld [vmem:[#allocation2 + $0xc0] sm:$0xff]
        %v1128 = vld [vmem:[#allocation2 + $0xc8] sm:$0xff]
        %v1129 = vld [vmem:[#allocation2 + $0xd0] sm:$0xff]
        %v1130 = vld [vmem:[#allocation2 + $0xd8] sm:$0xff]
        %v1131 = vld [vmem:[#allocation2 + $0xe0] sm:$0xff]
        %v1132 = vld [vmem:[#allocation2 + $0xe8] sm:$0xff]
        %v1133 = vld [vmem:[#allocation2 + $0xf0] sm:$0xff]
        %v1134 = vld [vmem:[#allocation2 + $0xf8] sm:$0xff]
        %v1135 = vld [vmem:[#allocation2 + $0x100] sm:$0xff]
        %v1136 = vld [vmem:[#allocation2 + $0x108] sm:$0xff]
        %v1137 = vld [vmem:[#allocation2 + $0x110] sm:$0xff]
        %v1138 = vld [vmem:[#allocation2 + $0x118] sm:$0xff]
        %vm1139 = vcmask 130048
        %v1141 = vsel %vm1139, %v1097, 0
        %v1144 = vsel %vm1139, %v1098, 0
        %v1147 = vsel %vm1139, %v1099, 0
        %v1150 = vsel %vm1139, %v1100, 0
        %v1153 = vsel %vm1139, %v1101, 0
        %v1156 = vsel %vm1139, %v1102, 0
        %1158 = vmatpush.msra.mxu0 0.0
        %1159 = vmatpush.msra.mxu0 0.0
        %1160 = vmatpush.msra.mxu0 0.0
        %1161 = vmatpush.msra.mxu0 0.0
        %1162 = vmatpush.msra.mxu0 0.0
        %1163 = vmatpush.msra.mxu0 0.0
        %1164 = vmatpush.msra.mxu0 0.0
        %1165 = vmatpush.msra.mxu0 0.0
        %1166 = vmatpush.msra.mxu0 0.0
        %1167 = vmatpush.msra.mxu0 0.0
        %1168 = vmatpush.msra.mxu0 0.0
        %1169 = vmatpush.msra.mxu0 0.0
        %1170 = vmatpush.msra.mxu0 0.0
        %1171 = vmatpush.msra.mxu0 0.0
        %1172 = vmatpush.msra.mxu0 %v1121
        %1173 = vmatpush.msra.mxu0 %v1103
        %1174 = vmatmul.f32.gmra.mxu0 %v1141
        %v1175 = vpop.f32.mrf.mxu0
        %v1176 = vadd.f32 0.0, %v1175
        %1177 = vmatmul.f32.gmra.mxu0 %v1144
        %v1178 = vpop.f32.mrf.mxu0
        %v1179 = vadd.f32 0.0, %v1178
        %1180 = vmatmul.f32.gmra.mxu0 %v1147
        %v1181 = vpop.f32.mrf.mxu0
        %v1182 = vadd.f32 0.0, %v1181
        %1183 = vmatmul.f32.gmra.mxu0 %v1150
        %v1184 = vpop.f32.mrf.mxu0
        %v1185 = vadd.f32 0.0, %v1184
        %1186 = vmatmul.f32.gmra.mxu0 %v1153
        %v1187 = vpop.f32.mrf.mxu0
        %v1188 = vadd.f32 0.0, %v1187
        %1189 = vmatmul.f32.gmra.mxu0 %v1156
        %v1190 = vpop.f32.mrf.mxu0
        %v1191 = vadd.f32 0.0, %v1190
        %1192 = vdwg.mxu0
        %1193 = vmatpush.msra.mxu0 0.0
        %1194 = vmatpush.msra.mxu0 0.0
        %1195 = vmatpush.msra.mxu0 0.0
        %1196 = vmatpush.msra.mxu0 0.0
        %1197 = vmatpush.msra.mxu0 0.0
        %1198 = vmatpush.msra.mxu0 0.0
        %1199 = vmatpush.msra.mxu0 0.0
        %1200 = vmatpush.msra.mxu0 0.0
        %1201 = vmatpush.msra.mxu0 0.0
        %1202 = vmatpush.msra.mxu0 0.0
        %1203 = vmatpush.msra.mxu0 0.0
        %1204 = vmatpush.msra.mxu0 0.0
        %1205 = vmatpush.msra.mxu0 0.0
        %1206 = vmatpush.msra.mxu0 0.0
        %1207 = vmatpush.msra.mxu0 %v1122
        %1208 = vmatpush.msra.mxu0 %v1104
        %1209 = vmatmul.f32.gmra.mxu0 %v1141
        %v1210 = vpop.f32.mrf.mxu0
        %v1211 = vadd.f32 0.0, %v1210
        %1212 = vmatmul.f32.gmra.mxu0 %v1144
        %v1213 = vpop.f32.mrf.mxu0
        %v1214 = vadd.f32 0.0, %v1213
        %1215 = vmatmul.f32.gmra.mxu0 %v1147
        %v1216 = vpop.f32.mrf.mxu0
        %v1217 = vadd.f32 0.0, %v1216
        %1218 = vmatmul.f32.gmra.mxu0 %v1150
        %v1219 = vpop.f32.mrf.mxu0
        %v1220 = vadd.f32 0.0, %v1219
        %1221 = vmatmul.f32.gmra.mxu0 %v1153
        %v1222 = vpop.f32.mrf.mxu0
        %v1223 = vadd.f32 0.0, %v1222
        %1224 = vmatmul.f32.gmra.mxu0 %v1156
        %v1225 = vpop.f32.mrf.mxu0
        %v1226 = vadd.f32 0.0, %v1225
        %1227 = vdwg.mxu0
        %1228 = vmatpush.msra.mxu0 0.0
        %1229 = vmatpush.msra.mxu0 0.0
        %1230 = vmatpush.msra.mxu0 0.0
        %1231 = vmatpush.msra.mxu0 0.0
        %1232 = vmatpush.msra.mxu0 0.0
        %1233 = vmatpush.msra.mxu0 0.0
        %1234 = vmatpush.msra.mxu0 0.0
        %1235 = vmatpush.msra.mxu0 0.0
        %1236 = vmatpush.msra.mxu0 0.0
        %1237 = vmatpush.msra.mxu0 0.0
        %1238 = vmatpush.msra.mxu0 0.0
        %1239 = vmatpush.msra.mxu0 0.0
        %1240 = vmatpush.msra.mxu0 0.0
        %1241 = vmatpush.msra.mxu0 0.0
        %1242 = vmatpush.msra.mxu0 %v1123
        %1243 = vmatpush.msra.mxu0 %v1105
        %1244 = vmatmul.f32.gmra.mxu0 %v1141
        %v1245 = vpop.f32.mrf.mxu0
        %v1246 = vadd.f32 0.0, %v1245
        %1247 = vmatmul.f32.gmra.mxu0 %v1144
        %v1248 = vpop.f32.mrf.mxu0
        %v1249 = vadd.f32 0.0, %v1248
        %1250 = vmatmul.f32.gmra.mxu0 %v1147
        %v1251 = vpop.f32.mrf.mxu0
        %v1252 = vadd.f32 0.0, %v1251
        %1253 = vmatmul.f32.gmra.mxu0 %v1150
        %v1254 = vpop.f32.mrf.mxu0
        %v1255 = vadd.f32 0.0, %v1254
        %1256 = vmatmul.f32.gmra.mxu0 %v1153
        %v1257 = vpop.f32.mrf.mxu0
        %v1258 = vadd.f32 0.0, %v1257
        %1259 = vmatmul.f32.gmra.mxu0 %v1156
        %v1260 = vpop.f32.mrf.mxu0
        %v1261 = vadd.f32 0.0, %v1260
        %1262 = vdwg.mxu0
        %1263 = vmatpush.msra.mxu0 0.0
        %1264 = vmatpush.msra.mxu0 0.0
        %1265 = vmatpush.msra.mxu0 0.0
        %1266 = vmatpush.msra.mxu0 0.0
        %1267 = vmatpush.msra.mxu0 0.0
        %1268 = vmatpush.msra.mxu0 0.0
        %1269 = vmatpush.msra.mxu0 0.0
        %1270 = vmatpush.msra.mxu0 0.0
        %1271 = vmatpush.msra.mxu0 0.0
        %1272 = vmatpush.msra.mxu0 0.0
        %1273 = vmatpush.msra.mxu0 0.0
        %1274 = vmatpush.msra.mxu0 0.0
        %1275 = vmatpush.msra.mxu0 0.0
        %1276 = vmatpush.msra.mxu0 0.0
        %1277 = vmatpush.msra.mxu0 %v1124
        %1278 = vmatpush.msra.mxu0 %v1106
        %1279 = vmatmul.f32.gmra.mxu0 %v1141
        %v1280 = vpop.f32.mrf.mxu0
        %v1281 = vadd.f32 0.0, %v1280
        %1282 = vmatmul.f32.gmra.mxu0 %v1144
        %v1283 = vpop.f32.mrf.mxu0
        %v1284 = vadd.f32 0.0, %v1283
        %1285 = vmatmul.f32.gmra.mxu0 %v1147
        %v1286 = vpop.f32.mrf.mxu0
        %v1287 = vadd.f32 0.0, %v1286
        %1288 = vmatmul.f32.gmra.mxu0 %v1150
        %v1289 = vpop.f32.mrf.mxu0
        %v1290 = vadd.f32 0.0, %v1289
        %1291 = vmatmul.f32.gmra.mxu0 %v1153
        %v1292 = vpop.f32.mrf.mxu0
        %v1293 = vadd.f32 0.0, %v1292
        %1294 = vmatmul.f32.gmra.mxu0 %v1156
        %v1295 = vpop.f32.mrf.mxu0
        %v1296 = vadd.f32 0.0, %v1295
        %1297 = vdwg.mxu0
        %1298 = vmatpush.msra.mxu0 0.0
        %1299 = vmatpush.msra.mxu0 0.0
        %1300 = vmatpush.msra.mxu0 0.0
        %1301 = vmatpush.msra.mxu0 0.0
        %1302 = vmatpush.msra.mxu0 0.0
        %1303 = vmatpush.msra.mxu0 0.0
        %1304 = vmatpush.msra.mxu0 0.0
        %1305 = vmatpush.msra.mxu0 0.0
        %1306 = vmatpush.msra.mxu0 0.0
        %1307 = vmatpush.msra.mxu0 0.0
        %1308 = vmatpush.msra.mxu0 0.0
        %1309 = vmatpush.msra.mxu0 0.0
        %1310 = vmatpush.msra.mxu0 0.0
        %1311 = vmatpush.msra.mxu0 0.0
        %1312 = vmatpush.msra.mxu0 %v1125
        %1313 = vmatpush.msra.mxu0 %v1107
        %1314 = vmatmul.f32.gmra.mxu0 %v1141
        %v1315 = vpop.f32.mrf.mxu0
        %v1316 = vadd.f32 0.0, %v1315
        %1317 = vmatmul.f32.gmra.mxu0 %v1144
        %v1318 = vpop.f32.mrf.mxu0
        %v1319 = vadd.f32 0.0, %v1318
        %1320 = vmatmul.f32.gmra.mxu0 %v1147
        %v1321 = vpop.f32.mrf.mxu0
        %v1322 = vadd.f32 0.0, %v1321
        %1323 = vmatmul.f32.gmra.mxu0 %v1150
        %v1324 = vpop.f32.mrf.mxu0
        %v1325 = vadd.f32 0.0, %v1324
        %1326 = vmatmul.f32.gmra.mxu0 %v1153
        %v1327 = vpop.f32.mrf.mxu0
        %v1328 = vadd.f32 0.0, %v1327
        %1329 = vmatmul.f32.gmra.mxu0 %v1156
        %v1330 = vpop.f32.mrf.mxu0
        %v1331 = vadd.f32 0.0, %v1330
        %1332 = vdwg.mxu0
        %1333 = vmatpush.msra.mxu0 0.0
        %1334 = vmatpush.msra.mxu0 0.0
        %1335 = vmatpush.msra.mxu0 0.0
        %1336 = vmatpush.msra.mxu0 0.0
        %1337 = vmatpush.msra.mxu0 0.0
        %1338 = vmatpush.msra.mxu0 0.0
        %1339 = vmatpush.msra.mxu0 0.0
        %1340 = vmatpush.msra.mxu0 0.0
        %1341 = vmatpush.msra.mxu0 0.0
        %1342 = vmatpush.msra.mxu0 0.0
        %1343 = vmatpush.msra.mxu0 0.0
        %1344 = vmatpush.msra.mxu0 0.0
        %1345 = vmatpush.msra.mxu0 0.0
        %1346 = vmatpush.msra.mxu0 0.0
        %1347 = vmatpush.msra.mxu0 %v1126
        %1348 = vmatpush.msra.mxu0 %v1108
        %1349 = vmatmul.f32.gmra.mxu0 %v1141
        %v1350 = vpop.f32.mrf.mxu0
        %v1351 = vadd.f32 0.0, %v1350
        %1352 = vmatmul.f32.gmra.mxu0 %v1144
        %v1353 = vpop.f32.mrf.mxu0
        %v1354 = vadd.f32 0.0, %v1353
        %1355 = vmatmul.f32.gmra.mxu0 %v1147
        %v1356 = vpop.f32.mrf.mxu0
        %v1357 = vadd.f32 0.0, %v1356
        %1358 = vmatmul.f32.gmra.mxu0 %v1150
        %v1359 = vpop.f32.mrf.mxu0
        %v1360 = vadd.f32 0.0, %v1359
        %1361 = vmatmul.f32.gmra.mxu0 %v1153
        %v1362 = vpop.f32.mrf.mxu0
        %v1363 = vadd.f32 0.0, %v1362
        %1364 = vmatmul.f32.gmra.mxu0 %v1156
        %v1365 = vpop.f32.mrf.mxu0
        %v1366 = vadd.f32 0.0, %v1365
        %1367 = vdwg.mxu0
        %1368 = vmatpush.msra.mxu0 0.0
        %1369 = vmatpush.msra.mxu0 0.0
        %1370 = vmatpush.msra.mxu0 0.0
        %1371 = vmatpush.msra.mxu0 0.0
        %1372 = vmatpush.msra.mxu0 0.0
        %1373 = vmatpush.msra.mxu0 0.0
        %1374 = vmatpush.msra.mxu0 0.0
        %1375 = vmatpush.msra.mxu0 0.0
        %1376 = vmatpush.msra.mxu0 0.0
        %1377 = vmatpush.msra.mxu0 0.0
        %1378 = vmatpush.msra.mxu0 0.0
        %1379 = vmatpush.msra.mxu0 0.0
        %1380 = vmatpush.msra.mxu0 0.0
        %1381 = vmatpush.msra.mxu0 0.0
        %1382 = vmatpush.msra.mxu0 %v1127
        %1383 = vmatpush.msra.mxu0 %v1109
        %1384 = vmatmul.f32.gmra.mxu0 %v1141
        %v1385 = vpop.f32.mrf.mxu0
        %v1386 = vadd.f32 0.0, %v1385
        %1387 = vmatmul.f32.gmra.mxu0 %v1144
        %v1388 = vpop.f32.mrf.mxu0
        %v1389 = vadd.f32 0.0, %v1388
        %1390 = vmatmul.f32.gmra.mxu0 %v1147
        %v1391 = vpop.f32.mrf.mxu0
        %v1392 = vadd.f32 0.0, %v1391
        %1393 = vmatmul.f32.gmra.mxu0 %v1150
        %v1394 = vpop.f32.mrf.mxu0
        %v1395 = vadd.f32 0.0, %v1394
        %1396 = vmatmul.f32.gmra.mxu0 %v1153
        %v1397 = vpop.f32.mrf.mxu0
        %v1398 = vadd.f32 0.0, %v1397
        %1399 = vmatmul.f32.gmra.mxu0 %v1156
        %v1400 = vpop.f32.mrf.mxu0
        %v1401 = vadd.f32 0.0, %v1400
        %1402 = vdwg.mxu0
        %1403 = vmatpush.msra.mxu0 0.0
        %1404 = vmatpush.msra.mxu0 0.0
        %1405 = vmatpush.msra.mxu0 0.0
        %1406 = vmatpush.msra.mxu0 0.0
        %1407 = vmatpush.msra.mxu0 0.0
        %1408 = vmatpush.msra.mxu0 0.0
        %1409 = vmatpush.msra.mxu0 0.0
        %1410 = vmatpush.msra.mxu0 0.0
        %1411 = vmatpush.msra.mxu0 0.0
        %1412 = vmatpush.msra.mxu0 0.0
        %1413 = vmatpush.msra.mxu0 0.0
        %1414 = vmatpush.msra.mxu0 0.0
        %1415 = vmatpush.msra.mxu0 0.0
        %1416 = vmatpush.msra.mxu0 0.0
        %1417 = vmatpush.msra.mxu0 %v1128
        %1418 = vmatpush.msra.mxu0 %v1110
        %1419 = vmatmul.f32.gmra.mxu0 %v1141
        %v1420 = vpop.f32.mrf.mxu0
        %v1421 = vadd.f32 0.0, %v1420
        %1422 = vmatmul.f32.gmra.mxu0 %v1144
        %v1423 = vpop.f32.mrf.mxu0
        %v1424 = vadd.f32 0.0, %v1423
        %1425 = vmatmul.f32.gmra.mxu0 %v1147
        %v1426 = vpop.f32.mrf.mxu0
        %v1427 = vadd.f32 0.0, %v1426
        %1428 = vmatmul.f32.gmra.mxu0 %v1150
        %v1429 = vpop.f32.mrf.mxu0
        %v1430 = vadd.f32 0.0, %v1429
        %1431 = vmatmul.f32.gmra.mxu0 %v1153
        %v1432 = vpop.f32.mrf.mxu0
        %v1433 = vadd.f32 0.0, %v1432
        %1434 = vmatmul.f32.gmra.mxu0 %v1156
        %v1435 = vpop.f32.mrf.mxu0
        %v1436 = vadd.f32 0.0, %v1435
        %1437 = vdwg.mxu0
        %1438 = vmatpush.msra.mxu0 0.0
        %1439 = vmatpush.msra.mxu0 0.0
        %1440 = vmatpush.msra.mxu0 0.0
        %1441 = vmatpush.msra.mxu0 0.0
        %1442 = vmatpush.msra.mxu0 0.0
        %1443 = vmatpush.msra.mxu0 0.0
        %1444 = vmatpush.msra.mxu0 0.0
        %1445 = vmatpush.msra.mxu0 0.0
        %1446 = vmatpush.msra.mxu0 0.0
        %1447 = vmatpush.msra.mxu0 0.0
        %1448 = vmatpush.msra.mxu0 0.0
        %1449 = vmatpush.msra.mxu0 0.0
        %1450 = vmatpush.msra.mxu0 0.0
        %1451 = vmatpush.msra.mxu0 0.0
        %1452 = vmatpush.msra.mxu0 %v1129
        %1453 = vmatpush.msra.mxu0 %v1111
        %1454 = vmatmul.f32.gmra.mxu0 %v1141
        %v1455 = vpop.f32.mrf.mxu0
        %v1456 = vadd.f32 0.0, %v1455
        %1457 = vmatmul.f32.gmra.mxu0 %v1144
        %v1458 = vpop.f32.mrf.mxu0
        %v1459 = vadd.f32 0.0, %v1458
        %1460 = vmatmul.f32.gmra.mxu0 %v1147
        %v1461 = vpop.f32.mrf.mxu0
        %v1462 = vadd.f32 0.0, %v1461
        %1463 = vmatmul.f32.gmra.mxu0 %v1150
        %v1464 = vpop.f32.mrf.mxu0
        %v1465 = vadd.f32 0.0, %v1464
        %1466 = vmatmul.f32.gmra.mxu0 %v1153
        %v1467 = vpop.f32.mrf.mxu0
        %v1468 = vadd.f32 0.0, %v1467
        %1469 = vmatmul.f32.gmra.mxu0 %v1156
        %v1470 = vpop.f32.mrf.mxu0
        %v1471 = vadd.f32 0.0, %v1470
        %1472 = vdwg.mxu0
        %1473 = vmatpush.msra.mxu0 0.0
        %1474 = vmatpush.msra.mxu0 0.0
        %1475 = vmatpush.msra.mxu0 0.0
        %1476 = vmatpush.msra.mxu0 0.0
        %1477 = vmatpush.msra.mxu0 0.0
        %1478 = vmatpush.msra.mxu0 0.0
        %1479 = vmatpush.msra.mxu0 0.0
        %1480 = vmatpush.msra.mxu0 0.0
        %1481 = vmatpush.msra.mxu0 0.0
        %1482 = vmatpush.msra.mxu0 0.0
        %1483 = vmatpush.msra.mxu0 0.0
        %1484 = vmatpush.msra.mxu0 0.0
        %1485 = vmatpush.msra.mxu0 0.0
        %1486 = vmatpush.msra.mxu0 0.0
        %1487 = vmatpush.msra.mxu0 %v1130
        %1488 = vmatpush.msra.mxu0 %v1112
        %1489 = vmatmul.f32.gmra.mxu0 %v1141
        %v1490 = vpop.f32.mrf.mxu0
        %v1491 = vadd.f32 0.0, %v1490
        %1492 = vmatmul.f32.gmra.mxu0 %v1144
        %v1493 = vpop.f32.mrf.mxu0
        %v1494 = vadd.f32 0.0, %v1493
        %1495 = vmatmul.f32.gmra.mxu0 %v1147
        %v1496 = vpop.f32.mrf.mxu0
        %v1497 = vadd.f32 0.0, %v1496
        %1498 = vmatmul.f32.gmra.mxu0 %v1150
        %v1499 = vpop.f32.mrf.mxu0
        %v1500 = vadd.f32 0.0, %v1499
        %1501 = vmatmul.f32.gmra.mxu0 %v1153
        %v1502 = vpop.f32.mrf.mxu0
        %v1503 = vadd.f32 0.0, %v1502
        %1504 = vmatmul.f32.gmra.mxu0 %v1156
        %v1505 = vpop.f32.mrf.mxu0
        %v1506 = vadd.f32 0.0, %v1505
        %1507 = vdwg.mxu0
        %1508 = vmatpush.msra.mxu0 0.0
        %1509 = vmatpush.msra.mxu0 0.0
        %1510 = vmatpush.msra.mxu0 0.0
        %1511 = vmatpush.msra.mxu0 0.0
        %1512 = vmatpush.msra.mxu0 0.0
        %1513 = vmatpush.msra.mxu0 0.0
        %1514 = vmatpush.msra.mxu0 0.0
        %1515 = vmatpush.msra.mxu0 0.0
        %1516 = vmatpush.msra.mxu0 0.0
        %1517 = vmatpush.msra.mxu0 0.0
        %1518 = vmatpush.msra.mxu0 0.0
        %1519 = vmatpush.msra.mxu0 0.0
        %1520 = vmatpush.msra.mxu0 0.0
        %1521 = vmatpush.msra.mxu0 0.0
        %1522 = vmatpush.msra.mxu0 %v1131
        %1523 = vmatpush.msra.mxu0 %v1113
        %1524 = vmatmul.f32.gmra.mxu0 %v1141
        %v1525 = vpop.f32.mrf.mxu0
        %v1526 = vadd.f32 0.0, %v1525
        %1527 = vmatmul.f32.gmra.mxu0 %v1144
        %v1528 = vpop.f32.mrf.mxu0
        %v1529 = vadd.f32 0.0, %v1528
        %1530 = vmatmul.f32.gmra.mxu0 %v1147
        %v1531 = vpop.f32.mrf.mxu0
        %v1532 = vadd.f32 0.0, %v1531
        %1533 = vmatmul.f32.gmra.mxu0 %v1150
        %v1534 = vpop.f32.mrf.mxu0
        %v1535 = vadd.f32 0.0, %v1534
        %1536 = vmatmul.f32.gmra.mxu0 %v1153
        %v1537 = vpop.f32.mrf.mxu0
        %v1538 = vadd.f32 0.0, %v1537
        %1539 = vmatmul.f32.gmra.mxu0 %v1156
        %v1540 = vpop.f32.mrf.mxu0
        %v1541 = vadd.f32 0.0, %v1540
        %1542 = vdwg.mxu0
        %1543 = vmatpush.msra.mxu0 0.0
        %1544 = vmatpush.msra.mxu0 0.0
        %1545 = vmatpush.msra.mxu0 0.0
        %1546 = vmatpush.msra.mxu0 0.0
        %1547 = vmatpush.msra.mxu0 0.0
        %1548 = vmatpush.msra.mxu0 0.0
        %1549 = vmatpush.msra.mxu0 0.0
        %1550 = vmatpush.msra.mxu0 0.0
        %1551 = vmatpush.msra.mxu0 0.0
        %1552 = vmatpush.msra.mxu0 0.0
        %1553 = vmatpush.msra.mxu0 0.0
        %1554 = vmatpush.msra.mxu0 0.0
        %1555 = vmatpush.msra.mxu0 0.0
        %1556 = vmatpush.msra.mxu0 0.0
        %1557 = vmatpush.msra.mxu0 %v1132
        %1558 = vmatpush.msra.mxu0 %v1114
        %1559 = vmatmul.f32.gmra.mxu0 %v1141
        %v1560 = vpop.f32.mrf.mxu0
        %v1561 = vadd.f32 0.0, %v1560
        %1562 = vmatmul.f32.gmra.mxu0 %v1144
        %v1563 = vpop.f32.mrf.mxu0
        %v1564 = vadd.f32 0.0, %v1563
        %1565 = vmatmul.f32.gmra.mxu0 %v1147
        %v1566 = vpop.f32.mrf.mxu0
        %v1567 = vadd.f32 0.0, %v1566
        %1568 = vmatmul.f32.gmra.mxu0 %v1150
        %v1569 = vpop.f32.mrf.mxu0
        %v1570 = vadd.f32 0.0, %v1569
        %1571 = vmatmul.f32.gmra.mxu0 %v1153
        %v1572 = vpop.f32.mrf.mxu0
        %v1573 = vadd.f32 0.0, %v1572
        %1574 = vmatmul.f32.gmra.mxu0 %v1156
        %v1575 = vpop.f32.mrf.mxu0
        %v1576 = vadd.f32 0.0, %v1575
        %1577 = vdwg.mxu0
        %1578 = vmatpush.msra.mxu0 0.0
        %1579 = vmatpush.msra.mxu0 0.0
        %1580 = vmatpush.msra.mxu0 0.0
        %1581 = vmatpush.msra.mxu0 0.0
        %1582 = vmatpush.msra.mxu0 0.0
        %1583 = vmatpush.msra.mxu0 0.0
        %1584 = vmatpush.msra.mxu0 0.0
        %1585 = vmatpush.msra.mxu0 0.0
        %1586 = vmatpush.msra.mxu0 0.0
        %1587 = vmatpush.msra.mxu0 0.0
        %1588 = vmatpush.msra.mxu0 0.0
        %1589 = vmatpush.msra.mxu0 0.0
        %1590 = vmatpush.msra.mxu0 0.0
        %1591 = vmatpush.msra.mxu0 0.0
        %1592 = vmatpush.msra.mxu0 %v1133
        %1593 = vmatpush.msra.mxu0 %v1115
        %1594 = vmatmul.f32.gmra.mxu0 %v1141
        %v1595 = vpop.f32.mrf.mxu0
        %v1596 = vadd.f32 0.0, %v1595
        %1597 = vmatmul.f32.gmra.mxu0 %v1144
        %v1598 = vpop.f32.mrf.mxu0
        %v1599 = vadd.f32 0.0, %v1598
        %1600 = vmatmul.f32.gmra.mxu0 %v1147
        %v1601 = vpop.f32.mrf.mxu0
        %v1602 = vadd.f32 0.0, %v1601
        %1603 = vmatmul.f32.gmra.mxu0 %v1150
        %v1604 = vpop.f32.mrf.mxu0
        %v1605 = vadd.f32 0.0, %v1604
        %1606 = vmatmul.f32.gmra.mxu0 %v1153
        %v1607 = vpop.f32.mrf.mxu0
        %v1608 = vadd.f32 0.0, %v1607
        %1609 = vmatmul.f32.gmra.mxu0 %v1156
        %v1610 = vpop.f32.mrf.mxu0
        %v1611 = vadd.f32 0.0, %v1610
        %1612 = vdwg.mxu0
        %1613 = vmatpush.msra.mxu0 0.0
        %1614 = vmatpush.msra.mxu0 0.0
        %1615 = vmatpush.msra.mxu0 0.0
        %1616 = vmatpush.msra.mxu0 0.0
        %1617 = vmatpush.msra.mxu0 0.0
        %1618 = vmatpush.msra.mxu0 0.0
        %1619 = vmatpush.msra.mxu0 0.0
        %1620 = vmatpush.msra.mxu0 0.0
        %1621 = vmatpush.msra.mxu0 0.0
        %1622 = vmatpush.msra.mxu0 0.0
        %1623 = vmatpush.msra.mxu0 0.0
        %1624 = vmatpush.msra.mxu0 0.0
        %1625 = vmatpush.msra.mxu0 0.0
        %1626 = vmatpush.msra.mxu0 0.0
        %1627 = vmatpush.msra.mxu0 %v1134
        %1628 = vmatpush.msra.mxu0 %v1116
        %1629 = vmatmul.f32.gmra.mxu0 %v1141
        %v1630 = vpop.f32.mrf.mxu0
        %v1631 = vadd.f32 0.0, %v1630
        %1632 = vmatmul.f32.gmra.mxu0 %v1144
        %v1633 = vpop.f32.mrf.mxu0
        %v1634 = vadd.f32 0.0, %v1633
        %1635 = vmatmul.f32.gmra.mxu0 %v1147
        %v1636 = vpop.f32.mrf.mxu0
        %v1637 = vadd.f32 0.0, %v1636
        %1638 = vmatmul.f32.gmra.mxu0 %v1150
        %v1639 = vpop.f32.mrf.mxu0
        %v1640 = vadd.f32 0.0, %v1639
        %1641 = vmatmul.f32.gmra.mxu0 %v1153
        %v1642 = vpop.f32.mrf.mxu0
        %v1643 = vadd.f32 0.0, %v1642
        %1644 = vmatmul.f32.gmra.mxu0 %v1156
        %v1645 = vpop.f32.mrf.mxu0
        %v1646 = vadd.f32 0.0, %v1645
        %1647 = vdwg.mxu0
        %1648 = vmatpush.msra.mxu0 0.0
        %1649 = vmatpush.msra.mxu0 0.0
        %1650 = vmatpush.msra.mxu0 0.0
        %1651 = vmatpush.msra.mxu0 0.0
        %1652 = vmatpush.msra.mxu0 0.0
        %1653 = vmatpush.msra.mxu0 0.0
        %1654 = vmatpush.msra.mxu0 0.0
        %1655 = vmatpush.msra.mxu0 0.0
        %1656 = vmatpush.msra.mxu0 0.0
        %1657 = vmatpush.msra.mxu0 0.0
        %1658 = vmatpush.msra.mxu0 0.0
        %1659 = vmatpush.msra.mxu0 0.0
        %1660 = vmatpush.msra.mxu0 0.0
        %1661 = vmatpush.msra.mxu0 0.0
        %1662 = vmatpush.msra.mxu0 %v1135
        %1663 = vmatpush.msra.mxu0 %v1117
        %1664 = vmatmul.f32.gmra.mxu0 %v1141
        %v1665 = vpop.f32.mrf.mxu0
        %v1666 = vadd.f32 0.0, %v1665
        %1667 = vmatmul.f32.gmra.mxu0 %v1144
        %v1668 = vpop.f32.mrf.mxu0
        %v1669 = vadd.f32 0.0, %v1668
        %1670 = vmatmul.f32.gmra.mxu0 %v1147
        %v1671 = vpop.f32.mrf.mxu0
        %v1672 = vadd.f32 0.0, %v1671
        %1673 = vmatmul.f32.gmra.mxu0 %v1150
        %v1674 = vpop.f32.mrf.mxu0
        %v1675 = vadd.f32 0.0, %v1674
        %1676 = vmatmul.f32.gmra.mxu0 %v1153
        %v1677 = vpop.f32.mrf.mxu0
        %v1678 = vadd.f32 0.0, %v1677
        %1679 = vmatmul.f32.gmra.mxu0 %v1156
        %v1680 = vpop.f32.mrf.mxu0
        %v1681 = vadd.f32 0.0, %v1680
        %1682 = vdwg.mxu0
        %1683 = vmatpush.msra.mxu0 0.0
        %1684 = vmatpush.msra.mxu0 0.0
        %1685 = vmatpush.msra.mxu0 0.0
        %1686 = vmatpush.msra.mxu0 0.0
        %1687 = vmatpush.msra.mxu0 0.0
        %1688 = vmatpush.msra.mxu0 0.0
        %1689 = vmatpush.msra.mxu0 0.0
        %1690 = vmatpush.msra.mxu0 0.0
        %1691 = vmatpush.msra.mxu0 0.0
        %1692 = vmatpush.msra.mxu0 0.0
        %1693 = vmatpush.msra.mxu0 0.0
        %1694 = vmatpush.msra.mxu0 0.0
        %1695 = vmatpush.msra.mxu0 0.0
        %1696 = vmatpush.msra.mxu0 0.0
        %1697 = vmatpush.msra.mxu0 %v1136
        %1698 = vmatpush.msra.mxu0 %v1118
        %1699 = vmatmul.f32.gmra.mxu0 %v1141
        %v1700 = vpop.f32.mrf.mxu0
        %v1701 = vadd.f32 0.0, %v1700
        %1702 = vmatmul.f32.gmra.mxu0 %v1144
        %v1703 = vpop.f32.mrf.mxu0
        %v1704 = vadd.f32 0.0, %v1703
        %1705 = vmatmul.f32.gmra.mxu0 %v1147
        %v1706 = vpop.f32.mrf.mxu0
        %v1707 = vadd.f32 0.0, %v1706
        %1708 = vmatmul.f32.gmra.mxu0 %v1150
        %v1709 = vpop.f32.mrf.mxu0
        %v1710 = vadd.f32 0.0, %v1709
        %1711 = vmatmul.f32.gmra.mxu0 %v1153
        %v1712 = vpop.f32.mrf.mxu0
        %v1713 = vadd.f32 0.0, %v1712
        %1714 = vmatmul.f32.gmra.mxu0 %v1156
        %v1715 = vpop.f32.mrf.mxu0
        %v1716 = vadd.f32 0.0, %v1715
        %1717 = vdwg.mxu0
        %1718 = vmatpush.msra.mxu0 0.0
        %1719 = vmatpush.msra.mxu0 0.0
        %1720 = vmatpush.msra.mxu0 0.0
        %1721 = vmatpush.msra.mxu0 0.0
        %1722 = vmatpush.msra.mxu0 0.0
        %1723 = vmatpush.msra.mxu0 0.0
        %1724 = vmatpush.msra.mxu0 0.0
        %1725 = vmatpush.msra.mxu0 0.0
        %1726 = vmatpush.msra.mxu0 0.0
        %1727 = vmatpush.msra.mxu0 0.0
        %1728 = vmatpush.msra.mxu0 0.0
        %1729 = vmatpush.msra.mxu0 0.0
        %1730 = vmatpush.msra.mxu0 0.0
        %1731 = vmatpush.msra.mxu0 0.0
        %1732 = vmatpush.msra.mxu0 %v1137
        %1733 = vmatpush.msra.mxu0 %v1119
        %1734 = vmatmul.f32.gmra.mxu0 %v1141
        %v1735 = vpop.f32.mrf.mxu0
        %v1736 = vadd.f32 0.0, %v1735
        %1737 = vmatmul.f32.gmra.mxu0 %v1144
        %v1738 = vpop.f32.mrf.mxu0
        %v1739 = vadd.f32 0.0, %v1738
        %1740 = vmatmul.f32.gmra.mxu0 %v1147
        %v1741 = vpop.f32.mrf.mxu0
        %v1742 = vadd.f32 0.0, %v1741
        %1743 = vmatmul.f32.gmra.mxu0 %v1150
        %v1744 = vpop.f32.mrf.mxu0
        %v1745 = vadd.f32 0.0, %v1744
        %1746 = vmatmul.f32.gmra.mxu0 %v1153
        %v1747 = vpop.f32.mrf.mxu0
        %v1748 = vadd.f32 0.0, %v1747
        %1749 = vmatmul.f32.gmra.mxu0 %v1156
        %v1750 = vpop.f32.mrf.mxu0
        %v1751 = vadd.f32 0.0, %v1750
        %1752 = vdwg.mxu0
        %1753 = vmatpush.msra.mxu0 0.0
        %1754 = vmatpush.msra.mxu0 0.0
        %1755 = vmatpush.msra.mxu0 0.0
        %1756 = vmatpush.msra.mxu0 0.0
        %1757 = vmatpush.msra.mxu0 0.0
        %1758 = vmatpush.msra.mxu0 0.0
        %1759 = vmatpush.msra.mxu0 0.0
        %1760 = vmatpush.msra.mxu0 0.0
        %1761 = vmatpush.msra.mxu0 0.0
        %1762 = vmatpush.msra.mxu0 0.0
        %1763 = vmatpush.msra.mxu0 0.0
        %1764 = vmatpush.msra.mxu0 0.0
        %1765 = vmatpush.msra.mxu0 0.0
        %1766 = vmatpush.msra.mxu0 0.0
        %1767 = vmatpush.msra.mxu0 %v1138
        %1768 = vmatpush.msra.mxu0 %v1120
        %1769 = vmatmul.f32.gmra.mxu0 %v1141
        %v1770 = vpop.f32.mrf.mxu0
        %v1771 = vadd.f32 0.0, %v1770
        %1772 = vmatmul.f32.gmra.mxu0 %v1144
        %v1773 = vpop.f32.mrf.mxu0
        %v1774 = vadd.f32 0.0, %v1773
        %1775 = vmatmul.f32.gmra.mxu0 %v1147
        %v1776 = vpop.f32.mrf.mxu0
        %v1777 = vadd.f32 0.0, %v1776
        %1778 = vmatmul.f32.gmra.mxu0 %v1150
        %v1779 = vpop.f32.mrf.mxu0
        %v1780 = vadd.f32 0.0, %v1779
        %1781 = vmatmul.f32.gmra.mxu0 %v1153
        %v1782 = vpop.f32.mrf.mxu0
        %v1783 = vadd.f32 0.0, %v1782
        %1784 = vmatmul.f32.gmra.mxu0 %v1156
        %v1785 = vpop.f32.mrf.mxu0
        %v1786 = vadd.f32 0.0, %v1785
        %1787 = vdwg.mxu0
        %1788 = vst [vmem:[#allocation4] sm:$0xff] %v1176
        %1789 = vst [vmem:[#allocation4 + $0x8] sm:$0xff] %v1211
        %1790 = vst [vmem:[#allocation4 + $0x10] sm:$0xff] %v1246
        %1791 = vst [vmem:[#allocation4 + $0x18] sm:$0xff] %v1281
        %1792 = vst [vmem:[#allocation4 + $0x20] sm:$0xff] %v1316
        %1793 = vst [vmem:[#allocation4 + $0x28] sm:$0xff] %v1351
        %1794 = vst [vmem:[#allocation4 + $0x30] sm:$0xff] %v1386
        %1795 = vst [vmem:[#allocation4 + $0x38] sm:$0xff] %v1421
        %1796 = vst [vmem:[#allocation4 + $0x40] sm:$0xff] %v1456
        %1797 = vst [vmem:[#allocation4 + $0x48] sm:$0xff] %v1491
        %1798 = vst [vmem:[#allocation4 + $0x50] sm:$0xff] %v1526
        %1799 = vst [vmem:[#allocation4 + $0x58] sm:$0xff] %v1561
        %1800 = vst [vmem:[#allocation4 + $0x60] sm:$0xff] %v1596
        %1801 = vst [vmem:[#allocation4 + $0x68] sm:$0xff] %v1631
        %1802 = vst [vmem:[#allocation4 + $0x70] sm:$0xff] %v1666
        %1803 = vst [vmem:[#allocation4 + $0x78] sm:$0xff] %v1701
        %1804 = vst [vmem:[#allocation4 + $0x80] sm:$0xff] %v1736
        %1805 = vst [vmem:[#allocation4 + $0x88] sm:$0xff] %v1771
        %1806 = vst [vmem:[#allocation4 + $0x90] sm:$0xff] %v1179
        %1807 = vst [vmem:[#allocation4 + $0x98] sm:$0xff] %v1214
        %1808 = vst [vmem:[#allocation4 + $0xa0] sm:$0xff] %v1249
        %1809 = vst [vmem:[#allocation4 + $0xa8] sm:$0xff] %v1284
        %1810 = vst [vmem:[#allocation4 + $0xb0] sm:$0xff] %v1319
        %1811 = vst [vmem:[#allocation4 + $0xb8] sm:$0xff] %v1354
        %1812 = vst [vmem:[#allocation4 + $0xc0] sm:$0xff] %v1389
        %1813 = vst [vmem:[#allocation4 + $0xc8] sm:$0xff] %v1424
        %1814 = vst [vmem:[#allocation4 + $0xd0] sm:$0xff] %v1459
        %1815 = vst [vmem:[#allocation4 + $0xd8] sm:$0xff] %v1494
        %1816 = vst [vmem:[#allocation4 + $0xe0] sm:$0xff] %v1529
        %1817 = vst [vmem:[#allocation4 + $0xe8] sm:$0xff] %v1564
        %1818 = vst [vmem:[#allocation4 + $0xf0] sm:$0xff] %v1599
        %1819 = vst [vmem:[#allocation4 + $0xf8] sm:$0xff] %v1634
        %1820 = vst [vmem:[#allocation4 + $0x100] sm:$0xff] %v1669
        %1821 = vst [vmem:[#allocation4 + $0x108] sm:$0xff] %v1704
        %1822 = vst [vmem:[#allocation4 + $0x110] sm:$0xff] %v1739
        %1823 = vst [vmem:[#allocation4 + $0x118] sm:$0xff] %v1774
        %1824 = vst [vmem:[#allocation4 + $0x120] sm:$0xff] %v1182
        %1825 = vst [vmem:[#allocation4 + $0x128] sm:$0xff] %v1217
        %1826 = vst [vmem:[#allocation4 + $0x130] sm:$0xff] %v1252
        %1827 = vst [vmem:[#allocation4 + $0x138] sm:$0xff] %v1287
        %1828 = vst [vmem:[#allocation4 + $0x140] sm:$0xff] %v1322
        %1829 = vst [vmem:[#allocation4 + $0x148] sm:$0xff] %v1357
        %1830 = vst [vmem:[#allocation4 + $0x150] sm:$0xff] %v1392
        %1831 = vst [vmem:[#allocation4 + $0x158] sm:$0xff] %v1427
        %1832 = vst [vmem:[#allocation4 + $0x160] sm:$0xff] %v1462
        %1833 = vst [vmem:[#allocation4 + $0x168] sm:$0xff] %v1497
        %1834 = vst [vmem:[#allocation4 + $0x170] sm:$0xff] %v1532
        %1835 = vst [vmem:[#allocation4 + $0x178] sm:$0xff] %v1567
        %1836 = vst [vmem:[#allocation4 + $0x180] sm:$0xff] %v1602
        %1837 = vst [vmem:[#allocation4 + $0x188] sm:$0xff] %v1637
        %1838 = vst [vmem:[#allocation4 + $0x190] sm:$0xff] %v1672
        %1839 = vst [vmem:[#allocation4 + $0x198] sm:$0xff] %v1707
        %1840 = vst [vmem:[#allocation4 + $0x1a0] sm:$0xff] %v1742
        %1841 = vst [vmem:[#allocation4 + $0x1a8] sm:$0xff] %v1777
        %1842 = vst [vmem:[#allocation4 + $0x1b0] sm:$0xff] %v1185
        %1843 = vst [vmem:[#allocation4 + $0x1b8] sm:$0xff] %v1220
        %1844 = vst [vmem:[#allocation4 + $0x1c0] sm:$0xff] %v1255
        %1845 = vst [vmem:[#allocation4 + $0x1c8] sm:$0xff] %v1290
        %1846 = vst [vmem:[#allocation4 + $0x1d0] sm:$0xff] %v1325
        %1847 = vst [vmem:[#allocation4 + $0x1d8] sm:$0xff] %v1360
        %1848 = vst [vmem:[#allocation4 + $0x1e0] sm:$0xff] %v1395
        %1849 = vst [vmem:[#allocation4 + $0x1e8] sm:$0xff] %v1430
        %1850 = vst [vmem:[#allocation4 + $0x1f0] sm:$0xff] %v1465
        %1851 = vst [vmem:[#allocation4 + $0x1f8] sm:$0xff] %v1500
        %1852 = vst [vmem:[#allocation4 + $0x200] sm:$0xff] %v1535
        %1853 = vst [vmem:[#allocation4 + $0x208] sm:$0xff] %v1570
        %1854 = vst [vmem:[#allocation4 + $0x210] sm:$0xff] %v1605
        %1855 = vst [vmem:[#allocation4 + $0x218] sm:$0xff] %v1640
        %1856 = vst [vmem:[#allocation4 + $0x220] sm:$0xff] %v1675
        %1857 = vst [vmem:[#allocation4 + $0x228] sm:$0xff] %v1710
        %1858 = vst [vmem:[#allocation4 + $0x230] sm:$0xff] %v1745
        %1859 = vst [vmem:[#allocation4 + $0x238] sm:$0xff] %v1780
        %1860 = vst [vmem:[#allocation4 + $0x240] sm:$0xff] %v1188
        %1861 = vst [vmem:[#allocation4 + $0x248] sm:$0xff] %v1223
        %1862 = vst [vmem:[#allocation4 + $0x250] sm:$0xff] %v1258
        %1863 = vst [vmem:[#allocation4 + $0x258] sm:$0xff] %v1293
        %1864 = vst [vmem:[#allocation4 + $0x260] sm:$0xff] %v1328
        %1865 = vst [vmem:[#allocation4 + $0x268] sm:$0xff] %v1363
        %1866 = vst [vmem:[#allocation4 + $0x270] sm:$0xff] %v1398
        %1867 = vst [vmem:[#allocation4 + $0x278] sm:$0xff] %v1433
        %1868 = vst [vmem:[#allocation4 + $0x280] sm:$0xff] %v1468
        %1869 = vst [vmem:[#allocation4 + $0x288] sm:$0xff] %v1503
        %1870 = vst [vmem:[#allocation4 + $0x290] sm:$0xff] %v1538
        %1871 = vst [vmem:[#allocation4 + $0x298] sm:$0xff] %v1573
        %1872 = vst [vmem:[#allocation4 + $0x2a0] sm:$0xff] %v1608
        %1873 = vst [vmem:[#allocation4 + $0x2a8] sm:$0xff] %v1643
        %1874 = vst [vmem:[#allocation4 + $0x2b0] sm:$0xff] %v1678
        %1875 = vst [vmem:[#allocation4 + $0x2b8] sm:$0xff] %v1713
        %1876 = vst [vmem:[#allocation4 + $0x2c0] sm:$0xff] %v1748
        %1877 = vst [vmem:[#allocation4 + $0x2c8] sm:$0xff] %v1783
        %1878 = vst [vmem:[#allocation4 + $0x2d0] sm:$0xff] %v1191
        %1879 = vst [vmem:[#allocation4 + $0x2d8] sm:$0xff] %v1226
        %1880 = vst [vmem:[#allocation4 + $0x2e0] sm:$0xff] %v1261
        %1881 = vst [vmem:[#allocation4 + $0x2e8] sm:$0xff] %v1296
        %1882 = vst [vmem:[#allocation4 + $0x2f0] sm:$0xff] %v1331
        %1883 = vst [vmem:[#allocation4 + $0x2f8] sm:$0xff] %v1366
        %1884 = vst [vmem:[#allocation4 + $0x300] sm:$0xff] %v1401
        %1885 = vst [vmem:[#allocation4 + $0x308] sm:$0xff] %v1436
        %1886 = vst [vmem:[#allocation4 + $0x310] sm:$0xff] %v1471
        %1887 = vst [vmem:[#allocation4 + $0x318] sm:$0xff] %v1506
        %1888 = vst [vmem:[#allocation4 + $0x320] sm:$0xff] %v1541
        %1889 = vst [vmem:[#allocation4 + $0x328] sm:$0xff] %v1576
        %1890 = vst [vmem:[#allocation4 + $0x330] sm:$0xff] %v1611
        %1891 = vst [vmem:[#allocation4 + $0x338] sm:$0xff] %v1646
        %1892 = vst [vmem:[#allocation4 + $0x340] sm:$0xff] %v1681
        %1893 = vst [vmem:[#allocation4 + $0x348] sm:$0xff] %v1716
        %1894 = vst [vmem:[#allocation4 + $0x350] sm:$0xff] %v1751
        %1895 = vst [vmem:[#allocation4 + $0x358] sm:$0xff] %v1786
        %v1896 = vld [vmem:[#allocation3] sm:$0xff]
        %v1897 = vld [vmem:[#allocation3 + $0x8] sm:$0xff]
        %v1898 = vld [vmem:[#allocation3 + $0x10] sm:$0xff]
        %v1899 = vld [vmem:[#allocation3 + $0x18] sm:$0xff]
        %v1900 = vld [vmem:[#allocation4] sm:$0xff]
        %v1901 = vld [vmem:[#allocation4 + $0x8] sm:$0xff]
        %v1902 = vld [vmem:[#allocation4 + $0x90] sm:$0xff]
        %v1903 = vld [vmem:[#allocation4 + $0x98] sm:$0xff]
        %v1904 = vmul.f32 %v1900, %v1896
        %v1905 = vmul.f32 %v1901, %v1897
        %v1906 = vmul.f32 %v1902, %v1898
        %v1907 = vmul.f32 %v1903, %v1899
        %1908 = vst [vmem:[#allocation5] sm:$0xff] %v1904
        %1909 = vst [vmem:[#allocation5 + $0x8] sm:$0xff] %v1905
        %1910 = vst [vmem:[#allocation5 + $0x10] sm:$0xff] %v1906
        %1911 = vst [vmem:[#allocation5 + $0x18] sm:$0xff] %v1907
        %v1912 = vld [vmem:[#allocation4 + $0x120] sm:$0xff]
        %v1913 = vld [vmem:[#allocation4 + $0x128] sm:$0xff]
        %v1914 = vld [vmem:[#allocation4 + $0x1b0] sm:$0xff]
        %v1915 = vld [vmem:[#allocation4 + $0x1b8] sm:$0xff]
        %v1916 = vmul.f32 %v1912, %v1896
        %v1917 = vmul.f32 %v1913, %v1897
        %v1918 = vmul.f32 %v1914, %v1898
        %v1919 = vmul.f32 %v1915, %v1899
        %1920 = vst [vmem:[#allocation5 + $0x20] sm:$0xff] %v1916
        %1921 = vst [vmem:[#allocation5 + $0x28] sm:$0xff] %v1917
        %1922 = vst [vmem:[#allocation5 + $0x30] sm:$0xff] %v1918
        %1923 = vst [vmem:[#allocation5 + $0x38] sm:$0xff] %v1919
        %v1924 = vld [vmem:[#allocation4 + $0x240] sm:$0xff]
        %v1925 = vld [vmem:[#allocation4 + $0x248] sm:$0xff]
        %v1926 = vld [vmem:[#allocation4 + $0x2d0] sm:$0xff]
        %v1927 = vld [vmem:[#allocation4 + $0x2d8] sm:$0xff]
        %v1928 = vmul.f32 %v1924, %v1896
        %v1929 = vmul.f32 %v1925, %v1897
        %v1930 = vmul.f32 %v1926, %v1898
        %v1931 = vmul.f32 %v1927, %v1899
        %1932 = vst [vmem:[#allocation5 + $0x40] sm:$0xff] %v1928
        %1933 = vst [vmem:[#allocation5 + $0x48] sm:$0xff] %v1929
        %1934 = vst [vmem:[#allocation5 + $0x50] sm:$0xff] %v1930
        %1935 = vst [vmem:[#allocation5 + $0x58] sm:$0xff] %v1931
        %v1936 = vld [vmem:[#allocation3 + $0x20] sm:$0xff]
        %v1937 = vld [vmem:[#allocation3 + $0x28] sm:$0xff]
        %v1938 = vld [vmem:[#allocation3 + $0x30] sm:$0xff]
        %v1939 = vld [vmem:[#allocation3 + $0x38] sm:$0xff]
        %v1940 = vld [vmem:[#allocation4 + $0x10] sm:$0xff]
        %v1941 = vld [vmem:[#allocation4 + $0x18] sm:$0xff]
        %v1942 = vld [vmem:[#allocation4 + $0xa0] sm:$0xff]
        %v1943 = vld [vmem:[#allocation4 + $0xa8] sm:$0xff]
        %v1944 = vmul.f32 %v1940, %v1936
        %v1945 = vmul.f32 %v1941, %v1937
        %v1946 = vmul.f32 %v1942, %v1938
        %v1947 = vmul.f32 %v1943, %v1939
        %1948 = vst [vmem:[#allocation5 + $0x60] sm:$0xff] %v1944
        %1949 = vst [vmem:[#allocation5 + $0x68] sm:$0xff] %v1945
        %1950 = vst [vmem:[#allocation5 + $0x70] sm:$0xff] %v1946
        %1951 = vst [vmem:[#allocation5 + $0x78] sm:$0xff] %v1947
        %v1952 = vld [vmem:[#allocation4 + $0x130] sm:$0xff]
        %v1953 = vld [vmem:[#allocation4 + $0x138] sm:$0xff]
        %v1954 = vld [vmem:[#allocation4 + $0x1c0] sm:$0xff]
        %v1955 = vld [vmem:[#allocation4 + $0x1c8] sm:$0xff]
        %v1956 = vmul.f32 %v1952, %v1936
        %v1957 = vmul.f32 %v1953, %v1937
        %v1958 = vmul.f32 %v1954, %v1938
        %v1959 = vmul.f32 %v1955, %v1939
        %1960 = vst [vmem:[#allocation5 + $0x80] sm:$0xff] %v1956
        %1961 = vst [vmem:[#allocation5 + $0x88] sm:$0xff] %v1957
        %1962 = vst [vmem:[#allocation5 + $0x90] sm:$0xff] %v1958
        %1963 = vst [vmem:[#allocation5 + $0x98] sm:$0xff] %v1959
        %v1964 = vld [vmem:[#allocation4 + $0x250] sm:$0xff]
        %v1965 = vld [vmem:[#allocation4 + $0x258] sm:$0xff]
        %v1966 = vld [vmem:[#allocation4 + $0x2e0] sm:$0xff]
        %v1967 = vld [vmem:[#allocation4 + $0x2e8] sm:$0xff]
        %v1968 = vmul.f32 %v1964, %v1936
        %v1969 = vmul.f32 %v1965, %v1937
        %v1970 = vmul.f32 %v1966, %v1938
        %v1971 = vmul.f32 %v1967, %v1939
        %1972 = vst [vmem:[#allocation5 + $0xa0] sm:$0xff] %v1968
        %1973 = vst [vmem:[#allocation5 + $0xa8] sm:$0xff] %v1969
        %1974 = vst [vmem:[#allocation5 + $0xb0] sm:$0xff] %v1970
        %1975 = vst [vmem:[#allocation5 + $0xb8] sm:$0xff] %v1971
        %v1976 = vld [vmem:[#allocation3 + $0x40] sm:$0xff]
        %v1977 = vld [vmem:[#allocation3 + $0x48] sm:$0xff]
        %v1978 = vld [vmem:[#allocation3 + $0x50] sm:$0xff]
        %v1979 = vld [vmem:[#allocation3 + $0x58] sm:$0xff]
        %v1980 = vld [vmem:[#allocation4 + $0x20] sm:$0xff]
        %v1981 = vld [vmem:[#allocation4 + $0x28] sm:$0xff]
        %v1982 = vld [vmem:[#allocation4 + $0xb0] sm:$0xff]
        %v1983 = vld [vmem:[#allocation4 + $0xb8] sm:$0xff]
        %v1984 = vmul.f32 %v1980, %v1976
        %v1985 = vmul.f32 %v1981, %v1977
        %v1986 = vmul.f32 %v1982, %v1978
        %v1987 = vmul.f32 %v1983, %v1979
        %1988 = vst [vmem:[#allocation5 + $0xc0] sm:$0xff] %v1984
        %1989 = vst [vmem:[#allocation5 + $0xc8] sm:$0xff] %v1985
        %1990 = vst [vmem:[#allocation5 + $0xd0] sm:$0xff] %v1986
        %1991 = vst [vmem:[#allocation5 + $0xd8] sm:$0xff] %v1987
        %v1992 = vld [vmem:[#allocation4 + $0x140] sm:$0xff]
        %v1993 = vld [vmem:[#allocation4 + $0x148] sm:$0xff]
        %v1994 = vld [vmem:[#allocation4 + $0x1d0] sm:$0xff]
        %v1995 = vld [vmem:[#allocation4 + $0x1d8] sm:$0xff]
        %v1996 = vmul.f32 %v1992, %v1976
        %v1997 = vmul.f32 %v1993, %v1977
        %v1998 = vmul.f32 %v1994, %v1978
        %v1999 = vmul.f32 %v1995, %v1979
        %2000 = vst [vmem:[#allocation5 + $0xe0] sm:$0xff] %v1996
        %2001 = vst [vmem:[#allocation5 + $0xe8] sm:$0xff] %v1997
        %2002 = vst [vmem:[#allocation5 + $0xf0] sm:$0xff] %v1998
        %2003 = vst [vmem:[#allocation5 + $0xf8] sm:$0xff] %v1999
        %v2004 = vld [vmem:[#allocation4 + $0x260] sm:$0xff]
        %v2005 = vld [vmem:[#allocation4 + $0x268] sm:$0xff]
        %v2006 = vld [vmem:[#allocation4 + $0x2f0] sm:$0xff]
        %v2007 = vld [vmem:[#allocation4 + $0x2f8] sm:$0xff]
        %v2008 = vmul.f32 %v2004, %v1976
        %v2009 = vmul.f32 %v2005, %v1977
        %v2010 = vmul.f32 %v2006, %v1978
        %v2011 = vmul.f32 %v2007, %v1979
        %2012 = vst [vmem:[#allocation5 + $0x100] sm:$0xff] %v2008
        %2013 = vst [vmem:[#allocation5 + $0x108] sm:$0xff] %v2009
        %2014 = vst [vmem:[#allocation5 + $0x110] sm:$0xff] %v2010
        %2015 = vst [vmem:[#allocation5 + $0x118] sm:$0xff] %v2011
        %v2016 = vld [vmem:[#allocation3 + $0x60] sm:$0xff]
        %v2017 = vld [vmem:[#allocation3 + $0x68] sm:$0xff]
        %v2018 = vld [vmem:[#allocation3 + $0x70] sm:$0xff]
        %v2019 = vld [vmem:[#allocation3 + $0x78] sm:$0xff]
        %v2020 = vld [vmem:[#allocation4 + $0x30] sm:$0xff]
        %v2021 = vld [vmem:[#allocation4 + $0x38] sm:$0xff]
        %v2022 = vld [vmem:[#allocation4 + $0xc0] sm:$0xff]
        %v2023 = vld [vmem:[#allocation4 + $0xc8] sm:$0xff]
        %v2024 = vmul.f32 %v2020, %v2016
        %v2025 = vmul.f32 %v2021, %v2017
        %v2026 = vmul.f32 %v2022, %v2018
        %v2027 = vmul.f32 %v2023, %v2019
        %2028 = vst [vmem:[#allocation5 + $0x120] sm:$0xff] %v2024
        %2029 = vst [vmem:[#allocation5 + $0x128] sm:$0xff] %v2025
        %2030 = vst [vmem:[#allocation5 + $0x130] sm:$0xff] %v2026
        %2031 = vst [vmem:[#allocation5 + $0x138] sm:$0xff] %v2027
        %v2032 = vld [vmem:[#allocation4 + $0x150] sm:$0xff]
        %v2033 = vld [vmem:[#allocation4 + $0x158] sm:$0xff]
        %v2034 = vld [vmem:[#allocation4 + $0x1e0] sm:$0xff]
        %v2035 = vld [vmem:[#allocation4 + $0x1e8] sm:$0xff]
        %v2036 = vmul.f32 %v2032, %v2016
        %v2037 = vmul.f32 %v2033, %v2017
        %v2038 = vmul.f32 %v2034, %v2018
        %v2039 = vmul.f32 %v2035, %v2019
        %2040 = vst [vmem:[#allocation5 + $0x140] sm:$0xff] %v2036
        %2041 = vst [vmem:[#allocation5 + $0x148] sm:$0xff] %v2037
        %2042 = vst [vmem:[#allocation5 + $0x150] sm:$0xff] %v2038
        %2043 = vst [vmem:[#allocation5 + $0x158] sm:$0xff] %v2039
        %v2044 = vld [vmem:[#allocation4 + $0x270] sm:$0xff]
        %v2045 = vld [vmem:[#allocation4 + $0x278] sm:$0xff]
        %v2046 = vld [vmem:[#allocation4 + $0x300] sm:$0xff]
        %v2047 = vld [vmem:[#allocation4 + $0x308] sm:$0xff]
        %v2048 = vmul.f32 %v2044, %v2016
        %v2049 = vmul.f32 %v2045, %v2017
        %v2050 = vmul.f32 %v2046, %v2018
        %v2051 = vmul.f32 %v2047, %v2019
        %2052 = vst [vmem:[#allocation5 + $0x160] sm:$0xff] %v2048
        %2053 = vst [vmem:[#allocation5 + $0x168] sm:$0xff] %v2049
        %2054 = vst [vmem:[#allocation5 + $0x170] sm:$0xff] %v2050
        %2055 = vst [vmem:[#allocation5 + $0x178] sm:$0xff] %v2051
        %v2056 = vld [vmem:[#allocation3 + $0x80] sm:$0xff]
        %v2057 = vld [vmem:[#allocation3 + $0x88] sm:$0xff]
        %v2058 = vld [vmem:[#allocation3 + $0x90] sm:$0xff]
        %v2059 = vld [vmem:[#allocation3 + $0x98] sm:$0xff]
        %v2060 = vld [vmem:[#allocation4 + $0x40] sm:$0xff]
        %v2061 = vld [vmem:[#allocation4 + $0x48] sm:$0xff]
        %v2062 = vld [vmem:[#allocation4 + $0xd0] sm:$0xff]
        %v2063 = vld [vmem:[#allocation4 + $0xd8] sm:$0xff]
        %v2064 = vmul.f32 %v2060, %v2056
        %v2065 = vmul.f32 %v2061, %v2057
        %v2066 = vmul.f32 %v2062, %v2058
        %v2067 = vmul.f32 %v2063, %v2059
        %2068 = vst [vmem:[#allocation5 + $0x180] sm:$0xff] %v2064
        %2069 = vst [vmem:[#allocation5 + $0x188] sm:$0xff] %v2065
        %2070 = vst [vmem:[#allocation5 + $0x190] sm:$0xff] %v2066
        %2071 = vst [vmem:[#allocation5 + $0x198] sm:$0xff] %v2067
        %v2072 = vld [vmem:[#allocation4 + $0x160] sm:$0xff]
        %v2073 = vld [vmem:[#allocation4 + $0x168] sm:$0xff]
        %v2074 = vld [vmem:[#allocation4 + $0x1f0] sm:$0xff]
        %v2075 = vld [vmem:[#allocation4 + $0x1f8] sm:$0xff]
        %v2076 = vmul.f32 %v2072, %v2056
        %v2077 = vmul.f32 %v2073, %v2057
        %v2078 = vmul.f32 %v2074, %v2058
        %v2079 = vmul.f32 %v2075, %v2059
        %2080 = vst [vmem:[#allocation5 + $0x1a0] sm:$0xff] %v2076
        %2081 = vst [vmem:[#allocation5 + $0x1a8] sm:$0xff] %v2077
        %2082 = vst [vmem:[#allocation5 + $0x1b0] sm:$0xff] %v2078
        %2083 = vst [vmem:[#allocation5 + $0x1b8] sm:$0xff] %v2079
        %v2084 = vld [vmem:[#allocation4 + $0x280] sm:$0xff]
        %v2085 = vld [vmem:[#allocation4 + $0x288] sm:$0xff]
        %v2086 = vld [vmem:[#allocation4 + $0x310] sm:$0xff]
        %v2087 = vld [vmem:[#allocation4 + $0x318] sm:$0xff]
        %v2088 = vmul.f32 %v2084, %v2056
        %v2089 = vmul.f32 %v2085, %v2057
        %v2090 = vmul.f32 %v2086, %v2058
        %v2091 = vmul.f32 %v2087, %v2059
        %2092 = vst [vmem:[#allocation5 + $0x1c0] sm:$0xff] %v2088
        %2093 = vst [vmem:[#allocation5 + $0x1c8] sm:$0xff] %v2089
        %2094 = vst [vmem:[#allocation5 + $0x1d0] sm:$0xff] %v2090
        %2095 = vst [vmem:[#allocation5 + $0x1d8] sm:$0xff] %v2091
        %v2096 = vld [vmem:[#allocation3 + $0xa0] sm:$0xff]
        %v2097 = vld [vmem:[#allocation3 + $0xa8] sm:$0xff]
        %v2098 = vld [vmem:[#allocation3 + $0xb0] sm:$0xff]
        %v2099 = vld [vmem:[#allocation3 + $0xb8] sm:$0xff]
        %v2100 = vld [vmem:[#allocation4 + $0x50] sm:$0xff]
        %v2101 = vld [vmem:[#allocation4 + $0x58] sm:$0xff]
        %v2102 = vld [vmem:[#allocation4 + $0xe0] sm:$0xff]
        %v2103 = vld [vmem:[#allocation4 + $0xe8] sm:$0xff]
        %v2104 = vmul.f32 %v2100, %v2096
        %v2105 = vmul.f32 %v2101, %v2097
        %v2106 = vmul.f32 %v2102, %v2098
        %v2107 = vmul.f32 %v2103, %v2099
        %2108 = vst [vmem:[#allocation5 + $0x1e0] sm:$0xff] %v2104
        %2109 = vst [vmem:[#allocation5 + $0x1e8] sm:$0xff] %v2105
        %2110 = vst [vmem:[#allocation5 + $0x1f0] sm:$0xff] %v2106
        %2111 = vst [vmem:[#allocation5 + $0x1f8] sm:$0xff] %v2107
        %v2112 = vld [vmem:[#allocation4 + $0x170] sm:$0xff]
        %v2113 = vld [vmem:[#allocation4 + $0x178] sm:$0xff]
        %v2114 = vld [vmem:[#allocation4 + $0x200] sm:$0xff]
        %v2115 = vld [vmem:[#allocation4 + $0x208] sm:$0xff]
        %v2116 = vmul.f32 %v2112, %v2096
        %v2117 = vmul.f32 %v2113, %v2097
        %v2118 = vmul.f32 %v2114, %v2098
        %v2119 = vmul.f32 %v2115, %v2099
        %2120 = vst [vmem:[#allocation5 + $0x200] sm:$0xff] %v2116
        %2121 = vst [vmem:[#allocation5 + $0x208] sm:$0xff] %v2117
        %2122 = vst [vmem:[#allocation5 + $0x210] sm:$0xff] %v2118
        %2123 = vst [vmem:[#allocation5 + $0x218] sm:$0xff] %v2119
        %v2124 = vld [vmem:[#allocation4 + $0x290] sm:$0xff]
        %v2125 = vld [vmem:[#allocation4 + $0x298] sm:$0xff]
        %v2126 = vld [vmem:[#allocation4 + $0x320] sm:$0xff]
        %v2127 = vld [vmem:[#allocation4 + $0x328] sm:$0xff]
        %v2128 = vmul.f32 %v2124, %v2096
        %v2129 = vmul.f32 %v2125, %v2097
        %v2130 = vmul.f32 %v2126, %v2098
        %v2131 = vmul.f32 %v2127, %v2099
        %2132 = vst [vmem:[#allocation5 + $0x220] sm:$0xff] %v2128
        %2133 = vst [vmem:[#allocation5 + $0x228] sm:$0xff] %v2129
        %2134 = vst [vmem:[#allocation5 + $0x230] sm:$0xff] %v2130
        %2135 = vst [vmem:[#allocation5 + $0x238] sm:$0xff] %v2131
        %v2136 = vld [vmem:[#allocation3 + $0xc0] sm:$0xff]
        %v2137 = vld [vmem:[#allocation3 + $0xc8] sm:$0xff]
        %v2138 = vld [vmem:[#allocation3 + $0xd0] sm:$0xff]
        %v2139 = vld [vmem:[#allocation3 + $0xd8] sm:$0xff]
        %v2140 = vld [vmem:[#allocation4 + $0x60] sm:$0xff]
        %v2141 = vld [vmem:[#allocation4 + $0x68] sm:$0xff]
        %v2142 = vld [vmem:[#allocation4 + $0xf0] sm:$0xff]
        %v2143 = vld [vmem:[#allocation4 + $0xf8] sm:$0xff]
        %v2144 = vmul.f32 %v2140, %v2136
        %v2145 = vmul.f32 %v2141, %v2137
        %v2146 = vmul.f32 %v2142, %v2138
        %v2147 = vmul.f32 %v2143, %v2139
        %2148 = vst [vmem:[#allocation5 + $0x240] sm:$0xff] %v2144
        %2149 = vst [vmem:[#allocation5 + $0x248] sm:$0xff] %v2145
        %2150 = vst [vmem:[#allocation5 + $0x250] sm:$0xff] %v2146
        %2151 = vst [vmem:[#allocation5 + $0x258] sm:$0xff] %v2147
        %v2152 = vld [vmem:[#allocation4 + $0x180] sm:$0xff]
        %v2153 = vld [vmem:[#allocation4 + $0x188] sm:$0xff]
        %v2154 = vld [vmem:[#allocation4 + $0x210] sm:$0xff]
        %v2155 = vld [vmem:[#allocation4 + $0x218] sm:$0xff]
        %v2156 = vmul.f32 %v2152, %v2136
        %v2157 = vmul.f32 %v2153, %v2137
        %v2158 = vmul.f32 %v2154, %v2138
        %v2159 = vmul.f32 %v2155, %v2139
        %2160 = vst [vmem:[#allocation5 + $0x260] sm:$0xff] %v2156
        %2161 = vst [vmem:[#allocation5 + $0x268] sm:$0xff] %v2157
        %2162 = vst [vmem:[#allocation5 + $0x270] sm:$0xff] %v2158
        %2163 = vst [vmem:[#allocation5 + $0x278] sm:$0xff] %v2159
        %v2164 = vld [vmem:[#allocation4 + $0x2a0] sm:$0xff]
        %v2165 = vld [vmem:[#allocation4 + $0x2a8] sm:$0xff]
        %v2166 = vld [vmem:[#allocation4 + $0x330] sm:$0xff]
        %v2167 = vld [vmem:[#allocation4 + $0x338] sm:$0xff]
        %v2168 = vmul.f32 %v2164, %v2136
        %v2169 = vmul.f32 %v2165, %v2137
        %v2170 = vmul.f32 %v2166, %v2138
        %v2171 = vmul.f32 %v2167, %v2139
        %2172 = vst [vmem:[#allocation5 + $0x280] sm:$0xff] %v2168
        %2173 = vst [vmem:[#allocation5 + $0x288] sm:$0xff] %v2169
        %2174 = vst [vmem:[#allocation5 + $0x290] sm:$0xff] %v2170
        %2175 = vst [vmem:[#allocation5 + $0x298] sm:$0xff] %v2171
        %v2176 = vld [vmem:[#allocation3 + $0xe0] sm:$0xff]
        %v2177 = vld [vmem:[#allocation3 + $0xe8] sm:$0xff]
        %v2178 = vld [vmem:[#allocation3 + $0xf0] sm:$0xff]
        %v2179 = vld [vmem:[#allocation3 + $0xf8] sm:$0xff]
        %v2180 = vld [vmem:[#allocation4 + $0x70] sm:$0xff]
        %v2181 = vld [vmem:[#allocation4 + $0x78] sm:$0xff]
        %v2182 = vld [vmem:[#allocation4 + $0x100] sm:$0xff]
        %v2183 = vld [vmem:[#allocation4 + $0x108] sm:$0xff]
        %v2184 = vmul.f32 %v2180, %v2176
        %v2185 = vmul.f32 %v2181, %v2177
        %v2186 = vmul.f32 %v2182, %v2178
        %v2187 = vmul.f32 %v2183, %v2179
        %2188 = vst [vmem:[#allocation5 + $0x2a0] sm:$0xff] %v2184
        %2189 = vst [vmem:[#allocation5 + $0x2a8] sm:$0xff] %v2185
        %2190 = vst [vmem:[#allocation5 + $0x2b0] sm:$0xff] %v2186
        %2191 = vst [vmem:[#allocation5 + $0x2b8] sm:$0xff] %v2187
        %v2192 = vld [vmem:[#allocation4 + $0x190] sm:$0xff]
        %v2193 = vld [vmem:[#allocation4 + $0x198] sm:$0xff]
        %v2194 = vld [vmem:[#allocation4 + $0x220] sm:$0xff]
        %v2195 = vld [vmem:[#allocation4 + $0x228] sm:$0xff]
        %v2196 = vmul.f32 %v2192, %v2176
        %v2197 = vmul.f32 %v2193, %v2177
        %v2198 = vmul.f32 %v2194, %v2178
        %v2199 = vmul.f32 %v2195, %v2179
        %2200 = vst [vmem:[#allocation5 + $0x2c0] sm:$0xff] %v2196
        %2201 = vst [vmem:[#allocation5 + $0x2c8] sm:$0xff] %v2197
        %2202 = vst [vmem:[#allocation5 + $0x2d0] sm:$0xff] %v2198
        %2203 = vst [vmem:[#allocation5 + $0x2d8] sm:$0xff] %v2199
        %v2204 = vld [vmem:[#allocation4 + $0x2b0] sm:$0xff]
        %v2205 = vld [vmem:[#allocation4 + $0x2b8] sm:$0xff]
        %v2206 = vld [vmem:[#allocation4 + $0x340] sm:$0xff]
        %v2207 = vld [vmem:[#allocation4 + $0x348] sm:$0xff]
        %v2208 = vmul.f32 %v2204, %v2176
        %v2209 = vmul.f32 %v2205, %v2177
        %v2210 = vmul.f32 %v2206, %v2178
        %v2211 = vmul.f32 %v2207, %v2179
        %2212 = vst [vmem:[#allocation5 + $0x2e0] sm:$0xff] %v2208
        %2213 = vst [vmem:[#allocation5 + $0x2e8] sm:$0xff] %v2209
        %2214 = vst [vmem:[#allocation5 + $0x2f0] sm:$0xff] %v2210
        %2215 = vst [vmem:[#allocation5 + $0x2f8] sm:$0xff] %v2211
        %v2216 = vld [vmem:[#allocation3 + $0x100] sm:$0xff]
        %v2217 = vld [vmem:[#allocation3 + $0x108] sm:$0xff]
        %v2218 = vld [vmem:[#allocation3 + $0x110] sm:$0xff]
        %v2219 = vld [vmem:[#allocation3 + $0x118] sm:$0xff]
        %v2220 = vld [vmem:[#allocation4 + $0x80] sm:$0xff]
        %v2221 = vld [vmem:[#allocation4 + $0x88] sm:$0xff]
        %v2222 = vld [vmem:[#allocation4 + $0x110] sm:$0xff]
        %v2223 = vld [vmem:[#allocation4 + $0x118] sm:$0xff]
        %v2224 = vmul.f32 %v2220, %v2216
        %v2225 = vmul.f32 %v2221, %v2217
        %v2226 = vmul.f32 %v2222, %v2218
        %v2227 = vmul.f32 %v2223, %v2219
        %2228 = vst [vmem:[#allocation5 + $0x300] sm:$0xff] %v2224
        %2229 = vst [vmem:[#allocation5 + $0x308] sm:$0xff] %v2225
        %2230 = vst [vmem:[#allocation5 + $0x310] sm:$0xff] %v2226
        %2231 = vst [vmem:[#allocation5 + $0x318] sm:$0xff] %v2227
        %v2232 = vld [vmem:[#allocation4 + $0x1a0] sm:$0xff]
        %v2233 = vld [vmem:[#allocation4 + $0x1a8] sm:$0xff]
        %v2234 = vld [vmem:[#allocation4 + $0x230] sm:$0xff]
        %v2235 = vld [vmem:[#allocation4 + $0x238] sm:$0xff]
        %v2236 = vmul.f32 %v2232, %v2216
        %v2237 = vmul.f32 %v2233, %v2217
        %v2238 = vmul.f32 %v2234, %v2218
        %v2239 = vmul.f32 %v2235, %v2219
        %2240 = vst [vmem:[#allocation5 + $0x320] sm:$0xff] %v2236
        %2241 = vst [vmem:[#allocation5 + $0x328] sm:$0xff] %v2237
        %2242 = vst [vmem:[#allocation5 + $0x330] sm:$0xff] %v2238
        %2243 = vst [vmem:[#allocation5 + $0x338] sm:$0xff] %v2239
        %v2244 = vld [vmem:[#allocation4 + $0x2c0] sm:$0xff]
        %v2245 = vld [vmem:[#allocation4 + $0x2c8] sm:$0xff]
        %v2246 = vld [vmem:[#allocation4 + $0x350] sm:$0xff]
        %v2247 = vld [vmem:[#allocation4 + $0x358] sm:$0xff]
        %v2248 = vmul.f32 %v2244, %v2216
        %v2249 = vmul.f32 %v2245, %v2217
        %v2250 = vmul.f32 %v2246, %v2218
        %v2251 = vmul.f32 %v2247, %v2219
        %2252 = vst [vmem:[#allocation5 + $0x340] sm:$0xff] %v2248
        %2253 = vst [vmem:[#allocation5 + $0x348] sm:$0xff] %v2249
        %2254 = vst [vmem:[#allocation5 + $0x350] sm:$0xff] %v2250
        %2255 = vst [vmem:[#allocation5 + $0x358] sm:$0xff] %v2251
        %v2256 = vld [vmem:[%s4] sm:$0xff]
        %v2257 = vld [vmem:[%s4 + $0x8] sm:$0xff]
        %v2258 = vld [vmem:[%s4 + $0x10] sm:$0xff]
        %v2259 = vld [vmem:[%s4 + $0x18] sm:$0xff]
        %v2260 = vld [vmem:[#allocation5] sm:$0xff]
        %v2261 = vld [vmem:[#allocation5 + $0x8] sm:$0xff]
        %v2262 = vld [vmem:[#allocation5 + $0x10] sm:$0xff]
        %v2263 = vld [vmem:[#allocation5 + $0x18] sm:$0xff]
        %v2264 = vld [vmem:[#allocation5 + $0x20] sm:$0xff]
        %v2265 = vld [vmem:[#allocation5 + $0x28] sm:$0xff]
        %v2266 = vld [vmem:[#allocation5 + $0x30] sm:$0xff]
        %v2267 = vld [vmem:[#allocation5 + $0x38] sm:$0xff]
        %v2268 = vld [vmem:[#allocation5 + $0x40] sm:$0xff]
        %v2269 = vld [vmem:[#allocation5 + $0x48] sm:$0xff]
        %v2270 = vld [vmem:[#allocation5 + $0x50] sm:$0xff]
        %v2271 = vld [vmem:[#allocation5 + $0x58] sm:$0xff]
        %v2272 = vld [vmem:[#allocation5 + $0x60] sm:$0xff]
        %v2273 = vld [vmem:[#allocation5 + $0x68] sm:$0xff]
        %v2274 = vld [vmem:[#allocation5 + $0x70] sm:$0xff]
        %v2275 = vld [vmem:[#allocation5 + $0x78] sm:$0xff]
        %v2276 = vld [vmem:[#allocation5 + $0x80] sm:$0xff]
        %v2277 = vld [vmem:[#allocation5 + $0x88] sm:$0xff]
        %v2278 = vld [vmem:[#allocation5 + $0x90] sm:$0xff]
        %v2279 = vld [vmem:[#allocation5 + $0x98] sm:$0xff]
        %v2280 = vld [vmem:[#allocation5 + $0xa0] sm:$0xff]
        %v2281 = vld [vmem:[#allocation5 + $0xa8] sm:$0xff]
        %v2282 = vld [vmem:[#allocation5 + $0xb0] sm:$0xff]
        %v2283 = vld [vmem:[#allocation5 + $0xb8] sm:$0xff]
        %v2284 = vld [vmem:[#allocation5 + $0xc0] sm:$0xff]
        %v2285 = vld [vmem:[#allocation5 + $0xc8] sm:$0xff]
        %v2286 = vld [vmem:[#allocation5 + $0xd0] sm:$0xff]
        %v2287 = vld [vmem:[#allocation5 + $0xd8] sm:$0xff]
        %v2288 = vld [vmem:[#allocation5 + $0xe0] sm:$0xff]
        %v2289 = vld [vmem:[#allocation5 + $0xe8] sm:$0xff]
        %v2290 = vld [vmem:[#allocation5 + $0xf0] sm:$0xff]
        %v2291 = vld [vmem:[#allocation5 + $0xf8] sm:$0xff]
        %v2292 = vld [vmem:[#allocation5 + $0x100] sm:$0xff]
        %v2293 = vld [vmem:[#allocation5 + $0x108] sm:$0xff]
        %v2294 = vld [vmem:[#allocation5 + $0x110] sm:$0xff]
        %v2295 = vld [vmem:[#allocation5 + $0x118] sm:$0xff]
        %v2296 = vld [vmem:[#allocation5 + $0x120] sm:$0xff]
        %v2297 = vld [vmem:[#allocation5 + $0x128] sm:$0xff]
        %v2298 = vld [vmem:[#allocation5 + $0x130] sm:$0xff]
        %v2299 = vld [vmem:[#allocation5 + $0x138] sm:$0xff]
        %v2300 = vld [vmem:[#allocation5 + $0x140] sm:$0xff]
        %v2301 = vld [vmem:[#allocation5 + $0x148] sm:$0xff]
        %v2302 = vld [vmem:[#allocation5 + $0x150] sm:$0xff]
        %v2303 = vld [vmem:[#allocation5 + $0x158] sm:$0xff]
        %v2304 = vld [vmem:[#allocation5 + $0x160] sm:$0xff]
        %v2305 = vld [vmem:[#allocation5 + $0x168] sm:$0xff]
        %v2306 = vld [vmem:[#allocation5 + $0x170] sm:$0xff]
        %v2307 = vld [vmem:[#allocation5 + $0x178] sm:$0xff]
        %v2308 = vld [vmem:[#allocation5 + $0x180] sm:$0xff]
        %v2309 = vld [vmem:[#allocation5 + $0x188] sm:$0xff]
        %v2310 = vld [vmem:[#allocation5 + $0x190] sm:$0xff]
        %v2311 = vld [vmem:[#allocation5 + $0x198] sm:$0xff]
        %v2312 = vld [vmem:[#allocation5 + $0x1a0] sm:$0xff]
        %v2313 = vld [vmem:[#allocation5 + $0x1a8] sm:$0xff]
        %v2314 = vld [vmem:[#allocation5 + $0x1b0] sm:$0xff]
        %v2315 = vld [vmem:[#allocation5 + $0x1b8] sm:$0xff]
        %v2316 = vld [vmem:[#allocation5 + $0x1c0] sm:$0xff]
        %v2317 = vld [vmem:[#allocation5 + $0x1c8] sm:$0xff]
        %v2318 = vld [vmem:[#allocation5 + $0x1d0] sm:$0xff]
        %v2319 = vld [vmem:[#allocation5 + $0x1d8] sm:$0xff]
        %v2320 = vld [vmem:[#allocation5 + $0x1e0] sm:$0xff]
        %v2321 = vld [vmem:[#allocation5 + $0x1e8] sm:$0xff]
        %v2322 = vld [vmem:[#allocation5 + $0x1f0] sm:$0xff]
        %v2323 = vld [vmem:[#allocation5 + $0x1f8] sm:$0xff]
        %v2324 = vld [vmem:[#allocation5 + $0x200] sm:$0xff]
        %v2325 = vld [vmem:[#allocation5 + $0x208] sm:$0xff]
        %v2326 = vld [vmem:[#allocation5 + $0x210] sm:$0xff]
        %v2327 = vld [vmem:[#allocation5 + $0x218] sm:$0xff]
        %v2328 = vld [vmem:[#allocation5 + $0x220] sm:$0xff]
        %v2329 = vld [vmem:[#allocation5 + $0x228] sm:$0xff]
        %v2330 = vld [vmem:[#allocation5 + $0x230] sm:$0xff]
        %v2331 = vld [vmem:[#allocation5 + $0x238] sm:$0xff]
        %v2332 = vld [vmem:[#allocation5 + $0x240] sm:$0xff]
        %v2333 = vld [vmem:[#allocation5 + $0x248] sm:$0xff]
        %v2334 = vld [vmem:[#allocation5 + $0x250] sm:$0xff]
        %v2335 = vld [vmem:[#allocation5 + $0x258] sm:$0xff]
        %v2336 = vld [vmem:[#allocation5 + $0x260] sm:$0xff]
        %v2337 = vld [vmem:[#allocation5 + $0x268] sm:$0xff]
        %v2338 = vld [vmem:[#allocation5 + $0x270] sm:$0xff]
        %v2339 = vld [vmem:[#allocation5 + $0x278] sm:$0xff]
        %v2340 = vld [vmem:[#allocation5 + $0x280] sm:$0xff]
        %v2341 = vld [vmem:[#allocation5 + $0x288] sm:$0xff]
        %v2342 = vld [vmem:[#allocation5 + $0x290] sm:$0xff]
        %v2343 = vld [vmem:[#allocation5 + $0x298] sm:$0xff]
        %v2344 = vld [vmem:[#allocation5 + $0x2a0] sm:$0xff]
        %v2345 = vld [vmem:[#allocation5 + $0x2a8] sm:$0xff]
        %v2346 = vld [vmem:[#allocation5 + $0x2b0] sm:$0xff]
        %v2347 = vld [vmem:[#allocation5 + $0x2b8] sm:$0xff]
        %v2348 = vld [vmem:[#allocation5 + $0x2c0] sm:$0xff]
        %v2349 = vld [vmem:[#allocation5 + $0x2c8] sm:$0xff]
        %v2350 = vld [vmem:[#allocation5 + $0x2d0] sm:$0xff]
        %v2351 = vld [vmem:[#allocation5 + $0x2d8] sm:$0xff]
        %v2352 = vld [vmem:[#allocation5 + $0x2e0] sm:$0xff]
        %v2353 = vld [vmem:[#allocation5 + $0x2e8] sm:$0xff]
        %v2354 = vld [vmem:[#allocation5 + $0x2f0] sm:$0xff]
        %v2355 = vld [vmem:[#allocation5 + $0x2f8] sm:$0xff]
        %v2356 = vld [vmem:[#allocation5 + $0x300] sm:$0xff]
        %v2357 = vld [vmem:[#allocation5 + $0x308] sm:$0xff]
        %v2358 = vld [vmem:[#allocation5 + $0x310] sm:$0xff]
        %v2359 = vld [vmem:[#allocation5 + $0x318] sm:$0xff]
        %v2360 = vld [vmem:[#allocation5 + $0x320] sm:$0xff]
        %v2361 = vld [vmem:[#allocation5 + $0x328] sm:$0xff]
        %v2362 = vld [vmem:[#allocation5 + $0x330] sm:$0xff]
        %v2363 = vld [vmem:[#allocation5 + $0x338] sm:$0xff]
        %v2364 = vld [vmem:[#allocation5 + $0x340] sm:$0xff]
        %v2365 = vld [vmem:[#allocation5 + $0x348] sm:$0xff]
        %v2366 = vld [vmem:[#allocation5 + $0x350] sm:$0xff]
        %v2367 = vld [vmem:[#allocation5 + $0x358] sm:$0xff]
        %v2368 = vld [vmem:[%s5] sm:$0xff]
        %2370 = vset.pattern.permute.xlu0 0
        %2371 = vperm.xlu0 %2370, %v2368
        %v2372 = vpop.permute.xlu0 %2371
        %vm2374 = vcmask 392192
        %v2376 = vsel %vm2374, %v2259, 0
        %2378 = vmatpush.msra.mxu0 %v2290
        %2379 = vmatpush.msra.mxu0 %v2288
        %2380 = vmatpush.msra.mxu0 %v2286
        %2381 = vmatpush.msra.mxu0 %v2284
        %2382 = vmatpush.msra.mxu0 %v2282
        %2383 = vmatpush.msra.mxu0 %v2280
        %2384 = vmatpush.msra.mxu0 %v2278
        %2385 = vmatpush.msra.mxu0 %v2276
        %2386 = vmatpush.msra.mxu0 %v2274
        %2387 = vmatpush.msra.mxu0 %v2272
        %2388 = vmatpush.msra.mxu0 %v2270
        %2389 = vmatpush.msra.mxu0 %v2268
        %2390 = vmatpush.msra.mxu0 %v2266
        %2391 = vmatpush.msra.mxu0 %v2264
        %2392 = vmatpush.msra.mxu0 %v2262
        %2393 = vmatpush.msra.mxu0 %v2260
        %2394 = vmatmul.f32.gmra.mxu0 %v2256
        %v2395 = vpop.f32.mrf.mxu0
        %v2396 = vadd.f32 %v2372, %v2395
        %2397 = vdwg.mxu0
        %2398 = vmatpush.msra.mxu0 %v2322
        %2399 = vmatpush.msra.mxu0 %v2320
        %2400 = vmatpush.msra.mxu0 %v2318
        %2401 = vmatpush.msra.mxu0 %v2316
        %2402 = vmatpush.msra.mxu0 %v2314
        %2403 = vmatpush.msra.mxu0 %v2312
        %2404 = vmatpush.msra.mxu0 %v2310
        %2405 = vmatpush.msra.mxu0 %v2308
        %2406 = vmatpush.msra.mxu0 %v2306
        %2407 = vmatpush.msra.mxu0 %v2304
        %2408 = vmatpush.msra.mxu0 %v2302
        %2409 = vmatpush.msra.mxu0 %v2300
        %2410 = vmatpush.msra.mxu0 %v2298
        %2411 = vmatpush.msra.mxu0 %v2296
        %2412 = vmatpush.msra.mxu0 %v2294
        %2413 = vmatpush.msra.mxu0 %v2292
        %2414 = vmatmul.f32.gmra.mxu0 %v2257
        %v2415 = vpop.f32.mrf.mxu0
        %v2416 = vadd.f32 %v2396, %v2415
        %2417 = vdwg.mxu0
        %2418 = vmatpush.msra.mxu0 %v2354
        %2419 = vmatpush.msra.mxu0 %v2352
        %2420 = vmatpush.msra.mxu0 %v2350
        %2421 = vmatpush.msra.mxu0 %v2348
        %2422 = vmatpush.msra.mxu0 %v2346
        %2423 = vmatpush.msra.mxu0 %v2344
        %2424 = vmatpush.msra.mxu0 %v2342
        %2425 = vmatpush.msra.mxu0 %v2340
        %2426 = vmatpush.msra.mxu0 %v2338
        %2427 = vmatpush.msra.mxu0 %v2336
        %2428 = vmatpush.msra.mxu0 %v2334
        %2429 = vmatpush.msra.mxu0 %v2332
        %2430 = vmatpush.msra.mxu0 %v2330
        %2431 = vmatpush.msra.mxu0 %v2328
        %2432 = vmatpush.msra.mxu0 %v2326
        %2433 = vmatpush.msra.mxu0 %v2324
        %2434 = vmatmul.f32.gmra.mxu0 %v2258
        %v2435 = vpop.f32.mrf.mxu0
        %v2436 = vadd.f32 %v2416, %v2435
        %2437 = vdwg.mxu0
        %2438 = vmatpush.msra.mxu0 0.0
        %2439 = vmatpush.msra.mxu0 0.0
        %2440 = vmatpush.msra.mxu0 0.0
        %2441 = vmatpush.msra.mxu0 0.0
        %2442 = vmatpush.msra.mxu0 0.0
        %2443 = vmatpush.msra.mxu0 0.0
        %2444 = vmatpush.msra.mxu0 0.0
        %2445 = vmatpush.msra.mxu0 0.0
        %2446 = vmatpush.msra.mxu0 0.0
        %2447 = vmatpush.msra.mxu0 0.0
        %2448 = vmatpush.msra.mxu0 %v2366
        %2449 = vmatpush.msra.mxu0 %v2364
        %2450 = vmatpush.msra.mxu0 %v2362
        %2451 = vmatpush.msra.mxu0 %v2360
        %2452 = vmatpush.msra.mxu0 %v2358
        %2453 = vmatpush.msra.mxu0 %v2356
        %2454 = vmatmul.f32.gmra.mxu0 %v2376
        %v2455 = vpop.f32.mrf.mxu0
        %v2456 = vadd.f32 %v2436, %v2455
        %2457 = vdwg.mxu0
        %2458 = vmatpush.msra.mxu0 %v2291
        %2459 = vmatpush.msra.mxu0 %v2289
        %2460 = vmatpush.msra.mxu0 %v2287
        %2461 = vmatpush.msra.mxu0 %v2285
        %2462 = vmatpush.msra.mxu0 %v2283
        %2463 = vmatpush.msra.mxu0 %v2281
        %2464 = vmatpush.msra.mxu0 %v2279
        %2465 = vmatpush.msra.mxu0 %v2277
        %2466 = vmatpush.msra.mxu0 %v2275
        %2467 = vmatpush.msra.mxu0 %v2273
        %2468 = vmatpush.msra.mxu0 %v2271
        %2469 = vmatpush.msra.mxu0 %v2269
        %2470 = vmatpush.msra.mxu0 %v2267
        %2471 = vmatpush.msra.mxu0 %v2265
        %2472 = vmatpush.msra.mxu0 %v2263
        %2473 = vmatpush.msra.mxu0 %v2261
        %2474 = vmatmul.f32.gmra.mxu0 %v2256
        %v2475 = vpop.f32.mrf.mxu0
        %v2476 = vadd.f32 %v2372, %v2475
        %2477 = vdwg.mxu0
        %2478 = vmatpush.msra.mxu0 %v2323
        %2479 = vmatpush.msra.mxu0 %v2321
        %2480 = vmatpush.msra.mxu0 %v2319
        %2481 = vmatpush.msra.mxu0 %v2317
        %2482 = vmatpush.msra.mxu0 %v2315
        %2483 = vmatpush.msra.mxu0 %v2313
        %2484 = vmatpush.msra.mxu0 %v2311
        %2485 = vmatpush.msra.mxu0 %v2309
        %2486 = vmatpush.msra.mxu0 %v2307
        %2487 = vmatpush.msra.mxu0 %v2305
        %2488 = vmatpush.msra.mxu0 %v2303
        %2489 = vmatpush.msra.mxu0 %v2301
        %2490 = vmatpush.msra.mxu0 %v2299
        %2491 = vmatpush.msra.mxu0 %v2297
        %2492 = vmatpush.msra.mxu0 %v2295
        %2493 = vmatpush.msra.mxu0 %v2293
        %2494 = vmatmul.f32.gmra.mxu0 %v2257
        %v2495 = vpop.f32.mrf.mxu0
        %v2496 = vadd.f32 %v2476, %v2495
        %2497 = vdwg.mxu0
        %2498 = vmatpush.msra.mxu0 %v2355
        %2499 = vmatpush.msra.mxu0 %v2353
        %2500 = vmatpush.msra.mxu0 %v2351
        %2501 = vmatpush.msra.mxu0 %v2349
        %2502 = vmatpush.msra.mxu0 %v2347
        %2503 = vmatpush.msra.mxu0 %v2345
        %2504 = vmatpush.msra.mxu0 %v2343
        %2505 = vmatpush.msra.mxu0 %v2341
        %2506 = vmatpush.msra.mxu0 %v2339
        %2507 = vmatpush.msra.mxu0 %v2337
        %2508 = vmatpush.msra.mxu0 %v2335
        %2509 = vmatpush.msra.mxu0 %v2333
        %2510 = vmatpush.msra.mxu0 %v2331
        %2511 = vmatpush.msra.mxu0 %v2329
        %2512 = vmatpush.msra.mxu0 %v2327
        %2513 = vmatpush.msra.mxu0 %v2325
        %2514 = vmatmul.f32.gmra.mxu0 %v2258
        %v2515 = vpop.f32.mrf.mxu0
        %v2516 = vadd.f32 %v2496, %v2515
        %2517 = vdwg.mxu0
        %2518 = vmatpush.msra.mxu0 0.0
        %2519 = vmatpush.msra.mxu0 0.0
        %2520 = vmatpush.msra.mxu0 0.0
        %2521 = vmatpush.msra.mxu0 0.0
        %2522 = vmatpush.msra.mxu0 0.0
        %2523 = vmatpush.msra.mxu0 0.0
        %2524 = vmatpush.msra.mxu0 0.0
        %2525 = vmatpush.msra.mxu0 0.0
        %2526 = vmatpush.msra.mxu0 0.0
        %2527 = vmatpush.msra.mxu0 0.0
        %2528 = vmatpush.msra.mxu0 %v2367
        %2529 = vmatpush.msra.mxu0 %v2365
        %2530 = vmatpush.msra.mxu0 %v2363
        %2531 = vmatpush.msra.mxu0 %v2361
        %2532 = vmatpush.msra.mxu0 %v2359
        %2533 = vmatpush.msra.mxu0 %v2357
        %2534 = vmatmul.f32.gmra.mxu0 %v2376
        %v2535 = vpop.f32.mrf.mxu0
        %v2536 = vadd.f32 %v2516, %v2535
        %2537 = vdwg.mxu0
        %2538 = vst [vmem:[%s286] sm:$0xff] %v2456
        %2539 = vst [vmem:[%s286 + $0x8] sm:$0xff] %v2536
        %s2540 = sand.u32 %s186, 1
        %s2541 = scalar_lea.sflag [#allocation7], %s2540
        %s2542 = sand.u32 %s186, 1
        %s2543 = smul.addr %s2542, 16
        %s2544 = scalar_lea.vmem [#allocation6], %s2543
        // Predicated region
        $region49: #{tpu_custom_call.1} parent=47 // pred_check
          %p2545 = pneg %p196
        $region50: #{tpu_custom_call.1} parent=47 // pred_check_branch
          %2547 = sbr.rel (%p2545) target = $region52
        $region51: #{tpu_custom_call.1} parent=47 // pred_region
          %2549 = vsyncadd %s2541, 0
          %s2550 = smul.addr %s21, 2
          %s2551 = smul.addr %s2550, 8
          %s2552 = scalar_lea.hbm %s7, %s2551
          %s2554 = sshll.u32 %s2544, 4
          %s2555 = int_to_ptr.vmem [resolvable:$true] %s2554
          %s2556 = sshll.u32 %s2552, 4
          %s2557 = int_to_ptr.hbm [resolvable:$true] %s2556
          %2559 = dma.vmem_to_hbm [thread:$0]  %s2555, 256, %s2557, %s2541
        $region52: #{tpu_custom_call.1} parent=47 // pred_fallthru
          _
      $region48: #{tpu_custom_call.1} parent=5 // pred_fallthru
        _
      %p2560 = scmp.le.s32.totalorder 2, %s16
      // Predicated region
      $region53: #{tpu_custom_call.1} parent=5 // pred_check
        %p2561 = pneg %p2560
      $region54: #{tpu_custom_call.1} parent=5 // pred_check_branch
        %2563 = sbr.rel (%p2561) target = $region56
      $region55: #{tpu_custom_call.1} parent=5 // pred_region
        %s2564 = ssub.s32 %s16, 2
        // Predicated region
        $region57: #{tpu_custom_call.1} parent=55 // pred_check
          %p2565 = pneg %p202
        $region58: #{tpu_custom_call.1} parent=55 // pred_check_branch
          %2567 = sbr.rel (%p2565) target = $region60
        $region59: #{tpu_custom_call.1} parent=55 // pred_region
          %s2568 = sand.u32 %s187, 1
          %s2569 = scalar_lea.sflag [#allocation7], %s2568
          %s2570 = sand.u32 %s187, 1
          %s2571 = smul.addr %s2570, 16
          %s2572 = scalar_lea.vmem [#allocation6], %s2571
          %2574 = dma.done %s2569, 256
        $region60: #{tpu_custom_call.1} parent=55 // pred_fallthru
          _
      $region56: #{tpu_custom_call.1} parent=5 // pred_fallthru
        _
    $region6: #{tpu_custom_call.1} parent=1 // loop_footer
      %s20 = sadd.s32 1, %s16
    $region7: #{tpu_custom_call.1} parent=1 // loop_footer_branch
      %15 = sbr.rel target = $region3
    $region8: #{tpu_custom_call.1} parent=1 // loop_exit
      _
    %2575 = vsyncpa [#allocation7], 1
    %s2576 = scalar_lea.sflag [#allocation7], 1
    %2577 = vsyncpa %s2576, 1

</llo_original>
